<compile_context>
chip_gen: v7x
topology: tpu7x:2x2x1
jax: 0.10.0
libtpu: 0.0.40
codegen_flags: <defaults>
</compile_context>

<pallas_src>
import functools
import math

import jax
import jax.numpy as jnp
from jax import lax
from jax.experimental import pallas as pl
from jax.experimental.pallas import tpu as pltpu


# ----------------------------- kernel helpers ------------------------------ #

def _layer_norm(x, g, b, eps=1e-5):
    mu = jnp.mean(x, axis=-1, keepdims=True)
    var = jnp.mean((x - mu) ** 2, axis=-1, keepdims=True)
    return (x - mu) * lax.rsqrt(var + eps) * g + b


def _rep_spec(arr):
    """BlockSpec for a weight replicated (and fetched once) across the batch grid."""
    idx = (0,) * arr.ndim
    return pl.BlockSpec(arr.shape, lambda b, _idx=idx: _idx)


# ------------------------------ fused kernel ------------------------------- #

def _itransformer_kernel(x_ref, mark_ref,
                         we_ref, be_ref,
                         wqkv_ref, bqkv_ref, wo_ref, bo_ref,
                         g1_ref, b1_ref, w1_ref, bf1_ref,
                         w2_ref, bf2_ref, g2_ref, b2_ref,
                         lng_ref, lnb_ref, wp_ref, bp_ref,
                         out_ref, attn_scratch,
                         *, n_heads, e_layers, n_vars, activation):
    f32 = jnp.float32
    x = x_ref[0]          # [N, L]  variates on sublanes, time on lanes
    mark = mark_ref[0]    # [Nm, L]

    # ---- non-stationary instance norm over time (unbiased=False) ---------- #
    mu = jnp.mean(x, axis=1, keepdims=True)                   # [N, 1]
    xc = x - mu
    var = jnp.mean(xc * xc, axis=1, keepdims=True)
    std = jnp.sqrt(var + 1e-5)
    xn = xc * pl.reciprocal(std, approx=True)

    # ---- inverted embedding: one matmul for variate + mark tokens --------- #
    we = we_ref[...]                                           # [L, d] bf16
    tok = jnp.concatenate([xn, mark], axis=0)                  # [V, L]
    h = jnp.dot(tok.astype(we.dtype), we,
                preferred_element_type=f32) + be_ref[...]      # [V, d] f32

    d = h.shape[-1]
    dh = d // n_heads
    scale = 1.0 / math.sqrt(dh)

    # ---- encoder layers (static unroll; activations stay on-chip) --------- #
    for l in range(e_layers):
        wqkv = wqkv_ref[l]                                     # [d, 3d] bf16
        qkv = jnp.dot(h.astype(wqkv.dtype), wqkv,
                      preferred_element_type=f32) + bqkv_ref[l]  # [V, 3d]
        q = qkv[:, :d]
        k = qkv[:, d:2 * d]
        v = qkv[:, 2 * d:]

        for hh in range(n_heads):                              # small static unroll
            sl = slice(hh * dh, (hh + 1) * dh)
            qh = q[:, sl]
            kh = k[:, sl]
            vh = v[:, sl]
            # scores = qh @ kh^T via transposed-rhs contraction (no explicit .T)
            s = lax.dot_general(qh, kh, (((1,), (1,)), ((), ())),
                                preferred_element_type=f32) * scale
            s = s - jnp.max(s, axis=-1, keepdims=True)
            p = jnp.exp(s)
            p = p * pl.reciprocal(jnp.sum(p, axis=-1, keepdims=True), approx=True)
            # write head output straight into the accumulator slice (no concat)
            attn_scratch[:, sl] = jnp.dot(p, vh, preferred_element_type=f32)

        attn = attn_scratch[...]                               # [V, d]
        wo = wo_ref[l]
        new_h = jnp.dot(attn.astype(wo.dtype), wo,
                        preferred_element_type=f32) + bo_ref[l]
        h1 = _layer_norm(h + new_h, g1_ref[l], b1_ref[l])

        w1 = w1_ref[l]
        y = jnp.dot(h1.astype(w1.dtype), w1,
                    preferred_element_type=f32) + bf1_ref[l]
        if activation == "relu":
            y = jnp.maximum(y, 0.0)
        else:
            y = jax.nn.gelu(y, approximate=False)
        w2 = w2_ref[l]
        y = jnp.dot(y.astype(w2.dtype), w2,
                    preferred_element_type=f32) + bf2_ref[l]
        h = _layer_norm(h1 + y, g2_ref[l], b2_ref[l])

    # ---- final LayerNorm, projection d_model->pred_len, de-normalize ------ #
    hn = _layer_norm(h, lng_ref[...], lnb_ref[...])
    wp = wp_ref[...]
    proj = jnp.dot(hn.astype(wp.dtype), wp,
                   preferred_element_type=f32) + bp_ref[...]   # [V, P]
    dec = proj[:n_vars, :]                                     # [N, P]
    out_ref[0] = dec * std + mu                                # broadcast [N, 1]


# ------------------------------ wrapper ------------------------------------ #

@functools.partial(jax.jit, static_argnames=("n_heads", "pred_len", "activation"))
def model_forward(params, x_enc, x_mark_enc, x_dec, x_mark_dec,
                  *, n_heads, pred_len, activation="relu"):
    # x_dec / x_mark_dec are unused by the iTransformer forecast path.
    del x_dec, x_mark_dec
    B, L, N = x_enc.shape
    Nm = x_mark_enc.shape[2]
    V = N + Nm
    d = params["We"].shape[1]
    P = params["Wp"].shape[1]
    e_layers = params["Wqkv"].shape[0]
    assert d % n_heads == 0, "d_model must be divisible by n_heads"

    # Wrapper-side layout plumbing (free): variates -> sublanes, time -> lanes,
    # so the kernel body contains no transposes at all.
    x_t = jnp.transpose(x_enc, (0, 2, 1)).astype(jnp.float32)        # [B, N, L]
    m_t = jnp.transpose(x_mark_enc, (0, 2, 1)).astype(jnp.float32)   # [B, Nm, L]

    weights = (params["We"], params["be"],
               params["Wqkv"], params["bqkv"], params["Wo"], params["bo"],
               params["g1"], params["b1"], params["W1"], params["bf1"],
               params["W2"], params["bf2"], params["g2"], params["b2"],
               params["ln_g"], params["ln_b"], params["Wp"], params["bp"])

    kernel = functools.partial(_itransformer_kernel, n_heads=n_heads,
                               e_layers=e_layers, n_vars=N,
                               activation=activation)

    in_specs = ([pl.BlockSpec((1, N, L), lambda b: (b, 0, 0)),
                 pl.BlockSpec((1, Nm, L), lambda b: (b, 0, 0))]
                + [_rep_spec(w) for w in weights])

    # NOTE: for realistic iTransformer sizes (d_model=512, d_ff=2048, L=96) set
    # pltpu.CompilerParams(vmem_limit_bytes=...) and keep weights bf16 so the
    # replicated-weight double buffers fit v7x's 64 MiB VMEM.
    out = pl.pallas_call(
        kernel,
        grid=(B,),                                   # parallel batch axis (v7x 2 TCs)
        in_specs=in_specs,
        out_specs=pl.BlockSpec((1, N, P), lambda b: (b, 0, 0)),
        out_shape=jax.ShapeDtypeStruct((B, N, P), jnp.float32),
        scratch_shapes=[pltpu.VMEM((V, d), jnp.float32)],
        compiler_params=pltpu.CompilerParams(
            dimension_semantics=("parallel",)),
    )(x_t, m_t, *weights)

    dec_out = jnp.transpose(out, (0, 2, 1))          # [B, P, N]
    return dec_out[:, -pred_len:, :]


# ------------------------------ params ------------------------------------- #

def init_params(key, seq_len, d_model, d_ff, e_layers, pred_len,
                weight_dtype=jnp.bfloat16):
    def lin(k, fan_in, fan_out):
        kw, kb = jax.random.split(k)
        lim = 1.0 / math.sqrt(fan_in)
        W = jax.random.uniform(kw, (fan_in, fan_out), jnp.float32, -lim, lim)
        b = jax.random.uniform(kb, (1, fan_out), jnp.float32, -lim, lim)
        return W.astype(weight_dtype), b

    keys = jax.random.split(key, e_layers + 2)
    We, be = lin(keys[0], seq_len, d_model)

    Wqkv, bqkv, Wo, bo, W1, bf1, W2, bf2 = ([] for _ in range(8))
    for l in range(e_layers):
        ks = jax.random.split(keys[1 + l], 4)
        w, b = lin(ks[0], d_model, 3 * d_model)   # fused Q/K/V projection
        Wqkv.append(w); bqkv.append(b)
        w, b = lin(ks[1], d_model, d_model)       # output projection
        Wo.append(w); bo.append(b)
        w, b = lin(ks[2], d_model, d_ff)          # conv1 (kernel_size=1) == linear
        W1.append(w); bf1.append(b)
        w, b = lin(ks[3], d_ff, d_model)          # conv2 (kernel_size=1) == linear
        W2.append(w); bf2.append(b)

    stack = lambda xs: jnp.stack(xs, axis=0)
    Wp, bp = lin(keys[1 + e_layers], d_model, pred_len)
    ones = jnp.ones((e_layers, 1, d_model), jnp.float32)
    zeros = jnp.zeros((e_layers, 1, d_model), jnp.float32)
    return dict(
        We=We, be=be,
        Wqkv=stack(Wqkv), bqkv=stack(bqkv), Wo=stack(Wo), bo=stack(bo),
        g1=ones, b1=zeros, W1=stack(W1), bf1=stack(bf1),
        W2=stack(W2), bf2=stack(bf2), g2=ones, b2=zeros,
        ln_g=jnp.ones((1, d_model), jnp.float32),
        ln_b=jnp.zeros((1, d_model), jnp.float32),
        Wp=Wp, bp=bp)


# ------------------------------ main ---------------------------------------- #

if __name__ == "__main__":
    # Model config (Model(tasks, enc_in, seq_len, pred_len, label_len, d_model,
    #                    dropout, output_attention, n_heads, d_ff, activation,
    #                    e_layers, factor))
    B, seq_len, enc_in, n_mark = 2, 16, 4, 3
    pred_len, label_len = 8, 4
    d_model, n_heads, d_ff, e_layers = 32, 4, 64, 2
    activation = "relu"   # valid constructor choice; dropout is inference identity

    key = jax.random.PRNGKey(0)
    kx, km, kp = jax.random.split(key, 3)
    x_enc = jax.random.normal(kx, (B, seq_len, enc_in), jnp.float32)
    x_mark_enc = jax.random.normal(km, (B, seq_len, n_mark), jnp.float32)
    x_dec = jnp.zeros((B, label_len + pred_len, enc_in), jnp.float32)       # unused
    x_mark_dec = jnp.zeros((B, label_len + pred_len, n_mark), jnp.float32)  # unused

    params = init_params(kp, seq_len, d_model, d_ff, e_layers, pred_len)

    out = model_forward(params, x_enc, x_mark_enc, x_dec, x_mark_dec,
                        n_heads=n_heads, pred_len=pred_len, activation=activation)
    out = jax.block_until_ready(out)
    assert out.shape == (B, pred_len, enc_in), out.shape
    assert bool(jnp.all(jnp.isfinite(out)))
    print("KERNEL_OK")
</pallas_src>

<mosaic_0001>
module attributes {stable_mosaic.version = 11 : i64} {
  func.func @_itransformer_kernel(%arg0: i32, %arg1: memref<1x4x16xf32, #tpu.memory_space<vmem>>, %arg2: memref<1x3x16xf32, #tpu.memory_space<vmem>>, %arg3: memref<16x32xbf16, #tpu.memory_space<vmem>>, %arg4: memref<1x32xf32, #tpu.memory_space<vmem>>, %arg5: memref<2x32x96xbf16, #tpu.memory_space<vmem>>, %arg6: memref<2x1x96xf32, #tpu.memory_space<vmem>>, %arg7: memref<2x32x32xbf16, #tpu.memory_space<vmem>>, %arg8: memref<2x1x32xf32, #tpu.memory_space<vmem>>, %arg9: memref<2x1x32xf32, #tpu.memory_space<vmem>>, %arg10: memref<2x1x32xf32, #tpu.memory_space<vmem>>, %arg11: memref<2x32x64xbf16, #tpu.memory_space<vmem>>, %arg12: memref<2x1x64xf32, #tpu.memory_space<vmem>>, %arg13: memref<2x64x32xbf16, #tpu.memory_space<vmem>>, %arg14: memref<2x1x32xf32, #tpu.memory_space<vmem>>, %arg15: memref<2x1x32xf32, #tpu.memory_space<vmem>>, %arg16: memref<2x1x32xf32, #tpu.memory_space<vmem>>, %arg17: memref<1x32xf32, #tpu.memory_space<vmem>>, %arg18: memref<1x32xf32, #tpu.memory_space<vmem>>, %arg19: memref<32x8xbf16, #tpu.memory_space<vmem>>, %arg20: memref<1x8xf32, #tpu.memory_space<vmem>>, %arg21: memref<1x4x8xf32, #tpu.memory_space<vmem>>, %arg22: memref<7x32xf32, #tpu.memory_space<vmem>>) attributes {dimension_semantics = [#tpu.dimension_semantics<parallel>], iteration_bounds = array<i64: 2>, scalar_prefetch = 0 : i64, scratch_operands = 1 : i64, tpu.core_type = #tpu.core_type<tc>, window_params = [{transform_indices = @transform_0, window_bounds = array<i64: 1, 4, 16>}, {transform_indices = @transform_1, window_bounds = array<i64: 1, 3, 16>}, {pipeline_mode = #tpu.pipeline_mode<synchronous>, transform_indices = @transform_2, window_bounds = array<i64: 16, 32>}, {pipeline_mode = #tpu.pipeline_mode<synchronous>, transform_indices = @transform_3, window_bounds = array<i64: 1, 32>}, {pipeline_mode = #tpu.pipeline_mode<synchronous>, transform_indices = @transform_4, window_bounds = array<i64: 2, 32, 96>}, {pipeline_mode = #tpu.pipeline_mode<synchronous>, transform_indices = @transform_5, window_bounds = array<i64: 2, 1, 96>}, {pipeline_mode = #tpu.pipeline_mode<synchronous>, transform_indices = @transform_6, window_bounds = array<i64: 2, 32, 32>}, {pipeline_mode = #tpu.pipeline_mode<synchronous>, transform_indices = @transform_7, window_bounds = array<i64: 2, 1, 32>}, {pipeline_mode = #tpu.pipeline_mode<synchronous>, transform_indices = @transform_8, window_bounds = array<i64: 2, 1, 32>}, {pipeline_mode = #tpu.pipeline_mode<synchronous>, transform_indices = @transform_9, window_bounds = array<i64: 2, 1, 32>}, {pipeline_mode = #tpu.pipeline_mode<synchronous>, transform_indices = @transform_10, window_bounds = array<i64: 2, 32, 64>}, {pipeline_mode = #tpu.pipeline_mode<synchronous>, transform_indices = @transform_11, window_bounds = array<i64: 2, 1, 64>}, {pipeline_mode = #tpu.pipeline_mode<synchronous>, transform_indices = @transform_12, window_bounds = array<i64: 2, 64, 32>}, {pipeline_mode = #tpu.pipeline_mode<synchronous>, transform_indices = @transform_13, window_bounds = array<i64: 2, 1, 32>}, {pipeline_mode = #tpu.pipeline_mode<synchronous>, transform_indices = @transform_14, window_bounds = array<i64: 2, 1, 32>}, {pipeline_mode = #tpu.pipeline_mode<synchronous>, transform_indices = @transform_15, window_bounds = array<i64: 2, 1, 32>}, {pipeline_mode = #tpu.pipeline_mode<synchronous>, transform_indices = @transform_16, window_bounds = array<i64: 1, 32>}, {pipeline_mode = #tpu.pipeline_mode<synchronous>, transform_indices = @transform_17, window_bounds = array<i64: 1, 32>}, {pipeline_mode = #tpu.pipeline_mode<synchronous>, transform_indices = @transform_18, window_bounds = array<i64: 32, 8>}, {pipeline_mode = #tpu.pipeline_mode<synchronous>, transform_indices = @transform_19, window_bounds = array<i64: 1, 8>}, {transform_indices = @transform_20, window_bounds = array<i64: 1, 4, 8>}]} {
    %c0 = arith.constant 0 : index
    %c0_0 = arith.constant 0 : index
    %c0_1 = arith.constant 0 : index
    %0 = vector.load %arg1[%c0, %c0_0, %c0_1] : memref<1x4x16xf32, #tpu.memory_space<vmem>>, vector<1x4x16xf32>
    %1 = vector.shape_cast %0 : vector<1x4x16xf32> to vector<4x16xf32>
    %c0_2 = arith.constant 0 : index
    %c0_3 = arith.constant 0 : index
    %c0_4 = arith.constant 0 : index
    %2 = vector.load %arg2[%c0_2, %c0_3, %c0_4] : memref<1x3x16xf32, #tpu.memory_space<vmem>>, vector<1x3x16xf32>
    %3 = vector.shape_cast %2 : vector<1x3x16xf32> to vector<3x16xf32>
    %cst = arith.constant dense<0.000000e+00> : vector<4xf32>
    %4 = vector.multi_reduction <add>, %1, %cst [1] : vector<4x16xf32> to vector<4xf32>
    %5 = vector.shape_cast %4 : vector<4xf32> to vector<4x1xf32>
    %cst_5 = arith.constant 1.600000e+01 : f32
    %6 = vector.broadcast %cst_5 : f32 to vector<4x1xf32>
    %7 = arith.divf %5, %6 : vector<4x1xf32>
    %8 = vector.broadcast %7 : vector<4x1xf32> to vector<4x16xf32>
    %9 = arith.subf %1, %8 : vector<4x16xf32>
    %10 = arith.mulf %9, %9 : vector<4x16xf32>
    %cst_6 = arith.constant dense<0.000000e+00> : vector<4xf32>
    %11 = vector.multi_reduction <add>, %10, %cst_6 [1] : vector<4x16xf32> to vector<4xf32>
    %12 = vector.shape_cast %11 : vector<4xf32> to vector<4x1xf32>
    %cst_7 = arith.constant 1.600000e+01 : f32
    %13 = vector.broadcast %cst_7 : f32 to vector<4x1xf32>
    %14 = arith.divf %12, %13 : vector<4x1xf32>
    %cst_8 = arith.constant 9.99999974E-6 : f32
    %15 = vector.broadcast %cst_8 : f32 to vector<4x1xf32>
    %16 = arith.addf %14, %15 : vector<4x1xf32>
    %17 = math.sqrt %16 : vector<4x1xf32>
    %18 = tpu.reciprocal %17 {approx = true} : vector<4x1xf32> -> vector<4x1xf32>
    %19 = vector.broadcast %18 : vector<4x1xf32> to vector<4x16xf32>
    %20 = arith.mulf %9, %19 : vector<4x16xf32>
    %c0_9 = arith.constant 0 : index
    %c0_10 = arith.constant 0 : index
    %21 = vector.load %arg3[%c0_9, %c0_10] : memref<16x32xbf16, #tpu.memory_space<vmem>>, vector<16x32xbf16>
    %22 = tpu.concatenate %20, %3 in 0 : vector<4x16xf32>, vector<3x16xf32> -> vector<7x16xf32>
    %23 = arith.truncf %22 : vector<7x16xf32> to vector<7x16xbf16>
    %cst_11 = arith.constant dense<0.000000e+00> : vector<7x32xf32>
    %24 = tpu.matmul %23, %21, %cst_11 {dimension_numbers = #tpu.dot_dimension_numbers<[1], [0], [0], [1], [0, 0, 1, 1], [], []>} : vector<7x16xbf16>, vector<16x32xbf16>, vector<7x32xf32> -> vector<7x32xf32>
    %c0_12 = arith.constant 0 : index
    %c0_13 = arith.constant 0 : index
    %25 = vector.load %arg4[%c0_12, %c0_13] : memref<1x32xf32, #tpu.memory_space<vmem>>, vector<1x32xf32>
    %26 = vector.broadcast %25 : vector<1x32xf32> to vector<7x32xf32>
    %27 = arith.addf %24, %26 : vector<7x32xf32>
    %c0_14 = arith.constant 0 : index
    %c0_15 = arith.constant 0 : index
    %c0_16 = arith.constant 0 : index
    %28 = vector.load %arg5[%c0_14, %c0_15, %c0_16] : memref<2x32x96xbf16, #tpu.memory_space<vmem>>, vector<1x32x96xbf16>
    %29 = vector.shape_cast %28 : vector<1x32x96xbf16> to vector<32x96xbf16>
    %30 = arith.truncf %27 : vector<7x32xf32> to vector<7x32xbf16>
    %cst_17 = arith.constant dense<0.000000e+00> : vector<7x96xf32>
    %31 = tpu.matmul %30, %29, %cst_17 {dimension_numbers = #tpu.dot_dimension_numbers<[1], [0], [0], [1], [0, 0, 1, 1], [], []>} : vector<7x32xbf16>, vector<32x96xbf16>, vector<7x96xf32> -> vector<7x96xf32>
    %c0_18 = arith.constant 0 : index
    %c0_19 = arith.constant 0 : index
    %c0_20 = arith.constant 0 : index
    %32 = vector.load %arg6[%c0_18, %c0_19, %c0_20] : memref<2x1x96xf32, #tpu.memory_space<vmem>>, vector<1x1x96xf32>
    %33 = vector.shape_cast %32 : vector<1x1x96xf32> to vector<1x96xf32>
    %34 = vector.broadcast %33 : vector<1x96xf32> to vector<7x96xf32>
    %35 = arith.addf %31, %34 : vector<7x96xf32>
    %36 = vector.extract_strided_slice %35 {offsets = [0, 0], sizes = [7, 32], strides = [1, 1]} : vector<7x96xf32> to vector<7x32xf32>
    %37 = vector.extract_strided_slice %35 {offsets = [0, 32], sizes = [7, 32], strides = [1, 1]} : vector<7x96xf32> to vector<7x32xf32>
    %38 = vector.extract_strided_slice %35 {offsets = [0, 64], sizes = [7, 32], strides = [1, 1]} : vector<7x96xf32> to vector<7x32xf32>
    %39 = vector.extract_strided_slice %36 {offsets = [0, 0], sizes = [7, 8], strides = [1, 1]} : vector<7x32xf32> to vector<7x8xf32>
    %40 = vector.extract_strided_slice %37 {offsets = [0, 0], sizes = [7, 8], strides = [1, 1]} : vector<7x32xf32> to vector<7x8xf32>
    %41 = vector.extract_strided_slice %38 {offsets = [0, 0], sizes = [7, 8], strides = [1, 1]} : vector<7x32xf32> to vector<7x8xf32>
    %cst_21 = arith.constant dense<0.000000e+00> : vector<7x7xf32>
    %42 = tpu.matmul %39, %40, %cst_21 {dimension_numbers = #tpu.dot_dimension_numbers<[1], [1], [0], [0], [0, 0, 1, 0], [], []>} : vector<7x8xf32>, vector<7x8xf32>, vector<7x7xf32> -> vector<7x7xf32>
    %cst_22 = arith.constant 0.353553385 : f32
    %43 = vector.broadcast %cst_22 : f32 to vector<7x7xf32>
    %44 = arith.mulf %42, %43 : vector<7x7xf32>
    %cst_23 = arith.constant dense<0xFF800000> : vector<7xf32>
    %45 = vector.multi_reduction <maximumf>, %44, %cst_23 [1] : vector<7x7xf32> to vector<7xf32>
    %46 = vector.shape_cast %45 : vector<7xf32> to vector<7x1xf32>
    %47 = vector.broadcast %46 : vector<7x1xf32> to vector<7x7xf32>
    %48 = arith.subf %44, %47 : vector<7x7xf32>
    %49 = math.exp %48 : vector<7x7xf32>
    %cst_24 = arith.constant dense<0.000000e+00> : vector<7xf32>
    %50 = vector.multi_reduction <add>, %49, %cst_24 [1] : vector<7x7xf32> to vector<7xf32>
    %51 = vector.shape_cast %50 : vector<7xf32> to vector<7x1xf32>
    %52 = tpu.reciprocal %51 {approx = true} : vector<7x1xf32> -> vector<7x1xf32>
    %53 = vector.broadcast %52 : vector<7x1xf32> to vector<7x7xf32>
    %54 = arith.mulf %49, %53 : vector<7x7xf32>
    %cst_25 = arith.constant dense<0.000000e+00> : vector<7x8xf32>
    %55 = tpu.matmul %54, %41, %cst_25 {dimension_numbers = #tpu.dot_dimension_numbers<[1], [0], [0], [1], [0, 0, 1, 1], [], []>} : vector<7x7xf32>, vector<7x8xf32>, vector<7x8xf32> -> vector<7x8xf32>
    %c0_26 = arith.constant 0 : index
    %c0_27 = arith.constant 0 : index
    %56 = vector.load %arg22[%c0_26, %c0_27] : memref<7x32xf32, #tpu.memory_space<vmem>>, vector<7x8xf32>
    tpu.vector_store %arg22[%c0_26, %c0_27], %55 {strides = array<i32>} : memref<7x32xf32, #tpu.memory_space<vmem>>, vector<7x8xf32>,
    %57 = vector.extract_strided_slice %36 {offsets = [0, 8], sizes = [7, 8], strides = [1, 1]} : vector<7x32xf32> to vector<7x8xf32>
    %58 = vector.extract_strided_slice %37 {offsets = [0, 8], sizes = [7, 8], strides = [1, 1]} : vector<7x32xf32> to vector<7x8xf32>
    %59 = vector.extract_strided_slice %38 {offsets = [0, 8], sizes = [7, 8], strides = [1, 1]} : vector<7x32xf32> to vector<7x8xf32>
    %cst_28 = arith.constant dense<0.000000e+00> : vector<7x7xf32>
    %60 = tpu.matmul %57, %58, %cst_28 {dimension_numbers = #tpu.dot_dimension_numbers<[1], [1], [0], [0], [0, 0, 1, 0], [], []>} : vector<7x8xf32>, vector<7x8xf32>, vector<7x7xf32> -> vector<7x7xf32>
    %cst_29 = arith.constant 0.353553385 : f32
    %61 = vector.broadcast %cst_29 : f32 to vector<7x7xf32>
    %62 = arith.mulf %60, %61 : vector<7x7xf32>
    %cst_30 = arith.constant dense<0xFF800000> : vector<7xf32>
    %63 = vector.multi_reduction <maximumf>, %62, %cst_30 [1] : vector<7x7xf32> to vector<7xf32>
    %64 = vector.shape_cast %63 : vector<7xf32> to vector<7x1xf32>
    %65 = vector.broadcast %64 : vector<7x1xf32> to vector<7x7xf32>
    %66 = arith.subf %62, %65 : vector<7x7xf32>
    %67 = math.exp %66 : vector<7x7xf32>
    %cst_31 = arith.constant dense<0.000000e+00> : vector<7xf32>
    %68 = vector.multi_reduction <add>, %67, %cst_31 [1] : vector<7x7xf32> to vector<7xf32>
    %69 = vector.shape_cast %68 : vector<7xf32> to vector<7x1xf32>
    %70 = tpu.reciprocal %69 {approx = true} : vector<7x1xf32> -> vector<7x1xf32>
    %71 = vector.broadcast %70 : vector<7x1xf32> to vector<7x7xf32>
    %72 = arith.mulf %67, %71 : vector<7x7xf32>
    %cst_32 = arith.constant dense<0.000000e+00> : vector<7x8xf32>
    %73 = tpu.matmul %72, %59, %cst_32 {dimension_numbers = #tpu.dot_dimension_numbers<[1], [0], [0], [1], [0, 0, 1, 1], [], []>} : vector<7x7xf32>, vector<7x8xf32>, vector<7x8xf32> -> vector<7x8xf32>
    %c0_33 = arith.constant 0 : index
    %c8 = arith.constant 8 : index
    %74 = vector.load %arg22[%c0_33, %c8] : memref<7x32xf32, #tpu.memory_space<vmem>>, vector<7x8xf32>
    tpu.vector_store %arg22[%c0_33, %c8], %73 {strides = array<i32>} : memref<7x32xf32, #tpu.memory_space<vmem>>, vector<7x8xf32>,
    %75 = vector.extract_strided_slice %36 {offsets = [0, 16], sizes = [7, 8], strides = [1, 1]} : vector<7x32xf32> to vector<7x8xf32>
    %76 = vector.extract_strided_slice %37 {offsets = [0, 16], sizes = [7, 8], strides = [1, 1]} : vector<7x32xf32> to vector<7x8xf32>
    %77 = vector.extract_strided_slice %38 {offsets = [0, 16], sizes = [7, 8], strides = [1, 1]} : vector<7x32xf32> to vector<7x8xf32>
    %cst_34 = arith.constant dense<0.000000e+00> : vector<7x7xf32>
    %78 = tpu.matmul %75, %76, %cst_34 {dimension_numbers = #tpu.dot_dimension_numbers<[1], [1], [0], [0], [0, 0, 1, 0], [], []>} : vector<7x8xf32>, vector<7x8xf32>, vector<7x7xf32> -> vector<7x7xf32>
    %cst_35 = arith.constant 0.353553385 : f32
    %79 = vector.broadcast %cst_35 : f32 to vector<7x7xf32>
    %80 = arith.mulf %78, %79 : vector<7x7xf32>
    %cst_36 = arith.constant dense<0xFF800000> : vector<7xf32>
    %81 = vector.multi_reduction <maximumf>, %80, %cst_36 [1] : vector<7x7xf32> to vector<7xf32>
    %82 = vector.shape_cast %81 : vector<7xf32> to vector<7x1xf32>
    %83 = vector.broadcast %82 : vector<7x1xf32> to vector<7x7xf32>
    %84 = arith.subf %80, %83 : vector<7x7xf32>
    %85 = math.exp %84 : vector<7x7xf32>
    %cst_37 = arith.constant dense<0.000000e+00> : vector<7xf32>
    %86 = vector.multi_reduction <add>, %85, %cst_37 [1] : vector<7x7xf32> to vector<7xf32>
    %87 = vector.shape_cast %86 : vector<7xf32> to vector<7x1xf32>
    %88 = tpu.reciprocal %87 {approx = true} : vector<7x1xf32> -> vector<7x1xf32>
    %89 = vector.broadcast %88 : vector<7x1xf32> to vector<7x7xf32>
    %90 = arith.mulf %85, %89 : vector<7x7xf32>
    %cst_38 = arith.constant dense<0.000000e+00> : vector<7x8xf32>
    %91 = tpu.matmul %90, %77, %cst_38 {dimension_numbers = #tpu.dot_dimension_numbers<[1], [0], [0], [1], [0, 0, 1, 1], [], []>} : vector<7x7xf32>, vector<7x8xf32>, vector<7x8xf32> -> vector<7x8xf32>
    %c0_39 = arith.constant 0 : index
    %c16 = arith.constant 16 : index
    %92 = vector.load %arg22[%c0_39, %c16] : memref<7x32xf32, #tpu.memory_space<vmem>>, vector<7x8xf32>
    tpu.vector_store %arg22[%c0_39, %c16], %91 {strides = array<i32>} : memref<7x32xf32, #tpu.memory_space<vmem>>, vector<7x8xf32>,
    %93 = vector.extract_strided_slice %36 {offsets = [0, 24], sizes = [7, 8], strides = [1, 1]} : vector<7x32xf32> to vector<7x8xf32>
    %94 = vector.extract_strided_slice %37 {offsets = [0, 24], sizes = [7, 8], strides = [1, 1]} : vector<7x32xf32> to vector<7x8xf32>
    %95 = vector.extract_strided_slice %38 {offsets = [0, 24], sizes = [7, 8], strides = [1, 1]} : vector<7x32xf32> to vector<7x8xf32>
    %cst_40 = arith.constant dense<0.000000e+00> : vector<7x7xf32>
    %96 = tpu.matmul %93, %94, %cst_40 {dimension_numbers = #tpu.dot_dimension_numbers<[1], [1], [0], [0], [0, 0, 1, 0], [], []>} : vector<7x8xf32>, vector<7x8xf32>, vector<7x7xf32> -> vector<7x7xf32>
    %cst_41 = arith.constant 0.353553385 : f32
    %97 = vector.broadcast %cst_41 : f32 to vector<7x7xf32>
    %98 = arith.mulf %96, %97 : vector<7x7xf32>
    %cst_42 = arith.constant dense<0xFF800000> : vector<7xf32>
    %99 = vector.multi_reduction <maximumf>, %98, %cst_42 [1] : vector<7x7xf32> to vector<7xf32>
    %100 = vector.shape_cast %99 : vector<7xf32> to vector<7x1xf32>
    %101 = vector.broadcast %100 : vector<7x1xf32> to vector<7x7xf32>
    %102 = arith.subf %98, %101 : vector<7x7xf32>
    %103 = math.exp %102 : vector<7x7xf32>
    %cst_43 = arith.constant dense<0.000000e+00> : vector<7xf32>
    %104 = vector.multi_reduction <add>, %103, %cst_43 [1] : vector<7x7xf32> to vector<7xf32>
    %105 = vector.shape_cast %104 : vector<7xf32> to vector<7x1xf32>
    %106 = tpu.reciprocal %105 {approx = true} : vector<7x1xf32> -> vector<7x1xf32>
    %107 = vector.broadcast %106 : vector<7x1xf32> to vector<7x7xf32>
    %108 = arith.mulf %103, %107 : vector<7x7xf32>
    %cst_44 = arith.constant dense<0.000000e+00> : vector<7x8xf32>
    %109 = tpu.matmul %108, %95, %cst_44 {dimension_numbers = #tpu.dot_dimension_numbers<[1], [0], [0], [1], [0, 0, 1, 1], [], []>} : vector<7x7xf32>, vector<7x8xf32>, vector<7x8xf32> -> vector<7x8xf32>
    %c0_45 = arith.constant 0 : index
    %c24 = arith.constant 24 : index
    %110 = vector.load %arg22[%c0_45, %c24] : memref<7x32xf32, #tpu.memory_space<vmem>>, vector<7x8xf32>
    tpu.vector_store %arg22[%c0_45, %c24], %109 {strides = array<i32>} : memref<7x32xf32, #tpu.memory_space<vmem>>, vector<7x8xf32>,
    %c0_46 = arith.constant 0 : index
    %c0_47 = arith.constant 0 : index
    %111 = vector.load %arg22[%c0_46, %c0_47] : memref<7x32xf32, #tpu.memory_space<vmem>>, vector<7x32xf32>
    %c0_48 = arith.constant 0 : index
    %c0_49 = arith.constant 0 : index
    %c0_50 = arith.constant 0 : index
    %112 = vector.load %arg7[%c0_48, %c0_49, %c0_50] : memref<2x32x32xbf16, #tpu.memory_space<vmem>>, vector<1x32x32xbf16>
    %113 = vector.shape_cast %112 : vector<1x32x32xbf16> to vector<32x32xbf16>
    %114 = arith.truncf %111 : vector<7x32xf32> to vector<7x32xbf16>
    %cst_51 = arith.constant dense<0.000000e+00> : vector<7x32xf32>
    %115 = tpu.matmul %114, %113, %cst_51 {dimension_numbers = #tpu.dot_dimension_numbers<[1], [0], [0], [1], [0, 0, 1, 1], [], []>} : vector<7x32xbf16>, vector<32x32xbf16>, vector<7x32xf32> -> vector<7x32xf32>
    %c0_52 = arith.constant 0 : index
    %c0_53 = arith.constant 0 : index
    %c0_54 = arith.constant 0 : index
    %116 = vector.load %arg8[%c0_52, %c0_53, %c0_54] : memref<2x1x32xf32, #tpu.memory_space<vmem>>, vector<1x1x32xf32>
    %117 = vector.shape_cast %116 : vector<1x1x32xf32> to vector<1x32xf32>
    %118 = vector.broadcast %117 : vector<1x32xf32> to vector<7x32xf32>
    %119 = arith.addf %115, %118 : vector<7x32xf32>
    %120 = arith.addf %27, %119 : vector<7x32xf32>
    %c0_55 = arith.constant 0 : index
    %c0_56 = arith.constant 0 : index
    %c0_57 = arith.constant 0 : index
    %121 = vector.load %arg9[%c0_55, %c0_56, %c0_57] : memref<2x1x32xf32, #tpu.memory_space<vmem>>, vector<1x1x32xf32>
    %122 = vector.shape_cast %121 : vector<1x1x32xf32> to vector<1x32xf32>
    %c0_58 = arith.constant 0 : index
    %c0_59 = arith.constant 0 : index
    %c0_60 = arith.constant 0 : index
    %123 = vector.load %arg10[%c0_58, %c0_59, %c0_60] : memref<2x1x32xf32, #tpu.memory_space<vmem>>, vector<1x1x32xf32>
    %124 = vector.shape_cast %123 : vector<1x1x32xf32> to vector<1x32xf32>
    %cst_61 = arith.constant dense<0.000000e+00> : vector<7xf32>
    %125 = vector.multi_reduction <add>, %120, %cst_61 [1] : vector<7x32xf32> to vector<7xf32>
    %126 = vector.shape_cast %125 : vector<7xf32> to vector<7x1xf32>
    %cst_62 = arith.constant 3.200000e+01 : f32
    %127 = vector.broadcast %cst_62 : f32 to vector<7x1xf32>
    %128 = arith.divf %126, %127 : vector<7x1xf32>
    %129 = vector.broadcast %128 : vector<7x1xf32> to vector<7x32xf32>
    %130 = arith.subf %120, %129 : vector<7x32xf32>
    %131 = arith.mulf %130, %130 : vector<7x32xf32>
    %cst_63 = arith.constant dense<0.000000e+00> : vector<7xf32>
    %132 = vector.multi_reduction <add>, %131, %cst_63 [1] : vector<7x32xf32> to vector<7xf32>
    %133 = vector.shape_cast %132 : vector<7xf32> to vector<7x1xf32>
    %cst_64 = arith.constant 3.200000e+01 : f32
    %134 = vector.broadcast %cst_64 : f32 to vector<7x1xf32>
    %135 = arith.divf %133, %134 : vector<7x1xf32>
    %136 = vector.broadcast %128 : vector<7x1xf32> to vector<7x32xf32>
    %137 = arith.subf %120, %136 : vector<7x32xf32>
    %cst_65 = arith.constant 9.99999974E-6 : f32
    %138 = vector.broadcast %cst_65 : f32 to vector<7x1xf32>
    %139 = arith.addf %135, %138 : vector<7x1xf32>
    %140 = math.rsqrt %139 : vector<7x1xf32>
    %141 = vector.broadcast %140 : vector<7x1xf32> to vector<7x32xf32>
    %142 = arith.mulf %137, %141 : vector<7x32xf32>
    %143 = vector.broadcast %122 : vector<1x32xf32> to vector<7x32xf32>
    %144 = arith.mulf %142, %143 : vector<7x32xf32>
    %145 = vector.broadcast %124 : vector<1x32xf32> to vector<7x32xf32>
    %146 = arith.addf %144, %145 : vector<7x32xf32>
    %c0_66 = arith.constant 0 : index
    %c0_67 = arith.constant 0 : index
    %c0_68 = arith.constant 0 : index
    %147 = vector.load %arg11[%c0_66, %c0_67, %c0_68] : memref<2x32x64xbf16, #tpu.memory_space<vmem>>, vector<1x32x64xbf16>
    %148 = vector.shape_cast %147 : vector<1x32x64xbf16> to vector<32x64xbf16>
    %149 = arith.truncf %146 : vector<7x32xf32> to vector<7x32xbf16>
    %cst_69 = arith.constant dense<0.000000e+00> : vector<7x64xf32>
    %150 = tpu.matmul %149, %148, %cst_69 {dimension_numbers = #tpu.dot_dimension_numbers<[1], [0], [0], [1], [0, 0, 1, 1], [], []>} : vector<7x32xbf16>, vector<32x64xbf16>, vector<7x64xf32> -> vector<7x64xf32>
    %c0_70 = arith.constant 0 : index
    %c0_71 = arith.constant 0 : index
    %c0_72 = arith.constant 0 : index
    %151 = vector.load %arg12[%c0_70, %c0_71, %c0_72] : memref<2x1x64xf32, #tpu.memory_space<vmem>>, vector<1x1x64xf32>
    %152 = vector.shape_cast %151 : vector<1x1x64xf32> to vector<1x64xf32>
    %153 = vector.broadcast %152 : vector<1x64xf32> to vector<7x64xf32>
    %154 = arith.addf %150, %153 : vector<7x64xf32>
    %cst_73 = arith.constant 0.000000e+00 : f32
    %155 = vector.broadcast %cst_73 : f32 to vector<7x64xf32>
    %156 = arith.maximumf %154, %155 : vector<7x64xf32>
    %c0_74 = arith.constant 0 : index
    %c0_75 = arith.constant 0 : index
    %c0_76 = arith.constant 0 : index
    %157 = vector.load %arg13[%c0_74, %c0_75, %c0_76] : memref<2x64x32xbf16, #tpu.memory_space<vmem>>, vector<1x64x32xbf16>
    %158 = vector.shape_cast %157 : vector<1x64x32xbf16> to vector<64x32xbf16>
    %159 = arith.truncf %156 : vector<7x64xf32> to vector<7x64xbf16>
    %cst_77 = arith.constant dense<0.000000e+00> : vector<7x32xf32>
    %160 = tpu.matmul %159, %158, %cst_77 {dimension_numbers = #tpu.dot_dimension_numbers<[1], [0], [0], [1], [0, 0, 1, 1], [], []>} : vector<7x64xbf16>, vector<64x32xbf16>, vector<7x32xf32> -> vector<7x32xf32>
    %c0_78 = arith.constant 0 : index
    %c0_79 = arith.constant 0 : index
    %c0_80 = arith.constant 0 : index
    %161 = vector.load %arg14[%c0_78, %c0_79, %c0_80] : memref<2x1x32xf32, #tpu.memory_space<vmem>>, vector<1x1x32xf32>
    %162 = vector.shape_cast %161 : vector<1x1x32xf32> to vector<1x32xf32>
    %163 = vector.broadcast %162 : vector<1x32xf32> to vector<7x32xf32>
    %164 = arith.addf %160, %163 : vector<7x32xf32>
    %165 = arith.addf %146, %164 : vector<7x32xf32>
    %c0_81 = arith.constant 0 : index
    %c0_82 = arith.constant 0 : index
    %c0_83 = arith.constant 0 : index
    %166 = vector.load %arg15[%c0_81, %c0_82, %c0_83] : memref<2x1x32xf32, #tpu.memory_space<vmem>>, vector<1x1x32xf32>
    %167 = vector.shape_cast %166 : vector<1x1x32xf32> to vector<1x32xf32>
    %c0_84 = arith.constant 0 : index
    %c0_85 = arith.constant 0 : index
    %c0_86 = arith.constant 0 : index
    %168 = vector.load %arg16[%c0_84, %c0_85, %c0_86] : memref<2x1x32xf32, #tpu.memory_space<vmem>>, vector<1x1x32xf32>
    %169 = vector.shape_cast %168 : vector<1x1x32xf32> to vector<1x32xf32>
    %cst_87 = arith.constant dense<0.000000e+00> : vector<7xf32>
    %170 = vector.multi_reduction <add>, %165, %cst_87 [1] : vector<7x32xf32> to vector<7xf32>
    %171 = vector.shape_cast %170 : vector<7xf32> to vector<7x1xf32>
    %cst_88 = arith.constant 3.200000e+01 : f32
    %172 = vector.broadcast %cst_88 : f32 to vector<7x1xf32>
    %173 = arith.divf %171, %172 : vector<7x1xf32>
    %174 = vector.broadcast %173 : vector<7x1xf32> to vector<7x32xf32>
    %175 = arith.subf %165, %174 : vector<7x32xf32>
    %176 = arith.mulf %175, %175 : vector<7x32xf32>
    %cst_89 = arith.constant dense<0.000000e+00> : vector<7xf32>
    %177 = vector.multi_reduction <add>, %176, %cst_89 [1] : vector<7x32xf32> to vector<7xf32>
    %178 = vector.shape_cast %177 : vector<7xf32> to vector<7x1xf32>
    %cst_90 = arith.constant 3.200000e+01 : f32
    %179 = vector.broadcast %cst_90 : f32 to vector<7x1xf32>
    %180 = arith.divf %178, %179 : vector<7x1xf32>
    %181 = vector.broadcast %173 : vector<7x1xf32> to vector<7x32xf32>
    %182 = arith.subf %165, %181 : vector<7x32xf32>
    %cst_91 = arith.constant 9.99999974E-6 : f32
    %183 = vector.broadcast %cst_91 : f32 to vector<7x1xf32>
    %184 = arith.addf %180, %183 : vector<7x1xf32>
    %185 = math.rsqrt %184 : vector<7x1xf32>
    %186 = vector.broadcast %185 : vector<7x1xf32> to vector<7x32xf32>
    %187 = arith.mulf %182, %186 : vector<7x32xf32>
    %188 = vector.broadcast %167 : vector<1x32xf32> to vector<7x32xf32>
    %189 = arith.mulf %187, %188 : vector<7x32xf32>
    %190 = vector.broadcast %169 : vector<1x32xf32> to vector<7x32xf32>
    %191 = arith.addf %189, %190 : vector<7x32xf32>
    %c1 = arith.constant 1 : index
    %c0_92 = arith.constant 0 : index
    %c0_93 = arith.constant 0 : index
    %192 = vector.load %arg5[%c1, %c0_92, %c0_93] : memref<2x32x96xbf16, #tpu.memory_space<vmem>>, vector<1x32x96xbf16>
    %193 = vector.shape_cast %192 : vector<1x32x96xbf16> to vector<32x96xbf16>
    %194 = arith.truncf %191 : vector<7x32xf32> to vector<7x32xbf16>
    %cst_94 = arith.constant dense<0.000000e+00> : vector<7x96xf32>
    %195 = tpu.matmul %194, %193, %cst_94 {dimension_numbers = #tpu.dot_dimension_numbers<[1], [0], [0], [1], [0, 0, 1, 1], [], []>} : vector<7x32xbf16>, vector<32x96xbf16>, vector<7x96xf32> -> vector<7x96xf32>
    %c1_95 = arith.constant 1 : index
    %c0_96 = arith.constant 0 : index
    %c0_97 = arith.constant 0 : index
    %196 = vector.load %arg6[%c1_95, %c0_96, %c0_97] : memref<2x1x96xf32, #tpu.memory_space<vmem>>, vector<1x1x96xf32>
    %197 = vector.shape_cast %196 : vector<1x1x96xf32> to vector<1x96xf32>
    %198 = vector.broadcast %197 : vector<1x96xf32> to vector<7x96xf32>
    %199 = arith.addf %195, %198 : vector<7x96xf32>
    %200 = vector.extract_strided_slice %199 {offsets = [0, 0], sizes = [7, 32], strides = [1, 1]} : vector<7x96xf32> to vector<7x32xf32>
    %201 = vector.extract_strided_slice %199 {offsets = [0, 32], sizes = [7, 32], strides = [1, 1]} : vector<7x96xf32> to vector<7x32xf32>
    %202 = vector.extract_strided_slice %199 {offsets = [0, 64], sizes = [7, 32], strides = [1, 1]} : vector<7x96xf32> to vector<7x32xf32>
    %203 = vector.extract_strided_slice %200 {offsets = [0, 0], sizes = [7, 8], strides = [1, 1]} : vector<7x32xf32> to vector<7x8xf32>
    %204 = vector.extract_strided_slice %201 {offsets = [0, 0], sizes = [7, 8], strides = [1, 1]} : vector<7x32xf32> to vector<7x8xf32>
    %205 = vector.extract_strided_slice %202 {offsets = [0, 0], sizes = [7, 8], strides = [1, 1]} : vector<7x32xf32> to vector<7x8xf32>
    %cst_98 = arith.constant dense<0.000000e+00> : vector<7x7xf32>
    %206 = tpu.matmul %203, %204, %cst_98 {dimension_numbers = #tpu.dot_dimension_numbers<[1], [1], [0], [0], [0, 0, 1, 0], [], []>} : vector<7x8xf32>, vector<7x8xf32>, vector<7x7xf32> -> vector<7x7xf32>
    %cst_99 = arith.constant 0.353553385 : f32
    %207 = vector.broadcast %cst_99 : f32 to vector<7x7xf32>
    %208 = arith.mulf %206, %207 : vector<7x7xf32>
    %cst_100 = arith.constant dense<0xFF800000> : vector<7xf32>
    %209 = vector.multi_reduction <maximumf>, %208, %cst_100 [1] : vector<7x7xf32> to vector<7xf32>
    %210 = vector.shape_cast %209 : vector<7xf32> to vector<7x1xf32>
    %211 = vector.broadcast %210 : vector<7x1xf32> to vector<7x7xf32>
    %212 = arith.subf %208, %211 : vector<7x7xf32>
    %213 = math.exp %212 : vector<7x7xf32>
    %cst_101 = arith.constant dense<0.000000e+00> : vector<7xf32>
    %214 = vector.multi_reduction <add>, %213, %cst_101 [1] : vector<7x7xf32> to vector<7xf32>
    %215 = vector.shape_cast %214 : vector<7xf32> to vector<7x1xf32>
    %216 = tpu.reciprocal %215 {approx = true} : vector<7x1xf32> -> vector<7x1xf32>
    %217 = vector.broadcast %216 : vector<7x1xf32> to vector<7x7xf32>
    %218 = arith.mulf %213, %217 : vector<7x7xf32>
    %cst_102 = arith.constant dense<0.000000e+00> : vector<7x8xf32>
    %219 = tpu.matmul %218, %205, %cst_102 {dimension_numbers = #tpu.dot_dimension_numbers<[1], [0], [0], [1], [0, 0, 1, 1], [], []>} : vector<7x7xf32>, vector<7x8xf32>, vector<7x8xf32> -> vector<7x8xf32>
    %c0_103 = arith.constant 0 : index
    %c0_104 = arith.constant 0 : index
    %220 = vector.load %arg22[%c0_103, %c0_104] : memref<7x32xf32, #tpu.memory_space<vmem>>, vector<7x8xf32>
    tpu.vector_store %arg22[%c0_103, %c0_104], %219 {strides = array<i32>} : memref<7x32xf32, #tpu.memory_space<vmem>>, vector<7x8xf32>,
    %221 = vector.extract_strided_slice %200 {offsets = [0, 8], sizes = [7, 8], strides = [1, 1]} : vector<7x32xf32> to vector<7x8xf32>
    %222 = vector.extract_strided_slice %201 {offsets = [0, 8], sizes = [7, 8], strides = [1, 1]} : vector<7x32xf32> to vector<7x8xf32>
    %223 = vector.extract_strided_slice %202 {offsets = [0, 8], sizes = [7, 8], strides = [1, 1]} : vector<7x32xf32> to vector<7x8xf32>
    %cst_105 = arith.constant dense<0.000000e+00> : vector<7x7xf32>
    %224 = tpu.matmul %221, %222, %cst_105 {dimension_numbers = #tpu.dot_dimension_numbers<[1], [1], [0], [0], [0, 0, 1, 0], [], []>} : vector<7x8xf32>, vector<7x8xf32>, vector<7x7xf32> -> vector<7x7xf32>
    %cst_106 = arith.constant 0.353553385 : f32
    %225 = vector.broadcast %cst_106 : f32 to vector<7x7xf32>
    %226 = arith.mulf %224, %225 : vector<7x7xf32>
    %cst_107 = arith.constant dense<0xFF800000> : vector<7xf32>
    %227 = vector.multi_reduction <maximumf>, %226, %cst_107 [1] : vector<7x7xf32> to vector<7xf32>
    %228 = vector.shape_cast %227 : vector<7xf32> to vector<7x1xf32>
    %229 = vector.broadcast %228 : vector<7x1xf32> to vector<7x7xf32>
    %230 = arith.subf %226, %229 : vector<7x7xf32>
    %231 = math.exp %230 : vector<7x7xf32>
    %cst_108 = arith.constant dense<0.000000e+00> : vector<7xf32>
    %232 = vector.multi_reduction <add>, %231, %cst_108 [1] : vector<7x7xf32> to vector<7xf32>
    %233 = vector.shape_cast %232 : vector<7xf32> to vector<7x1xf32>
    %234 = tpu.reciprocal %233 {approx = true} : vector<7x1xf32> -> vector<7x1xf32>
    %235 = vector.broadcast %234 : vector<7x1xf32> to vector<7x7xf32>
    %236 = arith.mulf %231, %235 : vector<7x7xf32>
    %cst_109 = arith.constant dense<0.000000e+00> : vector<7x8xf32>
    %237 = tpu.matmul %236, %223, %cst_109 {dimension_numbers = #tpu.dot_dimension_numbers<[1], [0], [0], [1], [0, 0, 1, 1], [], []>} : vector<7x7xf32>, vector<7x8xf32>, vector<7x8xf32> -> vector<7x8xf32>
    %c0_110 = arith.constant 0 : index
    %c8_111 = arith.constant 8 : index
    %238 = vector.load %arg22[%c0_110, %c8_111] : memref<7x32xf32, #tpu.memory_space<vmem>>, vector<7x8xf32>
    tpu.vector_store %arg22[%c0_110, %c8_111], %237 {strides = array<i32>} : memref<7x32xf32, #tpu.memory_space<vmem>>, vector<7x8xf32>,
    %239 = vector.extract_strided_slice %200 {offsets = [0, 16], sizes = [7, 8], strides = [1, 1]} : vector<7x32xf32> to vector<7x8xf32>
    %240 = vector.extract_strided_slice %201 {offsets = [0, 16], sizes = [7, 8], strides = [1, 1]} : vector<7x32xf32> to vector<7x8xf32>
    %241 = vector.extract_strided_slice %202 {offsets = [0, 16], sizes = [7, 8], strides = [1, 1]} : vector<7x32xf32> to vector<7x8xf32>
    %cst_112 = arith.constant dense<0.000000e+00> : vector<7x7xf32>
    %242 = tpu.matmul %239, %240, %cst_112 {dimension_numbers = #tpu.dot_dimension_numbers<[1], [1], [0], [0], [0, 0, 1, 0], [], []>} : vector<7x8xf32>, vector<7x8xf32>, vector<7x7xf32> -> vector<7x7xf32>
    %cst_113 = arith.constant 0.353553385 : f32
    %243 = vector.broadcast %cst_113 : f32 to vector<7x7xf32>
    %244 = arith.mulf %242, %243 : vector<7x7xf32>
    %cst_114 = arith.constant dense<0xFF800000> : vector<7xf32>
    %245 = vector.multi_reduction <maximumf>, %244, %cst_114 [1] : vector<7x7xf32> to vector<7xf32>
    %246 = vector.shape_cast %245 : vector<7xf32> to vector<7x1xf32>
    %247 = vector.broadcast %246 : vector<7x1xf32> to vector<7x7xf32>
    %248 = arith.subf %244, %247 : vector<7x7xf32>
    %249 = math.exp %248 : vector<7x7xf32>
    %cst_115 = arith.constant dense<0.000000e+00> : vector<7xf32>
    %250 = vector.multi_reduction <add>, %249, %cst_115 [1] : vector<7x7xf32> to vector<7xf32>
    %251 = vector.shape_cast %250 : vector<7xf32> to vector<7x1xf32>
    %252 = tpu.reciprocal %251 {approx = true} : vector<7x1xf32> -> vector<7x1xf32>
    %253 = vector.broadcast %252 : vector<7x1xf32> to vector<7x7xf32>
    %254 = arith.mulf %249, %253 : vector<7x7xf32>
    %cst_116 = arith.constant dense<0.000000e+00> : vector<7x8xf32>
    %255 = tpu.matmul %254, %241, %cst_116 {dimension_numbers = #tpu.dot_dimension_numbers<[1], [0], [0], [1], [0, 0, 1, 1], [], []>} : vector<7x7xf32>, vector<7x8xf32>, vector<7x8xf32> -> vector<7x8xf32>
    %c0_117 = arith.constant 0 : index
    %c16_118 = arith.constant 16 : index
    %256 = vector.load %arg22[%c0_117, %c16_118] : memref<7x32xf32, #tpu.memory_space<vmem>>, vector<7x8xf32>
    tpu.vector_store %arg22[%c0_117, %c16_118], %255 {strides = array<i32>} : memref<7x32xf32, #tpu.memory_space<vmem>>, vector<7x8xf32>,
    %257 = vector.extract_strided_slice %200 {offsets = [0, 24], sizes = [7, 8], strides = [1, 1]} : vector<7x32xf32> to vector<7x8xf32>
    %258 = vector.extract_strided_slice %201 {offsets = [0, 24], sizes = [7, 8], strides = [1, 1]} : vector<7x32xf32> to vector<7x8xf32>
    %259 = vector.extract_strided_slice %202 {offsets = [0, 24], sizes = [7, 8], strides = [1, 1]} : vector<7x32xf32> to vector<7x8xf32>
    %cst_119 = arith.constant dense<0.000000e+00> : vector<7x7xf32>
    %260 = tpu.matmul %257, %258, %cst_119 {dimension_numbers = #tpu.dot_dimension_numbers<[1], [1], [0], [0], [0, 0, 1, 0], [], []>} : vector<7x8xf32>, vector<7x8xf32>, vector<7x7xf32> -> vector<7x7xf32>
    %cst_120 = arith.constant 0.353553385 : f32
    %261 = vector.broadcast %cst_120 : f32 to vector<7x7xf32>
    %262 = arith.mulf %260, %261 : vector<7x7xf32>
    %cst_121 = arith.constant dense<0xFF800000> : vector<7xf32>
    %263 = vector.multi_reduction <maximumf>, %262, %cst_121 [1] : vector<7x7xf32> to vector<7xf32>
    %264 = vector.shape_cast %263 : vector<7xf32> to vector<7x1xf32>
    %265 = vector.broadcast %264 : vector<7x1xf32> to vector<7x7xf32>
    %266 = arith.subf %262, %265 : vector<7x7xf32>
    %267 = math.exp %266 : vector<7x7xf32>
    %cst_122 = arith.constant dense<0.000000e+00> : vector<7xf32>
    %268 = vector.multi_reduction <add>, %267, %cst_122 [1] : vector<7x7xf32> to vector<7xf32>
    %269 = vector.shape_cast %268 : vector<7xf32> to vector<7x1xf32>
    %270 = tpu.reciprocal %269 {approx = true} : vector<7x1xf32> -> vector<7x1xf32>
    %271 = vector.broadcast %270 : vector<7x1xf32> to vector<7x7xf32>
    %272 = arith.mulf %267, %271 : vector<7x7xf32>
    %cst_123 = arith.constant dense<0.000000e+00> : vector<7x8xf32>
    %273 = tpu.matmul %272, %259, %cst_123 {dimension_numbers = #tpu.dot_dimension_numbers<[1], [0], [0], [1], [0, 0, 1, 1], [], []>} : vector<7x7xf32>, vector<7x8xf32>, vector<7x8xf32> -> vector<7x8xf32>
    %c0_124 = arith.constant 0 : index
    %c24_125 = arith.constant 24 : index
    %274 = vector.load %arg22[%c0_124, %c24_125] : memref<7x32xf32, #tpu.memory_space<vmem>>, vector<7x8xf32>
    tpu.vector_store %arg22[%c0_124, %c24_125], %273 {strides = array<i32>} : memref<7x32xf32, #tpu.memory_space<vmem>>, vector<7x8xf32>,
    %c0_126 = arith.constant 0 : index
    %c0_127 = arith.constant 0 : index
    %275 = vector.load %arg22[%c0_126, %c0_127] : memref<7x32xf32, #tpu.memory_space<vmem>>, vector<7x32xf32>
    %c1_128 = arith.constant 1 : index
    %c0_129 = arith.constant 0 : index
    %c0_130 = arith.constant 0 : index
    %276 = vector.load %arg7[%c1_128, %c0_129, %c0_130] : memref<2x32x32xbf16, #tpu.memory_space<vmem>>, vector<1x32x32xbf16>
    %277 = vector.shape_cast %276 : vector<1x32x32xbf16> to vector<32x32xbf16>
    %278 = arith.truncf %275 : vector<7x32xf32> to vector<7x32xbf16>
    %cst_131 = arith.constant dense<0.000000e+00> : vector<7x32xf32>
    %279 = tpu.matmul %278, %277, %cst_131 {dimension_numbers = #tpu.dot_dimension_numbers<[1], [0], [0], [1], [0, 0, 1, 1], [], []>} : vector<7x32xbf16>, vector<32x32xbf16>, vector<7x32xf32> -> vector<7x32xf32>
    %c1_132 = arith.constant 1 : index
    %c0_133 = arith.constant 0 : index
    %c0_134 = arith.constant 0 : index
    %280 = vector.load %arg8[%c1_132, %c0_133, %c0_134] : memref<2x1x32xf32, #tpu.memory_space<vmem>>, vector<1x1x32xf32>
    %281 = vector.shape_cast %280 : vector<1x1x32xf32> to vector<1x32xf32>
    %282 = vector.broadcast %281 : vector<1x32xf32> to vector<7x32xf32>
    %283 = arith.addf %279, %282 : vector<7x32xf32>
    %284 = arith.addf %191, %283 : vector<7x32xf32>
    %c1_135 = arith.constant 1 : index
    %c0_136 = arith.constant 0 : index
    %c0_137 = arith.constant 0 : index
    %285 = vector.load %arg9[%c1_135, %c0_136, %c0_137] : memref<2x1x32xf32, #tpu.memory_space<vmem>>, vector<1x1x32xf32>
    %286 = vector.shape_cast %285 : vector<1x1x32xf32> to vector<1x32xf32>
    %c1_138 = arith.constant 1 : index
    %c0_139 = arith.constant 0 : index
    %c0_140 = arith.constant 0 : index
    %287 = vector.load %arg10[%c1_138, %c0_139, %c0_140] : memref<2x1x32xf32, #tpu.memory_space<vmem>>, vector<1x1x32xf32>
    %288 = vector.shape_cast %287 : vector<1x1x32xf32> to vector<1x32xf32>
    %cst_141 = arith.constant dense<0.000000e+00> : vector<7xf32>
    %289 = vector.multi_reduction <add>, %284, %cst_141 [1] : vector<7x32xf32> to vector<7xf32>
    %290 = vector.shape_cast %289 : vector<7xf32> to vector<7x1xf32>
    %cst_142 = arith.constant 3.200000e+01 : f32
    %291 = vector.broadcast %cst_142 : f32 to vector<7x1xf32>
    %292 = arith.divf %290, %291 : vector<7x1xf32>
    %293 = vector.broadcast %292 : vector<7x1xf32> to vector<7x32xf32>
    %294 = arith.subf %284, %293 : vector<7x32xf32>
    %295 = arith.mulf %294, %294 : vector<7x32xf32>
    %cst_143 = arith.constant dense<0.000000e+00> : vector<7xf32>
    %296 = vector.multi_reduction <add>, %295, %cst_143 [1] : vector<7x32xf32> to vector<7xf32>
    %297 = vector.shape_cast %296 : vector<7xf32> to vector<7x1xf32>
    %cst_144 = arith.constant 3.200000e+01 : f32
    %298 = vector.broadcast %cst_144 : f32 to vector<7x1xf32>
    %299 = arith.divf %297, %298 : vector<7x1xf32>
    %300 = vector.broadcast %292 : vector<7x1xf32> to vector<7x32xf32>
    %301 = arith.subf %284, %300 : vector<7x32xf32>
    %cst_145 = arith.constant 9.99999974E-6 : f32
    %302 = vector.broadcast %cst_145 : f32 to vector<7x1xf32>
    %303 = arith.addf %299, %302 : vector<7x1xf32>
    %304 = math.rsqrt %303 : vector<7x1xf32>
    %305 = vector.broadcast %304 : vector<7x1xf32> to vector<7x32xf32>
    %306 = arith.mulf %301, %305 : vector<7x32xf32>
    %307 = vector.broadcast %286 : vector<1x32xf32> to vector<7x32xf32>
    %308 = arith.mulf %306, %307 : vector<7x32xf32>
    %309 = vector.broadcast %288 : vector<1x32xf32> to vector<7x32xf32>
    %310 = arith.addf %308, %309 : vector<7x32xf32>
    %c1_146 = arith.constant 1 : index
    %c0_147 = arith.constant 0 : index
    %c0_148 = arith.constant 0 : index
    %311 = vector.load %arg11[%c1_146, %c0_147, %c0_148] : memref<2x32x64xbf16, #tpu.memory_space<vmem>>, vector<1x32x64xbf16>
    %312 = vector.shape_cast %311 : vector<1x32x64xbf16> to vector<32x64xbf16>
    %313 = arith.truncf %310 : vector<7x32xf32> to vector<7x32xbf16>
    %cst_149 = arith.constant dense<0.000000e+00> : vector<7x64xf32>
    %314 = tpu.matmul %313, %312, %cst_149 {dimension_numbers = #tpu.dot_dimension_numbers<[1], [0], [0], [1], [0, 0, 1, 1], [], []>} : vector<7x32xbf16>, vector<32x64xbf16>, vector<7x64xf32> -> vector<7x64xf32>
    %c1_150 = arith.constant 1 : index
    %c0_151 = arith.constant 0 : index
    %c0_152 = arith.constant 0 : index
    %315 = vector.load %arg12[%c1_150, %c0_151, %c0_152] : memref<2x1x64xf32, #tpu.memory_space<vmem>>, vector<1x1x64xf32>
    %316 = vector.shape_cast %315 : vector<1x1x64xf32> to vector<1x64xf32>
    %317 = vector.broadcast %316 : vector<1x64xf32> to vector<7x64xf32>
    %318 = arith.addf %314, %317 : vector<7x64xf32>
    %cst_153 = arith.constant 0.000000e+00 : f32
    %319 = vector.broadcast %cst_153 : f32 to vector<7x64xf32>
    %320 = arith.maximumf %318, %319 : vector<7x64xf32>
    %c1_154 = arith.constant 1 : index
    %c0_155 = arith.constant 0 : index
    %c0_156 = arith.constant 0 : index
    %321 = vector.load %arg13[%c1_154, %c0_155, %c0_156] : memref<2x64x32xbf16, #tpu.memory_space<vmem>>, vector<1x64x32xbf16>
    %322 = vector.shape_cast %321 : vector<1x64x32xbf16> to vector<64x32xbf16>
    %323 = arith.truncf %320 : vector<7x64xf32> to vector<7x64xbf16>
    %cst_157 = arith.constant dense<0.000000e+00> : vector<7x32xf32>
    %324 = tpu.matmul %323, %322, %cst_157 {dimension_numbers = #tpu.dot_dimension_numbers<[1], [0], [0], [1], [0, 0, 1, 1], [], []>} : vector<7x64xbf16>, vector<64x32xbf16>, vector<7x32xf32> -> vector<7x32xf32>
    %c1_158 = arith.constant 1 : index
    %c0_159 = arith.constant 0 : index
    %c0_160 = arith.constant 0 : index
    %325 = vector.load %arg14[%c1_158, %c0_159, %c0_160] : memref<2x1x32xf32, #tpu.memory_space<vmem>>, vector<1x1x32xf32>
    %326 = vector.shape_cast %325 : vector<1x1x32xf32> to vector<1x32xf32>
    %327 = vector.broadcast %326 : vector<1x32xf32> to vector<7x32xf32>
    %328 = arith.addf %324, %327 : vector<7x32xf32>
    %329 = arith.addf %310, %328 : vector<7x32xf32>
    %c1_161 = arith.constant 1 : index
    %c0_162 = arith.constant 0 : index
    %c0_163 = arith.constant 0 : index
    %330 = vector.load %arg15[%c1_161, %c0_162, %c0_163] : memref<2x1x32xf32, #tpu.memory_space<vmem>>, vector<1x1x32xf32>
    %331 = vector.shape_cast %330 : vector<1x1x32xf32> to vector<1x32xf32>
    %c1_164 = arith.constant 1 : index
    %c0_165 = arith.constant 0 : index
    %c0_166 = arith.constant 0 : index
    %332 = vector.load %arg16[%c1_164, %c0_165, %c0_166] : memref<2x1x32xf32, #tpu.memory_space<vmem>>, vector<1x1x32xf32>
    %333 = vector.shape_cast %332 : vector<1x1x32xf32> to vector<1x32xf32>
    %cst_167 = arith.constant dense<0.000000e+00> : vector<7xf32>
    %334 = vector.multi_reduction <add>, %329, %cst_167 [1] : vector<7x32xf32> to vector<7xf32>
    %335 = vector.shape_cast %334 : vector<7xf32> to vector<7x1xf32>
    %cst_168 = arith.constant 3.200000e+01 : f32
    %336 = vector.broadcast %cst_168 : f32 to vector<7x1xf32>
    %337 = arith.divf %335, %336 : vector<7x1xf32>
    %338 = vector.broadcast %337 : vector<7x1xf32> to vector<7x32xf32>
    %339 = arith.subf %329, %338 : vector<7x32xf32>
    %340 = arith.mulf %339, %339 : vector<7x32xf32>
    %cst_169 = arith.constant dense<0.000000e+00> : vector<7xf32>
    %341 = vector.multi_reduction <add>, %340, %cst_169 [1] : vector<7x32xf32> to vector<7xf32>
    %342 = vector.shape_cast %341 : vector<7xf32> to vector<7x1xf32>
    %cst_170 = arith.constant 3.200000e+01 : f32
    %343 = vector.broadcast %cst_170 : f32 to vector<7x1xf32>
    %344 = arith.divf %342, %343 : vector<7x1xf32>
    %345 = vector.broadcast %337 : vector<7x1xf32> to vector<7x32xf32>
    %346 = arith.subf %329, %345 : vector<7x32xf32>
    %cst_171 = arith.constant 9.99999974E-6 : f32
    %347 = vector.broadcast %cst_171 : f32 to vector<7x1xf32>
    %348 = arith.addf %344, %347 : vector<7x1xf32>
    %349 = math.rsqrt %348 : vector<7x1xf32>
    %350 = vector.broadcast %349 : vector<7x1xf32> to vector<7x32xf32>
    %351 = arith.mulf %346, %350 : vector<7x32xf32>
    %352 = vector.broadcast %331 : vector<1x32xf32> to vector<7x32xf32>
    %353 = arith.mulf %351, %352 : vector<7x32xf32>
    %354 = vector.broadcast %333 : vector<1x32xf32> to vector<7x32xf32>
    %355 = arith.addf %353, %354 : vector<7x32xf32>
    %c0_172 = arith.constant 0 : index
    %c0_173 = arith.constant 0 : index
    %356 = vector.load %arg17[%c0_172, %c0_173] : memref<1x32xf32, #tpu.memory_space<vmem>>, vector<1x32xf32>
    %c0_174 = arith.constant 0 : index
    %c0_175 = arith.constant 0 : index
    %357 = vector.load %arg18[%c0_174, %c0_175] : memref<1x32xf32, #tpu.memory_space<vmem>>, vector<1x32xf32>
    %cst_176 = arith.constant dense<0.000000e+00> : vector<7xf32>
    %358 = vector.multi_reduction <add>, %355, %cst_176 [1] : vector<7x32xf32> to vector<7xf32>
    %359 = vector.shape_cast %358 : vector<7xf32> to vector<7x1xf32>
    %cst_177 = arith.constant 3.200000e+01 : f32
    %360 = vector.broadcast %cst_177 : f32 to vector<7x1xf32>
    %361 = arith.divf %359, %360 : vector<7x1xf32>
    %362 = vector.broadcast %361 : vector<7x1xf32> to vector<7x32xf32>
    %363 = arith.subf %355, %362 : vector<7x32xf32>
    %364 = arith.mulf %363, %363 : vector<7x32xf32>
    %cst_178 = arith.constant dense<0.000000e+00> : vector<7xf32>
    %365 = vector.multi_reduction <add>, %364, %cst_178 [1] : vector<7x32xf32> to vector<7xf32>
    %366 = vector.shape_cast %365 : vector<7xf32> to vector<7x1xf32>
    %cst_179 = arith.constant 3.200000e+01 : f32
    %367 = vector.broadcast %cst_179 : f32 to vector<7x1xf32>
    %368 = arith.divf %366, %367 : vector<7x1xf32>
    %369 = vector.broadcast %361 : vector<7x1xf32> to vector<7x32xf32>
    %370 = arith.subf %355, %369 : vector<7x32xf32>
    %cst_180 = arith.constant 9.99999974E-6 : f32
    %371 = vector.broadcast %cst_180 : f32 to vector<7x1xf32>
    %372 = arith.addf %368, %371 : vector<7x1xf32>
    %373 = math.rsqrt %372 : vector<7x1xf32>
    %374 = vector.broadcast %373 : vector<7x1xf32> to vector<7x32xf32>
    %375 = arith.mulf %370, %374 : vector<7x32xf32>
    %376 = vector.broadcast %356 : vector<1x32xf32> to vector<7x32xf32>
    %377 = arith.mulf %375, %376 : vector<7x32xf32>
    %378 = vector.broadcast %357 : vector<1x32xf32> to vector<7x32xf32>
    %379 = arith.addf %377, %378 : vector<7x32xf32>
    %c0_181 = arith.constant 0 : index
    %c0_182 = arith.constant 0 : index
    %380 = vector.load %arg19[%c0_181, %c0_182] : memref<32x8xbf16, #tpu.memory_space<vmem>>, vector<32x8xbf16>
    %381 = arith.truncf %379 : vector<7x32xf32> to vector<7x32xbf16>
    %cst_183 = arith.constant dense<0.000000e+00> : vector<7x8xf32>
    %382 = tpu.matmul %381, %380, %cst_183 {dimension_numbers = #tpu.dot_dimension_numbers<[1], [0], [0], [1], [0, 0, 1, 1], [], []>} : vector<7x32xbf16>, vector<32x8xbf16>, vector<7x8xf32> -> vector<7x8xf32>
    %c0_184 = arith.constant 0 : index
    %c0_185 = arith.constant 0 : index
    %383 = vector.load %arg20[%c0_184, %c0_185] : memref<1x8xf32, #tpu.memory_space<vmem>>, vector<1x8xf32>
    %384 = vector.broadcast %383 : vector<1x8xf32> to vector<7x8xf32>
    %385 = arith.addf %382, %384 : vector<7x8xf32>
    %386 = vector.extract_strided_slice %385 {offsets = [0, 0], sizes = [4, 8], strides = [1, 1]} : vector<7x8xf32> to vector<4x8xf32>
    %387 = vector.broadcast %17 : vector<4x1xf32> to vector<4x8xf32>
    %388 = arith.mulf %386, %387 : vector<4x8xf32>
    %389 = vector.broadcast %7 : vector<4x1xf32> to vector<4x8xf32>
    %390 = arith.addf %388, %389 : vector<4x8xf32>
    %c0_186 = arith.constant 0 : index
    %c0_187 = arith.constant 0 : index
    %c0_188 = arith.constant 0 : index
    %391 = vector.load %arg21[%c0_186, %c0_187, %c0_188] : memref<1x4x8xf32, #tpu.memory_space<vmem>>, vector<1x4x8xf32>
    %392 = vector.shape_cast %391 : vector<1x4x8xf32> to vector<4x8xf32>
    %393 = vector.shape_cast %390 : vector<4x8xf32> to vector<1x4x8xf32>
    tpu.vector_store %arg21[%c0_186, %c0_187, %c0_188], %393 {strides = array<i32>} : memref<1x4x8xf32, #tpu.memory_space<vmem>>, vector<1x4x8xf32>,
    return
  }
  func.func @transform_0(%arg0: i32) -> (i32, i32, i32) {
    %c0_i32 = arith.constant 0 : i32
    %c0_i32_0 = arith.constant 0 : i32
    %c0_i32_1 = arith.constant 0 : i32
    return %arg0, %c0_i32, %c0_i32_0 : i32, i32, i32
  }
  func.func @transform_1(%arg0: i32) -> (i32, i32, i32) {
    %c0_i32 = arith.constant 0 : i32
    %c0_i32_0 = arith.constant 0 : i32
    %c0_i32_1 = arith.constant 0 : i32
    return %arg0, %c0_i32, %c0_i32_0 : i32, i32, i32
  }
  func.func @transform_2(%arg0: i32) -> (i32, i32) {
    %c0_i32 = arith.constant 0 : i32
    %c0_i32_0 = arith.constant 0 : i32
    %c0_i32_1 = arith.constant 0 : i32
    return %c0_i32, %c0_i32_0 : i32, i32
  }
  func.func @transform_3(%arg0: i32) -> (i32, i32) {
    %c0_i32 = arith.constant 0 : i32
    %c0_i32_0 = arith.constant 0 : i32
    %c0_i32_1 = arith.constant 0 : i32
    return %c0_i32, %c0_i32_0 : i32, i32
  }
  func.func @transform_4(%arg0: i32) -> (i32, i32, i32) {
    %c0_i32 = arith.constant 0 : i32
    %c0_i32_0 = arith.constant 0 : i32
    %c0_i32_1 = arith.constant 0 : i32
    %c0_i32_2 = arith.constant 0 : i32
    return %c0_i32, %c0_i32_0, %c0_i32_1 : i32, i32, i32
  }
  func.func @transform_5(%arg0: i32) -> (i32, i32, i32) {
    %c0_i32 = arith.constant 0 : i32
    %c0_i32_0 = arith.constant 0 : i32
    %c0_i32_1 = arith.constant 0 : i32
    %c0_i32_2 = arith.constant 0 : i32
    return %c0_i32, %c0_i32_0, %c0_i32_1 : i32, i32, i32
  }
  func.func @transform_6(%arg0: i32) -> (i32, i32, i32) {
    %c0_i32 = arith.constant 0 : i32
    %c0_i32_0 = arith.constant 0 : i32
    %c0_i32_1 = arith.constant 0 : i32
    %c0_i32_2 = arith.constant 0 : i32
    return %c0_i32, %c0_i32_0, %c0_i32_1 : i32, i32, i32
  }
  func.func @transform_7(%arg0: i32) -> (i32, i32, i32) {
    %c0_i32 = arith.constant 0 : i32
    %c0_i32_0 = arith.constant 0 : i32
    %c0_i32_1 = arith.constant 0 : i32
    %c0_i32_2 = arith.constant 0 : i32
    return %c0_i32, %c0_i32_0, %c0_i32_1 : i32, i32, i32
  }
  func.func @transform_8(%arg0: i32) -> (i32, i32, i32) {
    %c0_i32 = arith.constant 0 : i32
    %c0_i32_0 = arith.constant 0 : i32
    %c0_i32_1 = arith.constant 0 : i32
    %c0_i32_2 = arith.constant 0 : i32
    return %c0_i32, %c0_i32_0, %c0_i32_1 : i32, i32, i32
  }
  func.func @transform_9(%arg0: i32) -> (i32, i32, i32) {
    %c0_i32 = arith.constant 0 : i32
    %c0_i32_0 = arith.constant 0 : i32
    %c0_i32_1 = arith.constant 0 : i32
    %c0_i32_2 = arith.constant 0 : i32
    return %c0_i32, %c0_i32_0, %c0_i32_1 : i32, i32, i32
  }
  func.func @transform_10(%arg0: i32) -> (i32, i32, i32) {
    %c0_i32 = arith.constant 0 : i32
    %c0_i32_0 = arith.constant 0 : i32
    %c0_i32_1 = arith.constant 0 : i32
    %c0_i32_2 = arith.constant 0 : i32
    return %c0_i32, %c0_i32_0, %c0_i32_1 : i32, i32, i32
  }
  func.func @transform_11(%arg0: i32) -> (i32, i32, i32) {
    %c0_i32 = arith.constant 0 : i32
    %c0_i32_0 = arith.constant 0 : i32
    %c0_i32_1 = arith.constant 0 : i32
    %c0_i32_2 = arith.constant 0 : i32
    return %c0_i32, %c0_i32_0, %c0_i32_1 : i32, i32, i32
  }
  func.func @transform_12(%arg0: i32) -> (i32, i32, i32) {
    %c0_i32 = arith.constant 0 : i32
    %c0_i32_0 = arith.constant 0 : i32
    %c0_i32_1 = arith.constant 0 : i32
    %c0_i32_2 = arith.constant 0 : i32
    return %c0_i32, %c0_i32_0, %c0_i32_1 : i32, i32, i32
  }
  func.func @transform_13(%arg0: i32) -> (i32, i32, i32) {
    %c0_i32 = arith.constant 0 : i32
    %c0_i32_0 = arith.constant 0 : i32
    %c0_i32_1 = arith.constant 0 : i32
    %c0_i32_2 = arith.constant 0 : i32
    return %c0_i32, %c0_i32_0, %c0_i32_1 : i32, i32, i32
  }
  func.func @transform_14(%arg0: i32) -> (i32, i32, i32) {
    %c0_i32 = arith.constant 0 : i32
    %c0_i32_0 = arith.constant 0 : i32
    %c0_i32_1 = arith.constant 0 : i32
    %c0_i32_2 = arith.constant 0 : i32
    return %c0_i32, %c0_i32_0, %c0_i32_1 : i32, i32, i32
  }
  func.func @transform_15(%arg0: i32) -> (i32, i32, i32) {
    %c0_i32 = arith.constant 0 : i32
    %c0_i32_0 = arith.constant 0 : i32
    %c0_i32_1 = arith.constant 0 : i32
    %c0_i32_2 = arith.constant 0 : i32
    return %c0_i32, %c0_i32_0, %c0_i32_1 : i32, i32, i32
  }
  func.func @transform_16(%arg0: i32) -> (i32, i32) {
    %c0_i32 = arith.constant 0 : i32
    %c0_i32_0 = arith.constant 0 : i32
    %c0_i32_1 = arith.constant 0 : i32
    return %c0_i32, %c0_i32_0 : i32, i32
  }
  func.func @transform_17(%arg0: i32) -> (i32, i32) {
    %c0_i32 = arith.constant 0 : i32
    %c0_i32_0 = arith.constant 0 : i32
    %c0_i32_1 = arith.constant 0 : i32
    return %c0_i32, %c0_i32_0 : i32, i32
  }
  func.func @transform_18(%arg0: i32) -> (i32, i32) {
    %c0_i32 = arith.constant 0 : i32
    %c0_i32_0 = arith.constant 0 : i32
    %c0_i32_1 = arith.constant 0 : i32
    return %c0_i32, %c0_i32_0 : i32, i32
  }
  func.func @transform_19(%arg0: i32) -> (i32, i32) {
    %c0_i32 = arith.constant 0 : i32
    %c0_i32_0 = arith.constant 0 : i32
    %c0_i32_1 = arith.constant 0 : i32
    return %c0_i32, %c0_i32_0 : i32, i32
  }
  func.func @transform_20(%arg0: i32) -> (i32, i32, i32) {
    %c0_i32 = arith.constant 0 : i32
    %c0_i32_0 = arith.constant 0 : i32
    %c0_i32_1 = arith.constant 0 : i32
    return %arg0, %c0_i32, %c0_i32_0 : i32, i32, i32
  }
}

</mosaic_0001>

<llo_original>
// kernel: model_forward.1
$region0: #{model_forward.1}
  #allocation0 [shape = 'u32[]', space=smem, size = 0x4, offset = 0x4, fixed_abs, tag = 'smem constant byte address 0x4 - core index']
  #allocation1 [shape = 'u32[144,128]{1,0:T(1,128)}', space=vmem, size = 0x12000, scoped, tag = 'internal scratch']
  #allocation2 [shape = 'f32[7,32]{1,0:T(8,128)}', space=vmem, size = 0x1000, scoped, tag = 'scratch operand']
  %s0 = inlined_call_operand.vmem [shape: f32[2,4,16], index: 0, kind: input, shape index: {}]
  %s1 = inlined_call_operand.vmem [shape: f32[2,3,16], index: 1, kind: input, shape index: {}]
  %s2 = inlined_call_operand.hbm [shape: bf16[16,32], index: 2, kind: input, shape index: {}]
  %s3 = inlined_call_operand.vmem [shape: f32[1,32], index: 3, kind: input, shape index: {}]
  %s4 = inlined_call_operand.vmem [shape: bf16[2,32,96], index: 4, kind: input, shape index: {}]
  %s5 = inlined_call_operand.vmem [shape: f32[2,1,96], index: 5, kind: input, shape index: {}]
  %s6 = inlined_call_operand.vmem [shape: bf16[2,32,32], index: 6, kind: input, shape index: {}]
  %s7 = inlined_call_operand.vmem [shape: f32[2,1,32], index: 7, kind: input, shape index: {}]
  %s8 = inlined_call_operand.vmem [shape: f32[2,1,32], index: 8, kind: input, shape index: {}]
  %s9 = inlined_call_operand.vmem [shape: f32[2,1,32], index: 9, kind: input, shape index: {}]
  %s10 = inlined_call_operand.vmem [shape: bf16[2,32,64], index: 10, kind: input, shape index: {}]
  %s11 = inlined_call_operand.vmem [shape: f32[2,1,64], index: 11, kind: input, shape index: {}]
  %s12 = inlined_call_operand.vmem [shape: bf16[2,64,32], index: 12, kind: input, shape index: {}]
  %s13 = inlined_call_operand.vmem [shape: f32[2,1,32], index: 13, kind: input, shape index: {}]
  %s14 = inlined_call_operand.vmem [shape: f32[2,1,32], index: 14, kind: input, shape index: {}]
  %s15 = inlined_call_operand.hbm [shape: f32[2,1,32], index: 15, kind: input, shape index: {}]
  %s16 = inlined_call_operand.vmem [shape: f32[1,32], index: 16, kind: input, shape index: {}]
  %s17 = inlined_call_operand.vmem [shape: f32[1,32], index: 17, kind: input, shape index: {}]
  %s18 = inlined_call_operand.vmem [shape: bf16[32,8], index: 18, kind: input, shape index: {}]
  %s19 = inlined_call_operand.vmem [shape: f32[1,8], index: 19, kind: input, shape index: {}]
  %s20 = inlined_call_operand.hbm [shape: f32[2,4,8], index: 20, kind: output, shape index: {}]
  %s21 = sld [smem:[#allocation0]]
  $region121: #{model_forward.1} parent=0
    _
  %s23 = ssub.s32 1, %s21
  %s24 = scalar_select 0, %s23, %s21
  $region1: #{model_forward.1} parent=0
    #allocation3 [shape = 'u8[4096]{0}', space=vmem, size = 0x1000, scoped, tag = 'input window, operand 2, single buffered']
    #allocation4 [shape = 's32[2]{0}', space=sflag, size = 0x8, scoped, tag = 'scoped memory for model_forward.1']
    #allocation5 [shape = 's32[2]{0}', space=sflag, size = 0x8, scoped, tag = 'scoped memory for model_forward.1']
    #allocation6 [shape = 'u8[1024]{0}', space=vmem, size = 0x400, scoped, tag = 'input window, operand 15, single buffered']
    #allocation7 [shape = 's32[1]{0}', space=sflag, size = 0x4, scoped, tag = 'scoped memory for model_forward.1']
    #allocation8 [shape = 'u8[4096]{0}', space=vmem, size = 0x1000, scoped, tag = 'output window, operand 0']
    %25 = vsyncpa [#allocation4], 0
    %26 = vsyncpa [#allocation7], 0
    %27 = vsyncpa [#allocation5], 0
    %s28 = scalar_lea.sflag [#allocation5], 1
    %29 = vsyncpa %s28, 0
    loop: start=0, step=1, limit=4
    $region2: #{model_forward.1} parent=1 // loop_pre_header
      _
    $region3: #{model_forward.1} parent=1 // loop_header
      %s31 = sphi 0, %s35
      %p32 = scmp.ge.s32.totalorder %s31, 4
      %s41 = sphi 0, %s43
      %s44 = sphi 0, %s41
      %s45 = sphi 0, %s44
      %s61 = sphi 0, %s45
      %s67 = sphi 0, %s69
      %s70 = sphi 0, %s67
      %s71 = sphi 0, %s70
      %s87 = sphi 0, %s71
      %s91 = sphi 0, %s91
      %s93 = sphi 0, %s91
      %s94 = sphi 0, %s93
      %s108 = sphi 0, %s94
      %s112 = sphi 0, %s112
      %s114 = sphi 0, %s112
      %s115 = sphi 0, %s114
      %s129 = sphi 0, %s115
      %s133 = sphi 0, %s133
      %s135 = sphi 0, %s133
      %s136 = sphi 0, %s135
      %s150 = sphi 0, %s136
      %s154 = sphi 0, %s154
      %s156 = sphi 0, %s154
      %s157 = sphi 0, %s156
      %s171 = sphi 0, %s157
      %s175 = sphi 0, %s175
      %s177 = sphi 0, %s175
      %s178 = sphi 0, %s177
      %s192 = sphi 0, %s178
      %s196 = sphi 0, %s196
      %s198 = sphi 0, %s196
      %s199 = sphi 0, %s198
      %s213 = sphi 0, %s199
      %s217 = sphi 0, %s217
      %s219 = sphi 0, %s217
      %s220 = sphi 0, %s219
      %s234 = sphi 0, %s220
      %s238 = sphi 0, %s238
      %s240 = sphi 0, %s238
      %s241 = sphi 0, %s240
      %s255 = sphi 0, %s241
      %s259 = sphi 0, %s259
      %s261 = sphi 0, %s259
      %s262 = sphi 0, %s261
      %s276 = sphi 0, %s262
      %s280 = sphi 0, %s280
      %s282 = sphi 0, %s280
      %s283 = sphi 0, %s282
      %s297 = sphi 0, %s283
      %s301 = sphi 0, %s301
      %s303 = sphi 0, %s301
      %s304 = sphi 0, %s303
      %s318 = sphi 0, %s304
      %s322 = sphi 0, %s322
      %s324 = sphi 0, %s322
      %s325 = sphi 0, %s324
      %s339 = sphi 0, %s325
      %s343 = sphi 0, %s343
      %s345 = sphi 0, %s343
      %s346 = sphi 0, %s345
      %s360 = sphi 0, %s346
      %s364 = sphi 0, %s364
      %s366 = sphi 0, %s364
      %s367 = sphi 0, %s366
      %s381 = sphi 0, %s367
      %s385 = sphi 0, %s385
      %s387 = sphi 0, %s385
      %s388 = sphi 0, %s387
      %s402 = sphi 0, %s388
      %s406 = sphi 0, %s406
      %s408 = sphi 0, %s406
      %s409 = sphi 0, %s408
      %s423 = sphi 0, %s409
      %s427 = sphi 0, %s427
      %s429 = sphi 0, %s427
      %s430 = sphi 0, %s429
      %s444 = sphi 0, %s430
      %s448 = sphi 0, %s448
      %s450 = sphi 0, %s448
      %s451 = sphi 0, %s450
      %s465 = sphi 0, %s451
      %s471 = sphi 0, %s473
      %s474 = sphi 0, %s471
      %s475 = sphi 0, %s474
      %s491 = sphi 0, %s475
    $region4: #{model_forward.1} parent=1 // loop_header_branch
      %34 = sbr.rel (%p32) target = $region8
    $region5: #{model_forward.1} parent=1 // loop_body
      %s36 = ssub.s32 %s31, 1
      %s37 = ssub.s32 %s31, 2
      %s38 = sadd.s32 %s31, 1
      %s39 = ssub.s32 %s31, %s38
      %p40 = scmp.eq.s32.totalorder %s39, 0
      %s42 = sadd.s32 %s41, 1
      %s43 = scalar_select %p40, %s41, %s42
      %p46 = pneg %p40
      %p47 = scmp.eq.s32.totalorder %s31, 1
      %p48 = por %p46, %p47
      %p49 = scmp.ne.s32.totalorder %s41, %s44
      %p50 = scmp.eq.s32.totalorder %s31, 0
      %p51 = por %p49, %p50
      %p52 = scmp.ne.s32.totalorder %s41, %s44
      %p53 = scmp.eq.s32.totalorder %s36, 1
      %p54 = por %p52, %p53
      %p55 = scmp.ne.s32.totalorder %s44, %s45
      %p56 = scmp.eq.s32.totalorder %s36, 0
      %p57 = por %p55, %p56
      %p58 = scmp.ne.s32.totalorder %s44, %s45
      %p59 = scmp.eq.s32.totalorder %s37, 1
      %p60 = por %p58, %p59
      %p62 = scmp.ne.s32.totalorder %s45, %s61
      %p63 = scmp.eq.s32.totalorder %s37, 0
      %p64 = por %p62, %p63
      %s65 = ssub.s32 %s31, %s38
      %p66 = scmp.eq.s32.totalorder %s65, 0
      %s68 = sadd.s32 %s67, 1
      %s69 = scalar_select %p66, %s67, %s68
      %p72 = pneg %p66
      %p73 = scmp.eq.s32.totalorder %s31, 1
      %p74 = por %p72, %p73
      %p75 = scmp.ne.s32.totalorder %s67, %s70
      %p76 = scmp.eq.s32.totalorder %s31, 0
      %p77 = por %p75, %p76
      %p78 = scmp.ne.s32.totalorder %s67, %s70
      %p79 = scmp.eq.s32.totalorder %s36, 1
      %p80 = por %p78, %p79
      %p81 = scmp.ne.s32.totalorder %s70, %s71
      %p82 = scmp.eq.s32.totalorder %s36, 0
      %p83 = por %p81, %p82
      %p84 = scmp.ne.s32.totalorder %s70, %s71
      %p85 = scmp.eq.s32.totalorder %s37, 1
      %p86 = por %p84, %p85
      %p88 = scmp.ne.s32.totalorder %s71, %s87
      %p89 = scmp.eq.s32.totalorder %s37, 0
      %p90 = por %p88, %p89
      %s92 = sadd.s32 %s91, 1
      %p95 = scmp.eq.s32.totalorder %s31, 1
      %p96 = scmp.ne.s32.totalorder %s91, %s93
      %p97 = scmp.eq.s32.totalorder %s31, 0
      %p98 = por %p96, %p97
      %p99 = scmp.ne.s32.totalorder %s91, %s93
      %p100 = scmp.eq.s32.totalorder %s36, 1
      %p101 = por %p99, %p100
      %p102 = scmp.ne.s32.totalorder %s93, %s94
      %p103 = scmp.eq.s32.totalorder %s36, 0
      %p104 = por %p102, %p103
      %p105 = scmp.ne.s32.totalorder %s93, %s94
      %p106 = scmp.eq.s32.totalorder %s37, 1
      %p107 = por %p105, %p106
      %p109 = scmp.ne.s32.totalorder %s94, %s108
      %p110 = scmp.eq.s32.totalorder %s37, 0
      %p111 = por %p109, %p110
      %s113 = sadd.s32 %s112, 1
      %p116 = scmp.eq.s32.totalorder %s31, 1
      %p117 = scmp.ne.s32.totalorder %s112, %s114
      %p118 = scmp.eq.s32.totalorder %s31, 0
      %p119 = por %p117, %p118
      %p120 = scmp.ne.s32.totalorder %s112, %s114
      %p121 = scmp.eq.s32.totalorder %s36, 1
      %p122 = por %p120, %p121
      %p123 = scmp.ne.s32.totalorder %s114, %s115
      %p124 = scmp.eq.s32.totalorder %s36, 0
      %p125 = por %p123, %p124
      %p126 = scmp.ne.s32.totalorder %s114, %s115
      %p127 = scmp.eq.s32.totalorder %s37, 1
      %p128 = por %p126, %p127
      %p130 = scmp.ne.s32.totalorder %s115, %s129
      %p131 = scmp.eq.s32.totalorder %s37, 0
      %p132 = por %p130, %p131
      %s134 = sadd.s32 %s133, 1
      %p137 = scmp.eq.s32.totalorder %s31, 1
      %p138 = scmp.ne.s32.totalorder %s133, %s135
      %p139 = scmp.eq.s32.totalorder %s31, 0
      %p140 = por %p138, %p139
      %p141 = scmp.ne.s32.totalorder %s133, %s135
      %p142 = scmp.eq.s32.totalorder %s36, 1
      %p143 = por %p141, %p142
      %p144 = scmp.ne.s32.totalorder %s135, %s136
      %p145 = scmp.eq.s32.totalorder %s36, 0
      %p146 = por %p144, %p145
      %p147 = scmp.ne.s32.totalorder %s135, %s136
      %p148 = scmp.eq.s32.totalorder %s37, 1
      %p149 = por %p147, %p148
      %p151 = scmp.ne.s32.totalorder %s136, %s150
      %p152 = scmp.eq.s32.totalorder %s37, 0
      %p153 = por %p151, %p152
      %s155 = sadd.s32 %s154, 1
      %p158 = scmp.eq.s32.totalorder %s31, 1
      %p159 = scmp.ne.s32.totalorder %s154, %s156
      %p160 = scmp.eq.s32.totalorder %s31, 0
      %p161 = por %p159, %p160
      %p162 = scmp.ne.s32.totalorder %s154, %s156
      %p163 = scmp.eq.s32.totalorder %s36, 1
      %p164 = por %p162, %p163
      %p165 = scmp.ne.s32.totalorder %s156, %s157
      %p166 = scmp.eq.s32.totalorder %s36, 0
      %p167 = por %p165, %p166
      %p168 = scmp.ne.s32.totalorder %s156, %s157
      %p169 = scmp.eq.s32.totalorder %s37, 1
      %p170 = por %p168, %p169
      %p172 = scmp.ne.s32.totalorder %s157, %s171
      %p173 = scmp.eq.s32.totalorder %s37, 0
      %p174 = por %p172, %p173
      %s176 = sadd.s32 %s175, 1
      %p179 = scmp.eq.s32.totalorder %s31, 1
      %p180 = scmp.ne.s32.totalorder %s175, %s177
      %p181 = scmp.eq.s32.totalorder %s31, 0
      %p182 = por %p180, %p181
      %p183 = scmp.ne.s32.totalorder %s175, %s177
      %p184 = scmp.eq.s32.totalorder %s36, 1
      %p185 = por %p183, %p184
      %p186 = scmp.ne.s32.totalorder %s177, %s178
      %p187 = scmp.eq.s32.totalorder %s36, 0
      %p188 = por %p186, %p187
      %p189 = scmp.ne.s32.totalorder %s177, %s178
      %p190 = scmp.eq.s32.totalorder %s37, 1
      %p191 = por %p189, %p190
      %p193 = scmp.ne.s32.totalorder %s178, %s192
      %p194 = scmp.eq.s32.totalorder %s37, 0
      %p195 = por %p193, %p194
      %s197 = sadd.s32 %s196, 1
      %p200 = scmp.eq.s32.totalorder %s31, 1
      %p201 = scmp.ne.s32.totalorder %s196, %s198
      %p202 = scmp.eq.s32.totalorder %s31, 0
      %p203 = por %p201, %p202
      %p204 = scmp.ne.s32.totalorder %s196, %s198
      %p205 = scmp.eq.s32.totalorder %s36, 1
      %p206 = por %p204, %p205
      %p207 = scmp.ne.s32.totalorder %s198, %s199
      %p208 = scmp.eq.s32.totalorder %s36, 0
      %p209 = por %p207, %p208
      %p210 = scmp.ne.s32.totalorder %s198, %s199
      %p211 = scmp.eq.s32.totalorder %s37, 1
      %p212 = por %p210, %p211
      %p214 = scmp.ne.s32.totalorder %s199, %s213
      %p215 = scmp.eq.s32.totalorder %s37, 0
      %p216 = por %p214, %p215
      %s218 = sadd.s32 %s217, 1
      %p221 = scmp.eq.s32.totalorder %s31, 1
      %p222 = scmp.ne.s32.totalorder %s217, %s219
      %p223 = scmp.eq.s32.totalorder %s31, 0
      %p224 = por %p222, %p223
      %p225 = scmp.ne.s32.totalorder %s217, %s219
      %p226 = scmp.eq.s32.totalorder %s36, 1
      %p227 = por %p225, %p226
      %p228 = scmp.ne.s32.totalorder %s219, %s220
      %p229 = scmp.eq.s32.totalorder %s36, 0
      %p230 = por %p228, %p229
      %p231 = scmp.ne.s32.totalorder %s219, %s220
      %p232 = scmp.eq.s32.totalorder %s37, 1
      %p233 = por %p231, %p232
      %p235 = scmp.ne.s32.totalorder %s220, %s234
      %p236 = scmp.eq.s32.totalorder %s37, 0
      %p237 = por %p235, %p236
      %s239 = sadd.s32 %s238, 1
      %p242 = scmp.eq.s32.totalorder %s31, 1
      %p243 = scmp.ne.s32.totalorder %s238, %s240
      %p244 = scmp.eq.s32.totalorder %s31, 0
      %p245 = por %p243, %p244
      %p246 = scmp.ne.s32.totalorder %s238, %s240
      %p247 = scmp.eq.s32.totalorder %s36, 1
      %p248 = por %p246, %p247
      %p249 = scmp.ne.s32.totalorder %s240, %s241
      %p250 = scmp.eq.s32.totalorder %s36, 0
      %p251 = por %p249, %p250
      %p252 = scmp.ne.s32.totalorder %s240, %s241
      %p253 = scmp.eq.s32.totalorder %s37, 1
      %p254 = por %p252, %p253
      %p256 = scmp.ne.s32.totalorder %s241, %s255
      %p257 = scmp.eq.s32.totalorder %s37, 0
      %p258 = por %p256, %p257
      %s260 = sadd.s32 %s259, 1
      %p263 = scmp.eq.s32.totalorder %s31, 1
      %p264 = scmp.ne.s32.totalorder %s259, %s261
      %p265 = scmp.eq.s32.totalorder %s31, 0
      %p266 = por %p264, %p265
      %p267 = scmp.ne.s32.totalorder %s259, %s261
      %p268 = scmp.eq.s32.totalorder %s36, 1
      %p269 = por %p267, %p268
      %p270 = scmp.ne.s32.totalorder %s261, %s262
      %p271 = scmp.eq.s32.totalorder %s36, 0
      %p272 = por %p270, %p271
      %p273 = scmp.ne.s32.totalorder %s261, %s262
      %p274 = scmp.eq.s32.totalorder %s37, 1
      %p275 = por %p273, %p274
      %p277 = scmp.ne.s32.totalorder %s262, %s276
      %p278 = scmp.eq.s32.totalorder %s37, 0
      %p279 = por %p277, %p278
      %s281 = sadd.s32 %s280, 1
      %p284 = scmp.eq.s32.totalorder %s31, 1
      %p285 = scmp.ne.s32.totalorder %s280, %s282
      %p286 = scmp.eq.s32.totalorder %s31, 0
      %p287 = por %p285, %p286
      %p288 = scmp.ne.s32.totalorder %s280, %s282
      %p289 = scmp.eq.s32.totalorder %s36, 1
      %p290 = por %p288, %p289
      %p291 = scmp.ne.s32.totalorder %s282, %s283
      %p292 = scmp.eq.s32.totalorder %s36, 0
      %p293 = por %p291, %p292
      %p294 = scmp.ne.s32.totalorder %s282, %s283
      %p295 = scmp.eq.s32.totalorder %s37, 1
      %p296 = por %p294, %p295
      %p298 = scmp.ne.s32.totalorder %s283, %s297
      %p299 = scmp.eq.s32.totalorder %s37, 0
      %p300 = por %p298, %p299
      %s302 = sadd.s32 %s301, 1
      %p305 = scmp.eq.s32.totalorder %s31, 1
      %p306 = scmp.ne.s32.totalorder %s301, %s303
      %p307 = scmp.eq.s32.totalorder %s31, 0
      %p308 = por %p306, %p307
      %p309 = scmp.ne.s32.totalorder %s301, %s303
      %p310 = scmp.eq.s32.totalorder %s36, 1
      %p311 = por %p309, %p310
      %p312 = scmp.ne.s32.totalorder %s303, %s304
      %p313 = scmp.eq.s32.totalorder %s36, 0
      %p314 = por %p312, %p313
      %p315 = scmp.ne.s32.totalorder %s303, %s304
      %p316 = scmp.eq.s32.totalorder %s37, 1
      %p317 = por %p315, %p316
      %p319 = scmp.ne.s32.totalorder %s304, %s318
      %p320 = scmp.eq.s32.totalorder %s37, 0
      %p321 = por %p319, %p320
      %s323 = sadd.s32 %s322, 1
      %p326 = scmp.eq.s32.totalorder %s31, 1
      %p327 = scmp.ne.s32.totalorder %s322, %s324
      %p328 = scmp.eq.s32.totalorder %s31, 0
      %p329 = por %p327, %p328
      %p330 = scmp.ne.s32.totalorder %s322, %s324
      %p331 = scmp.eq.s32.totalorder %s36, 1
      %p332 = por %p330, %p331
      %p333 = scmp.ne.s32.totalorder %s324, %s325
      %p334 = scmp.eq.s32.totalorder %s36, 0
      %p335 = por %p333, %p334
      %p336 = scmp.ne.s32.totalorder %s324, %s325
      %p337 = scmp.eq.s32.totalorder %s37, 1
      %p338 = por %p336, %p337
      %p340 = scmp.ne.s32.totalorder %s325, %s339
      %p341 = scmp.eq.s32.totalorder %s37, 0
      %p342 = por %p340, %p341
      %s344 = sadd.s32 %s343, 1
      %p347 = scmp.eq.s32.totalorder %s31, 1
      %p348 = scmp.ne.s32.totalorder %s343, %s345
      %p349 = scmp.eq.s32.totalorder %s31, 0
      %p350 = por %p348, %p349
      %p351 = scmp.ne.s32.totalorder %s343, %s345
      %p352 = scmp.eq.s32.totalorder %s36, 1
      %p353 = por %p351, %p352
      %p354 = scmp.ne.s32.totalorder %s345, %s346
      %p355 = scmp.eq.s32.totalorder %s36, 0
      %p356 = por %p354, %p355
      %p357 = scmp.ne.s32.totalorder %s345, %s346
      %p358 = scmp.eq.s32.totalorder %s37, 1
      %p359 = por %p357, %p358
      %p361 = scmp.ne.s32.totalorder %s346, %s360
      %p362 = scmp.eq.s32.totalorder %s37, 0
      %p363 = por %p361, %p362
      %s365 = sadd.s32 %s364, 1
      %p368 = scmp.eq.s32.totalorder %s31, 1
      %p369 = scmp.ne.s32.totalorder %s364, %s366
      %p370 = scmp.eq.s32.totalorder %s31, 0
      %p371 = por %p369, %p370
      %p372 = scmp.ne.s32.totalorder %s364, %s366
      %p373 = scmp.eq.s32.totalorder %s36, 1
      %p374 = por %p372, %p373
      %p375 = scmp.ne.s32.totalorder %s366, %s367
      %p376 = scmp.eq.s32.totalorder %s36, 0
      %p377 = por %p375, %p376
      %p378 = scmp.ne.s32.totalorder %s366, %s367
      %p379 = scmp.eq.s32.totalorder %s37, 1
      %p380 = por %p378, %p379
      %p382 = scmp.ne.s32.totalorder %s367, %s381
      %p383 = scmp.eq.s32.totalorder %s37, 0
      %p384 = por %p382, %p383
      %s386 = sadd.s32 %s385, 1
      %p389 = scmp.eq.s32.totalorder %s31, 1
      %p390 = scmp.ne.s32.totalorder %s385, %s387
      %p391 = scmp.eq.s32.totalorder %s31, 0
      %p392 = por %p390, %p391
      %p393 = scmp.ne.s32.totalorder %s385, %s387
      %p394 = scmp.eq.s32.totalorder %s36, 1
      %p395 = por %p393, %p394
      %p396 = scmp.ne.s32.totalorder %s387, %s388
      %p397 = scmp.eq.s32.totalorder %s36, 0
      %p398 = por %p396, %p397
      %p399 = scmp.ne.s32.totalorder %s387, %s388
      %p400 = scmp.eq.s32.totalorder %s37, 1
      %p401 = por %p399, %p400
      %p403 = scmp.ne.s32.totalorder %s388, %s402
      %p404 = scmp.eq.s32.totalorder %s37, 0
      %p405 = por %p403, %p404
      %s407 = sadd.s32 %s406, 1
      %p410 = scmp.eq.s32.totalorder %s31, 1
      %p411 = scmp.ne.s32.totalorder %s406, %s408
      %p412 = scmp.eq.s32.totalorder %s31, 0
      %p413 = por %p411, %p412
      %p414 = scmp.ne.s32.totalorder %s406, %s408
      %p415 = scmp.eq.s32.totalorder %s36, 1
      %p416 = por %p414, %p415
      %p417 = scmp.ne.s32.totalorder %s408, %s409
      %p418 = scmp.eq.s32.totalorder %s36, 0
      %p419 = por %p417, %p418
      %p420 = scmp.ne.s32.totalorder %s408, %s409
      %p421 = scmp.eq.s32.totalorder %s37, 1
      %p422 = por %p420, %p421
      %p424 = scmp.ne.s32.totalorder %s409, %s423
      %p425 = scmp.eq.s32.totalorder %s37, 0
      %p426 = por %p424, %p425
      %s428 = sadd.s32 %s427, 1
      %p431 = scmp.eq.s32.totalorder %s31, 1
      %p432 = scmp.ne.s32.totalorder %s427, %s429
      %p433 = scmp.eq.s32.totalorder %s31, 0
      %p434 = por %p432, %p433
      %p435 = scmp.ne.s32.totalorder %s427, %s429
      %p436 = scmp.eq.s32.totalorder %s36, 1
      %p437 = por %p435, %p436
      %p438 = scmp.ne.s32.totalorder %s429, %s430
      %p439 = scmp.eq.s32.totalorder %s36, 0
      %p440 = por %p438, %p439
      %p441 = scmp.ne.s32.totalorder %s429, %s430
      %p442 = scmp.eq.s32.totalorder %s37, 1
      %p443 = por %p441, %p442
      %p445 = scmp.ne.s32.totalorder %s430, %s444
      %p446 = scmp.eq.s32.totalorder %s37, 0
      %p447 = por %p445, %p446
      %s449 = sadd.s32 %s448, 1
      %p452 = scmp.eq.s32.totalorder %s31, 1
      %p453 = scmp.ne.s32.totalorder %s448, %s450
      %p454 = scmp.eq.s32.totalorder %s31, 0
      %p455 = por %p453, %p454
      %p456 = scmp.ne.s32.totalorder %s448, %s450
      %p457 = scmp.eq.s32.totalorder %s36, 1
      %p458 = por %p456, %p457
      %p459 = scmp.ne.s32.totalorder %s450, %s451
      %p460 = scmp.eq.s32.totalorder %s36, 0
      %p461 = por %p459, %p460
      %p462 = scmp.ne.s32.totalorder %s450, %s451
      %p463 = scmp.eq.s32.totalorder %s37, 1
      %p464 = por %p462, %p463
      %p466 = scmp.ne.s32.totalorder %s451, %s465
      %p467 = scmp.eq.s32.totalorder %s37, 0
      %p468 = por %p466, %p467
      %s469 = ssub.s32 %s31, %s38
      %p470 = scmp.eq.s32.totalorder %s469, 0
      %s472 = sadd.s32 %s471, 1
      %s473 = scalar_select %p470, %s471, %s472
      %p476 = pneg %p470
      %p477 = scmp.eq.s32.totalorder %s31, 1
      %p478 = por %p476, %p477
      %p479 = scmp.ne.s32.totalorder %s471, %s474
      %p480 = scmp.eq.s32.totalorder %s31, 0
      %p481 = por %p479, %p480
      %p482 = scmp.ne.s32.totalorder %s471, %s474
      %p483 = scmp.eq.s32.totalorder %s36, 1
      %p484 = por %p482, %p483
      %p485 = scmp.ne.s32.totalorder %s474, %s475
      %p486 = scmp.eq.s32.totalorder %s36, 0
      %p487 = por %p485, %p486
      %p488 = scmp.ne.s32.totalorder %s474, %s475
      %p489 = scmp.eq.s32.totalorder %s37, 1
      %p490 = por %p488, %p489
      %p492 = scmp.ne.s32.totalorder %s475, %s491
      %p493 = scmp.eq.s32.totalorder %s37, 0
      %p494 = por %p492, %p493
      %p495 = scmp.le.s32.totalorder 1, %s31
      %p496 = scmp.lt.s32.totalorder %s31, 3
      %p497 = pnand %p495, %p496
      %p498 = pneg %p497
      // Predicated region
      $region9: #{model_forward.1} parent=5 // pred_check
        _
      $region10: #{model_forward.1} parent=5 // pred_check_branch
        %500 = sbr.rel (%p497) target = $region12
      $region11: #{model_forward.1} parent=5 // pred_region
        %s501 = ssub.s32 %s31, 1
        // Predicated region
        $region13: #{model_forward.1} parent=11 // pred_check
          %p502 = pneg %p104
        $region14: #{model_forward.1} parent=11 // pred_check_branch
          %504 = sbr.rel (%p502) target = $region16
        $region15: #{model_forward.1} parent=11 // pred_region
          %s506 = ssub.s32 128, 128
          %507 = vsyncadd [#allocation4], %s506
          %s508 = sshll.u32 [#allocation3], 4
          %s509 = int_to_ptr.vmem [resolvable:$true] %s508
          %514 = dma.hbm_to_vmem [thread:$0]  %s2, 128, %s509, [#allocation4], 64, 64, 4
        $region16: #{model_forward.1} parent=11 // pred_fallthru
          _
        // Predicated region
        $region17: #{model_forward.1} parent=11 // pred_check
          %p515 = pneg %p125
        $region18: #{model_forward.1} parent=11 // pred_check_branch
          %517 = sbr.rel (%p515) target = $region20
        $region19: #{model_forward.1} parent=11 // pred_region
          _
        $region20: #{model_forward.1} parent=11 // pred_fallthru
          _
        // Predicated region
        $region21: #{model_forward.1} parent=11 // pred_check
          %p518 = pneg %p146
        $region22: #{model_forward.1} parent=11 // pred_check_branch
          %520 = sbr.rel (%p518) target = $region24
        $region23: #{model_forward.1} parent=11 // pred_region
          _
        $region24: #{model_forward.1} parent=11 // pred_fallthru
          _
        // Predicated region
        $region25: #{model_forward.1} parent=11 // pred_check
          %p521 = pneg %p167
        $region26: #{model_forward.1} parent=11 // pred_check_branch
          %523 = sbr.rel (%p521) target = $region28
        $region27: #{model_forward.1} parent=11 // pred_region
          _
        $region28: #{model_forward.1} parent=11 // pred_fallthru
          _
        // Predicated region
        $region29: #{model_forward.1} parent=11 // pred_check
          %p524 = pneg %p188
        $region30: #{model_forward.1} parent=11 // pred_check_branch
          %526 = sbr.rel (%p524) target = $region32
        $region31: #{model_forward.1} parent=11 // pred_region
          _
        $region32: #{model_forward.1} parent=11 // pred_fallthru
          _
        // Predicated region
        $region33: #{model_forward.1} parent=11 // pred_check
          %p527 = pneg %p209
        $region34: #{model_forward.1} parent=11 // pred_check_branch
          %529 = sbr.rel (%p527) target = $region36
        $region35: #{model_forward.1} parent=11 // pred_region
          _
        $region36: #{model_forward.1} parent=11 // pred_fallthru
          _
        // Predicated region
        $region37: #{model_forward.1} parent=11 // pred_check
          %p530 = pneg %p230
        $region38: #{model_forward.1} parent=11 // pred_check_branch
          %532 = sbr.rel (%p530) target = $region40
        $region39: #{model_forward.1} parent=11 // pred_region
          _
        $region40: #{model_forward.1} parent=11 // pred_fallthru
          _
        // Predicated region
        $region41: #{model_forward.1} parent=11 // pred_check
          %p533 = pneg %p251
        $region42: #{model_forward.1} parent=11 // pred_check_branch
          %535 = sbr.rel (%p533) target = $region44
        $region43: #{model_forward.1} parent=11 // pred_region
          _
        $region44: #{model_forward.1} parent=11 // pred_fallthru
          _
        // Predicated region
        $region45: #{model_forward.1} parent=11 // pred_check
          %p536 = pneg %p272
        $region46: #{model_forward.1} parent=11 // pred_check_branch
          %538 = sbr.rel (%p536) target = $region48
        $region47: #{model_forward.1} parent=11 // pred_region
          _
        $region48: #{model_forward.1} parent=11 // pred_fallthru
          _
        // Predicated region
        $region49: #{model_forward.1} parent=11 // pred_check
          %p539 = pneg %p293
        $region50: #{model_forward.1} parent=11 // pred_check_branch
          %541 = sbr.rel (%p539) target = $region52
        $region51: #{model_forward.1} parent=11 // pred_region
          _
        $region52: #{model_forward.1} parent=11 // pred_fallthru
          _
        // Predicated region
        $region53: #{model_forward.1} parent=11 // pred_check
          %p542 = pneg %p314
        $region54: #{model_forward.1} parent=11 // pred_check_branch
          %544 = sbr.rel (%p542) target = $region56
        $region55: #{model_forward.1} parent=11 // pred_region
          _
        $region56: #{model_forward.1} parent=11 // pred_fallthru
          _
        // Predicated region
        $region57: #{model_forward.1} parent=11 // pred_check
          %p545 = pneg %p335
        $region58: #{model_forward.1} parent=11 // pred_check_branch
          %547 = sbr.rel (%p545) target = $region60
        $region59: #{model_forward.1} parent=11 // pred_region
          _
        $region60: #{model_forward.1} parent=11 // pred_fallthru
          _
        // Predicated region
        $region61: #{model_forward.1} parent=11 // pred_check
          %p548 = pneg %p356
        $region62: #{model_forward.1} parent=11 // pred_check_branch
          %550 = sbr.rel (%p548) target = $region64
        $region63: #{model_forward.1} parent=11 // pred_region
          _
        $region64: #{model_forward.1} parent=11 // pred_fallthru
          _
        // Predicated region
        $region65: #{model_forward.1} parent=11 // pred_check
          %p551 = pneg %p377
        $region66: #{model_forward.1} parent=11 // pred_check_branch
          %553 = sbr.rel (%p551) target = $region68
        $region67: #{model_forward.1} parent=11 // pred_region
          %s555 = ssub.s32 32, 32
          %556 = vsyncadd [#allocation7], %s555
          %s557 = sshll.u32 [#allocation6], 4
          %s558 = int_to_ptr.vmem [resolvable:$true] %s557
          %563 = dma.hbm_to_vmem [thread:$0]  %s15, 32, %s558, [#allocation7], 16, 16, 1
        $region68: #{model_forward.1} parent=11 // pred_fallthru
          _
        // Predicated region
        $region69: #{model_forward.1} parent=11 // pred_check
          %p564 = pneg %p398
        $region70: #{model_forward.1} parent=11 // pred_check_branch
          %566 = sbr.rel (%p564) target = $region72
        $region71: #{model_forward.1} parent=11 // pred_region
          _
        $region72: #{model_forward.1} parent=11 // pred_fallthru
          _
        // Predicated region
        $region73: #{model_forward.1} parent=11 // pred_check
          %p567 = pneg %p419
        $region74: #{model_forward.1} parent=11 // pred_check_branch
          %569 = sbr.rel (%p567) target = $region76
        $region75: #{model_forward.1} parent=11 // pred_region
          _
        $region76: #{model_forward.1} parent=11 // pred_fallthru
          _
        // Predicated region
        $region77: #{model_forward.1} parent=11 // pred_check
          %p570 = pneg %p440
        $region78: #{model_forward.1} parent=11 // pred_check_branch
          %572 = sbr.rel (%p570) target = $region80
        $region79: #{model_forward.1} parent=11 // pred_region
          _
        $region80: #{model_forward.1} parent=11 // pred_fallthru
          _
        // Predicated region
        $region81: #{model_forward.1} parent=11 // pred_check
          %p573 = pneg %p461
        $region82: #{model_forward.1} parent=11 // pred_check_branch
          %575 = sbr.rel (%p573) target = $region84
        $region83: #{model_forward.1} parent=11 // pred_region
          _
        $region84: #{model_forward.1} parent=11 // pred_fallthru
          _
      $region12: #{model_forward.1} parent=5 // pred_fallthru
        _
      %p576 = scmp.lt.s32.totalorder %s31, 2
      // Predicated region
      $region85: #{model_forward.1} parent=5 // pred_check
        %p577 = pneg %p576
      $region86: #{model_forward.1} parent=5 // pred_check_branch
        %579 = sbr.rel (%p577) target = $region88
      $region87: #{model_forward.1} parent=5 // pred_region
        // Predicated region
        $region89: #{model_forward.1} parent=87 // pred_check
          %p580 = pneg %p51
        $region90: #{model_forward.1} parent=87 // pred_check_branch
          %582 = sbr.rel (%p580) target = $region92
        $region91: #{model_forward.1} parent=87 // pred_region
          %p583 = scmp.lt.s32.totalorder %s31, 1
          %s584 = scalar_select %p583, %s31, 1
          %s585 = smul.addr %s584, 4
          %s586 = scalar_lea.vmem %s0, %s585
        $region92: #{model_forward.1} parent=87 // pred_fallthru
          _
        // Predicated region
        $region93: #{model_forward.1} parent=87 // pred_check
          %p587 = pneg %p77
        $region94: #{model_forward.1} parent=87 // pred_check_branch
          %589 = sbr.rel (%p587) target = $region96
        $region95: #{model_forward.1} parent=87 // pred_region
          %p590 = scmp.lt.s32.totalorder %s31, 1
          %s591 = scalar_select %p590, %s31, 1
          %s592 = smul.addr %s591, 4
          %s593 = scalar_lea.vmem %s1, %s592
        $region96: #{model_forward.1} parent=87 // pred_fallthru
          _
      $region88: #{model_forward.1} parent=5 // pred_fallthru
        _
      %p594 = scmp.le.s32.totalorder 1, %s31
      %p595 = scmp.lt.s32.totalorder %s31, 3
      %p596 = pnand %p594, %p595
      %p597 = pneg %p596
      // Predicated region
      $region97: #{model_forward.1} parent=5 // pred_check
        _
      $region98: #{model_forward.1} parent=5 // pred_check_branch
        %599 = sbr.rel (%p596) target = $region100
      $region99: #{model_forward.1} parent=5 // pred_region
        %s600 = ssub.s32 %s31, 1
        // Predicated region
        $region101: #{model_forward.1} parent=99 // pred_check
          %p601 = pneg %p104
        $region102: #{model_forward.1} parent=99 // pred_check_branch
          %603 = sbr.rel (%p601) target = $region104
        $region103: #{model_forward.1} parent=99 // pred_region
          %604 = dma.done [#allocation4], 128
        $region104: #{model_forward.1} parent=99 // pred_fallthru
          _
        // Predicated region
        $region105: #{model_forward.1} parent=99 // pred_check
          %p605 = pneg %p377
        $region106: #{model_forward.1} parent=99 // pred_check_branch
          %607 = sbr.rel (%p605) target = $region108
        $region107: #{model_forward.1} parent=99 // pred_region
          %608 = dma.done [#allocation7], 32
        $region108: #{model_forward.1} parent=99 // pred_fallthru
          _
        %p609 = scmp.lt.s32.totalorder %s36, 1
        %s610 = scalar_select %p609, %s36, 1
        %s611 = smul.addr %s610, 4
        %s612 = scalar_lea.vmem %s0, %s611
        %p613 = pneg %p57
        %p614 = pneg %p54
        %p615 = scmp.lt.s32.totalorder %s36, 1
        %s616 = scalar_select %p615, %s36, 1
        %s617 = smul.addr %s616, 4
        %s618 = scalar_lea.vmem %s1, %s617
        %p619 = pneg %p83
        %p620 = pneg %p80
        %p621 = pneg %p104
        %p622 = pneg %p101
        %p623 = pneg %p125
        %p624 = pneg %p122
        %p625 = pneg %p146
        %p626 = pneg %p143
        %p627 = pneg %p167
        %p628 = pneg %p164
        %p629 = pneg %p188
        %p630 = pneg %p185
        %p631 = pneg %p209
        %p632 = pneg %p206
        %p633 = pneg %p230
        %p634 = pneg %p227
        %p635 = pneg %p251
        %p636 = pneg %p248
        %p637 = pneg %p272
        %p638 = pneg %p269
        %p639 = pneg %p293
        %p640 = pneg %p290
        %p641 = pneg %p314
        %p642 = pneg %p311
        %p643 = pneg %p335
        %p644 = pneg %p332
        %p645 = pneg %p356
        %p646 = pneg %p353
        %p647 = pneg %p377
        %p648 = pneg %p374
        %p649 = pneg %p398
        %p650 = pneg %p395
        %p651 = pneg %p419
        %p652 = pneg %p416
        %p653 = pneg %p440
        %p654 = pneg %p437
        %p655 = pneg %p461
        %p656 = pneg %p458
        %p657 = pneg %p487
        %p658 = pneg %p484
        %s659 = sand.u32 %s474, 1
        %s660 = scalar_lea.sflag [#allocation5], %s659
        %s661 = sand.u32 %s474, 1
        %s662 = smul.addr %s661, 4
        %s663 = scalar_lea.vmem [#allocation8], %s662
        %p664 = scmp.lt.s32.totalorder %s36, 1
        %s665 = scalar_select %p664, %s36, 1
        %s666 = smul.addr %s665, 4
        %s667 = scalar_lea.vmem %s0, %s666
        %p668 = scmp.lt.s32.totalorder %s36, 1
        %s669 = scalar_select %p668, %s36, 1
        %s670 = smul.addr %s669, 4
        %s671 = scalar_lea.vmem %s1, %s670
        %v673 = vld [vmem:[%s667] sm:$0xf]
        %v674 = vld [vmem:[%s671] sm:$0x7]
        %vm675 = vcmask 125952
        %v676 = vsel %vm675, %v673, 0.0
        %677 = vadd.xlane.f32.xlu0 %v676
        %v678 = vpop.xlane.xlu0 %677
        %v679 = vrcp.pop 16.0
        %v680 = vmul.f32 %v678, %v679
        %v681 = vsub.f32 %v673, %v680
        %v682 = vmul.f32 %v681, %v681
        %v683 = vsel %vm675, %v682, 0.0
        %684 = vadd.xlane.f32.xlu0 %v683
        %v685 = vpop.xlane.xlu0 %684
        %v686 = vmul.f32 %v685, %v679
        %v687 = vadd.f32 %v686, 1e-05
        %v688 = vrsqrt.pop %v687
        %v689 = vmul.f32 %v687, %v688
        %vm690 = vcmp.eq.f32.partialorder %v687, inf
        %v691 = vsel %vm690, %v687, %v689
        %vm692 = vcmp.eq.f32.partialorder %v687, 0.0
        %v693 = vand.u32 %v687, 2147483648
        %v694 = vsel %vm692, %v693, %v691
        %v695 = vrcp.pop %v694
        %v696 = vmul.f32 %v681, %v695
        %v697 = vld [vmem:[#allocation3] sm:$0xf]
        %v698 = vld [vmem:[#allocation3 + $0x4] sm:$0xf]
        %v700 = vrot.slane %v674, 4
        %vm702 = vcmask 1043456
        %v703 = vsel %vm702, %v696, %v700
        %v704 = vpack.c.bf16 %v703, %v703
        %v705 = vld [vmem:[%s3] sm:$0x1]
        %v707 = vlaneseq
        %v708 = vshrl.u32 %v707, 7
        %v709 = vsub.s32 0, %v708
        %v710 = vrot.slane %v705, %v709
        %v714 = vunpack.c.l.b16 %v697
        %v715 = vunpack.c.l.b16 %v698
        %v716 = vpack.c.b16 %v715, %v714
        %vm718 = vcmask 130048
        %v720 = vsel %vm718, %v704, 0
        %722 = vmatprep.subr.bf16.mxu0 0
        %723 = vmatpush1.bf16.msra.mxu0 %v716
        %724 = vmatprep.subr.bf16.mxu0 0
        %725 = vmatpush1.bf16.msra.mxu0 0
        %726 = vmatprep.subr.bf16.mxu0 0
        %727 = vmatpush1.bf16.msra.mxu0 0
        %728 = vmatprep.subr.bf16.mxu0 0
        %729 = vmatpush1.bf16.msra.mxu0 0
        %730 = vmatprep.subr.bf16.mxu0 0
        %731 = vmatpush1.bf16.msra.mxu0 0
        %732 = vmatprep.subr.bf16.mxu0 0
        %733 = vmatpush1.bf16.msra.mxu0 0
        %734 = vmatprep.subr.bf16.mxu0 0
        %735 = vmatpush1.bf16.msra.mxu0 0
        %736 = vmatprep.subr.bf16.mxu0 0
        %737 = vmatpush1.bf16.msra.mxu0 0
        %738 = vmatprep.subr.bf16.mxu0 0
        %739 = vmatpush1.bf16.msra.mxu0 0
        %740 = vmatprep.subr.bf16.mxu0 0
        %741 = vmatpush1.bf16.msra.mxu0 0
        %742 = vmatprep.subr.bf16.mxu0 0
        %743 = vmatpush1.bf16.msra.mxu0 0
        %744 = vmatprep.subr.bf16.mxu0 0
        %745 = vmatpush1.bf16.msra.mxu0 0
        %746 = vmatprep.subr.bf16.mxu0 0
        %747 = vmatpush1.bf16.msra.mxu0 0
        %748 = vmatprep.subr.bf16.mxu0 0
        %749 = vmatpush1.bf16.msra.mxu0 0
        %750 = vmatprep.subr.bf16.mxu0 0
        %751 = vmatpush1.bf16.msra.mxu0 0
        %752 = vmatprep.subr.bf16.mxu0 0
        %753 = vmatpush1.bf16.msra.mxu0 0
        %754 = vmatprep.mubr.bf16.mxu0 0
        %755 = vmatmul.mubr.bf16.gmra.mrb[0].mxu0 %v720
        %v756 = vpop.f32.mrb[0].mxu0
        %v757 = vadd.f32 %v710, %v756
        %v758 = vpop.f32.mrb[0].mxu0
        %v759 = vpop.f32.mrb[0].mxu0
        %v760 = vpop.f32.mrb[0].mxu0
        %761 = vdwg.mxu0
        %v762 = vld [vmem:[%s4] sm:$0xf]
        %v763 = vld [vmem:[%s4 + $0x4] sm:$0xf]
        %v764 = vld [vmem:[%s4 + $0x8] sm:$0xf]
        %v765 = vld [vmem:[%s4 + $0xc] sm:$0xf]
        %v766 = vpack.c.bf16 %v757, %v757
        %v767 = vld [vmem:[%s5] sm:$0x1]
        %v769 = vlaneseq
        %v770 = vshrl.u32 %v769, 7
        %v771 = vsub.s32 0, %v770
        %v772 = vrot.slane %v767, %v771
        %v778 = vunpack.c.l.b16 %v762
        %v779 = vunpack.c.l.b16 %v763
        %v780 = vunpack.c.l.b16 %v764
        %v781 = vunpack.c.l.b16 %v765
        %v782 = vpack.c.b16 %v779, %v778
        %v783 = vpack.c.b16 %v781, %v780
        %vm786 = vcmask 261120
        %v788 = vsel %vm786, %v766, 0
        %790 = vmatprep.subr.bf16.mxu0 0
        %791 = vmatpush1.bf16.msra.mxu0 %v782
        %792 = vmatprep.subr.bf16.mxu0 0
        %793 = vmatpush1.bf16.msra.mxu0 %v783
        %794 = vmatprep.subr.bf16.mxu0 0
        %795 = vmatpush1.bf16.msra.mxu0 0
        %796 = vmatprep.subr.bf16.mxu0 0
        %797 = vmatpush1.bf16.msra.mxu0 0
        %798 = vmatprep.subr.bf16.mxu0 0
        %799 = vmatpush1.bf16.msra.mxu0 0
        %800 = vmatprep.subr.bf16.mxu0 0
        %801 = vmatpush1.bf16.msra.mxu0 0
        %802 = vmatprep.subr.bf16.mxu0 0
        %803 = vmatpush1.bf16.msra.mxu0 0
        %804 = vmatprep.subr.bf16.mxu0 0
        %805 = vmatpush1.bf16.msra.mxu0 0
        %806 = vmatprep.subr.bf16.mxu0 0
        %807 = vmatpush1.bf16.msra.mxu0 0
        %808 = vmatprep.subr.bf16.mxu0 0
        %809 = vmatpush1.bf16.msra.mxu0 0
        %810 = vmatprep.subr.bf16.mxu0 0
        %811 = vmatpush1.bf16.msra.mxu0 0
        %812 = vmatprep.subr.bf16.mxu0 0
        %813 = vmatpush1.bf16.msra.mxu0 0
        %814 = vmatprep.subr.bf16.mxu0 0
        %815 = vmatpush1.bf16.msra.mxu0 0
        %816 = vmatprep.subr.bf16.mxu0 0
        %817 = vmatpush1.bf16.msra.mxu0 0
        %818 = vmatprep.subr.bf16.mxu0 0
        %819 = vmatpush1.bf16.msra.mxu0 0
        %820 = vmatprep.subr.bf16.mxu0 0
        %821 = vmatpush1.bf16.msra.mxu0 0
        %822 = vmatprep.mubr.bf16.mxu0 0
        %823 = vmatmul.mubr.bf16.gmra.mrb[0].mxu0 %v788
        %v824 = vpop.f32.mrb[0].mxu0
        %v825 = vadd.f32 %v772, %v824
        %v826 = vpop.f32.mrb[0].mxu0
        %v827 = vpop.f32.mrb[0].mxu0
        %v828 = vpop.f32.mrb[0].mxu0
        %829 = vdwg.mxu0
        %831 = vrot.lane.b32.xlu0 %v825, 96
        %v832 = vpop.permute.xlu0 %831
        %vm833 = vcmask 64512
        %v834 = vsel %vm833, %v825, 0
        %v836 = vsel %vm833, %v832, 0
        %838 = vmatprep.subr.mxu0 0.0
        %839 = vmatpush1.xpose.msra.mxu0 %v836
        %840 = vmatprep.subr.mxu0 0.0
        %841 = vmatpush1.xpose.msra.mxu0 0.0
        %842 = vmatprep.subr.mxu0 0.0
        %843 = vmatpush1.xpose.msra.mxu0 0.0
        %844 = vmatprep.subr.mxu0 0.0
        %845 = vmatpush1.xpose.msra.mxu0 0.0
        %846 = vmatprep.subr.mxu0 0.0
        %847 = vmatpush1.xpose.msra.mxu0 0.0
        %848 = vmatprep.subr.mxu0 0.0
        %849 = vmatpush1.xpose.msra.mxu0 0.0
        %850 = vmatprep.subr.mxu0 0.0
        %851 = vmatpush1.xpose.msra.mxu0 0.0
        %852 = vmatprep.subr.mxu0 0.0
        %853 = vmatpush1.xpose.msra.mxu0 0.0
        %854 = vmatprep.subr.mxu0 0.0
        %855 = vmatpush1.xpose.msra.mxu0 0.0
        %856 = vmatprep.subr.mxu0 0.0
        %857 = vmatpush1.xpose.msra.mxu0 0.0
        %858 = vmatprep.subr.mxu0 0.0
        %859 = vmatpush1.xpose.msra.mxu0 0.0
        %860 = vmatprep.subr.mxu0 0.0
        %861 = vmatpush1.xpose.msra.mxu0 0.0
        %862 = vmatprep.subr.mxu0 0.0
        %863 = vmatpush1.xpose.msra.mxu0 0.0
        %864 = vmatprep.subr.mxu0 0.0
        %865 = vmatpush1.xpose.msra.mxu0 0.0
        %866 = vmatprep.subr.mxu0 0.0
        %867 = vmatpush1.xpose.msra.mxu0 0.0
        %868 = vmatprep.subr.mxu0 0.0
        %869 = vmatpush1.xpose.msra.mxu0 0.0
        %870 = vmatprep.subr.mxu0 0.0
        %871 = vmatpush1.xpose.msra.mxu0 0.0
        %872 = vmatprep.subr.mxu0 0.0
        %873 = vmatpush1.xpose.msra.mxu0 0.0
        %874 = vmatprep.subr.mxu0 0.0
        %875 = vmatpush1.xpose.msra.mxu0 0.0
        %876 = vmatprep.subr.mxu0 0.0
        %877 = vmatpush1.xpose.msra.mxu0 0.0
        %878 = vmatprep.subr.mxu0 0.0
        %879 = vmatpush1.xpose.msra.mxu0 0.0
        %880 = vmatprep.subr.mxu0 0.0
        %881 = vmatpush1.xpose.msra.mxu0 0.0
        %882 = vmatprep.subr.mxu0 0.0
        %883 = vmatpush1.xpose.msra.mxu0 0.0
        %884 = vmatprep.subr.mxu0 0.0
        %885 = vmatpush1.xpose.msra.mxu0 0.0
        %886 = vmatprep.subr.mxu0 0.0
        %887 = vmatpush1.xpose.msra.mxu0 0.0
        %888 = vmatprep.subr.mxu0 0.0
        %889 = vmatpush1.xpose.msra.mxu0 0.0
        %890 = vmatprep.subr.mxu0 0.0
        %891 = vmatpush1.xpose.msra.mxu0 0.0
        %892 = vmatprep.subr.mxu0 0.0
        %893 = vmatpush1.xpose.msra.mxu0 0.0
        %894 = vmatprep.subr.mxu0 0.0
        %895 = vmatpush1.xpose.msra.mxu0 0.0
        %896 = vmatprep.subr.mxu0 0.0
        %897 = vmatpush1.xpose.msra.mxu0 0.0
        %898 = vmatprep.subr.mxu0 0.0
        %899 = vmatpush1.xpose.msra.mxu0 0.0
        %900 = vmatprep.subr.mxu0 0.0
        %901 = vmatpush1.xpose.msra.mxu0 0.0
        %902 = vmatprep.mubr.f32.mxu0 0.0
        %903 = vmatmul.mubr.f32.gmra.mrb[0].mxu0 %v834
        %v904 = vpop.f32.mrb[0].mxu0
        %v905 = vadd.f32 0.0, %v904
        %v906 = vpop.f32.mrb[0].mxu0
        %907 = vdwg.mxu0
        %v908 = vmul.f32 %v905, 0.35355338
        %vm909 = vcmask 55296
        %v910 = vsel %vm909, %v908, -inf
        %911 = vmax.xlane.f32.xlu0 %v910
        %v912 = vpop.xlane.xlu0 %911
        %v913 = vsub.f32 %v908, %v912
        %v914 = vmul.f32 %v913, 1.442695
        %v915 = vpow.pop %v914
        %v916 = vsel %vm909, %v915, 0.0
        %917 = vadd.xlane.f32.xlu0 %v916
        %v918 = vpop.xlane.xlu0 %917
        %v919 = vrcp.pop %v918
        %v920 = vmul.f32 %v915, %v919
        %921 = vrot.lane.b32.xlu0 %v825, 64
        %v922 = vpop.permute.xlu0 %921
        %vm923 = vcmask 56320
        %v925 = vsel %vm923, %v920, 0
        %vm927 = vcmask 1046528
        %v928 = vsel %vm927, %v922, 0
        %930 = vmatprep.subr.mxu0 0.0
        %931 = vmatpush1.msra.mxu0 %v928
        %932 = vmatprep.subr.mxu0 0.0
        %933 = vmatpush1.msra.mxu0 0.0
        %934 = vmatprep.subr.mxu0 0.0
        %935 = vmatpush1.msra.mxu0 0.0
        %936 = vmatprep.subr.mxu0 0.0
        %937 = vmatpush1.msra.mxu0 0.0
        %938 = vmatprep.subr.mxu0 0.0
        %939 = vmatpush1.msra.mxu0 0.0
        %940 = vmatprep.subr.mxu0 0.0
        %941 = vmatpush1.msra.mxu0 0.0
        %942 = vmatprep.subr.mxu0 0.0
        %943 = vmatpush1.msra.mxu0 0.0
        %944 = vmatprep.subr.mxu0 0.0
        %945 = vmatpush1.msra.mxu0 0.0
        %946 = vmatprep.subr.mxu0 0.0
        %947 = vmatpush1.msra.mxu0 0.0
        %948 = vmatprep.subr.mxu0 0.0
        %949 = vmatpush1.msra.mxu0 0.0
        %950 = vmatprep.subr.mxu0 0.0
        %951 = vmatpush1.msra.mxu0 0.0
        %952 = vmatprep.subr.mxu0 0.0
        %953 = vmatpush1.msra.mxu0 0.0
        %954 = vmatprep.subr.mxu0 0.0
        %955 = vmatpush1.msra.mxu0 0.0
        %956 = vmatprep.subr.mxu0 0.0
        %957 = vmatpush1.msra.mxu0 0.0
        %958 = vmatprep.subr.mxu0 0.0
        %959 = vmatpush1.msra.mxu0 0.0
        %960 = vmatprep.subr.mxu0 0.0
        %961 = vmatpush1.msra.mxu0 0.0
        %962 = vmatprep.subr.mxu0 0.0
        %963 = vmatpush1.msra.mxu0 0.0
        %964 = vmatprep.subr.mxu0 0.0
        %965 = vmatpush1.msra.mxu0 0.0
        %966 = vmatprep.subr.mxu0 0.0
        %967 = vmatpush1.msra.mxu0 0.0
        %968 = vmatprep.subr.mxu0 0.0
        %969 = vmatpush1.msra.mxu0 0.0
        %970 = vmatprep.subr.mxu0 0.0
        %971 = vmatpush1.msra.mxu0 0.0
        %972 = vmatprep.subr.mxu0 0.0
        %973 = vmatpush1.msra.mxu0 0.0
        %974 = vmatprep.subr.mxu0 0.0
        %975 = vmatpush1.msra.mxu0 0.0
        %976 = vmatprep.subr.mxu0 0.0
        %977 = vmatpush1.msra.mxu0 0.0
        %978 = vmatprep.subr.mxu0 0.0
        %979 = vmatpush1.msra.mxu0 0.0
        %980 = vmatprep.subr.mxu0 0.0
        %981 = vmatpush1.msra.mxu0 0.0
        %982 = vmatprep.subr.mxu0 0.0
        %983 = vmatpush1.msra.mxu0 0.0
        %984 = vmatprep.subr.mxu0 0.0
        %985 = vmatpush1.msra.mxu0 0.0
        %986 = vmatprep.subr.mxu0 0.0
        %987 = vmatpush1.msra.mxu0 0.0
        %988 = vmatprep.subr.mxu0 0.0
        %989 = vmatpush1.msra.mxu0 0.0
        %990 = vmatprep.subr.mxu0 0.0
        %991 = vmatpush1.msra.mxu0 0.0
        %992 = vmatprep.subr.mxu0 0.0
        %993 = vmatpush1.msra.mxu0 0.0
        %994 = vmatprep.mubr.f32.mxu0 0.0
        %995 = vmatmul.mubr.f32.gmra.mrb[0].mxu0 %v925
        %v996 = vpop.f32.mrb[0].mxu0
        %v997 = vadd.f32 0.0, %v996
        %v998 = vpop.f32.mrb[0].mxu0
        %999 = vdwg.mxu0
        %vm1000 = vcmask 63488
        %1001 = vst.msk [vmem:[#allocation2] sm:$0x7f] %vm1000, %v997
        %1002 = vrot.lane.b32.xlu0 %v825, 120
        %v1003 = vpop.permute.xlu0 %1002
        %1004 = vrot.lane.b32.xlu0 %v825, 88
        %v1005 = vpop.permute.xlu0 %1004
        %v1006 = vsel %vm833, %v1003, 0
        %v1008 = vsel %vm833, %v1005, 0
        %1010 = vmatprep.subr.mxu0 0.0
        %1011 = vmatpush1.xpose.msra.mxu0 %v1008
        %1012 = vmatprep.subr.mxu0 0.0
        %1013 = vmatpush1.xpose.msra.mxu0 0.0
        %1014 = vmatprep.subr.mxu0 0.0
        %1015 = vmatpush1.xpose.msra.mxu0 0.0
        %1016 = vmatprep.subr.mxu0 0.0
        %1017 = vmatpush1.xpose.msra.mxu0 0.0
        %1018 = vmatprep.subr.mxu0 0.0
        %1019 = vmatpush1.xpose.msra.mxu0 0.0
        %1020 = vmatprep.subr.mxu0 0.0
        %1021 = vmatpush1.xpose.msra.mxu0 0.0
        %1022 = vmatprep.subr.mxu0 0.0
        %1023 = vmatpush1.xpose.msra.mxu0 0.0
        %1024 = vmatprep.subr.mxu0 0.0
        %1025 = vmatpush1.xpose.msra.mxu0 0.0
        %1026 = vmatprep.subr.mxu0 0.0
        %1027 = vmatpush1.xpose.msra.mxu0 0.0
        %1028 = vmatprep.subr.mxu0 0.0
        %1029 = vmatpush1.xpose.msra.mxu0 0.0
        %1030 = vmatprep.subr.mxu0 0.0
        %1031 = vmatpush1.xpose.msra.mxu0 0.0
        %1032 = vmatprep.subr.mxu0 0.0
        %1033 = vmatpush1.xpose.msra.mxu0 0.0
        %1034 = vmatprep.subr.mxu0 0.0
        %1035 = vmatpush1.xpose.msra.mxu0 0.0
        %1036 = vmatprep.subr.mxu0 0.0
        %1037 = vmatpush1.xpose.msra.mxu0 0.0
        %1038 = vmatprep.subr.mxu0 0.0
        %1039 = vmatpush1.xpose.msra.mxu0 0.0
        %1040 = vmatprep.subr.mxu0 0.0
        %1041 = vmatpush1.xpose.msra.mxu0 0.0
        %1042 = vmatprep.subr.mxu0 0.0
        %1043 = vmatpush1.xpose.msra.mxu0 0.0
        %1044 = vmatprep.subr.mxu0 0.0
        %1045 = vmatpush1.xpose.msra.mxu0 0.0
        %1046 = vmatprep.subr.mxu0 0.0
        %1047 = vmatpush1.xpose.msra.mxu0 0.0
        %1048 = vmatprep.subr.mxu0 0.0
        %1049 = vmatpush1.xpose.msra.mxu0 0.0
        %1050 = vmatprep.subr.mxu0 0.0
        %1051 = vmatpush1.xpose.msra.mxu0 0.0
        %1052 = vmatprep.subr.mxu0 0.0
        %1053 = vmatpush1.xpose.msra.mxu0 0.0
        %1054 = vmatprep.subr.mxu0 0.0
        %1055 = vmatpush1.xpose.msra.mxu0 0.0
        %1056 = vmatprep.subr.mxu0 0.0
        %1057 = vmatpush1.xpose.msra.mxu0 0.0
        %1058 = vmatprep.subr.mxu0 0.0
        %1059 = vmatpush1.xpose.msra.mxu0 0.0
        %1060 = vmatprep.subr.mxu0 0.0
        %1061 = vmatpush1.xpose.msra.mxu0 0.0
        %1062 = vmatprep.subr.mxu0 0.0
        %1063 = vmatpush1.xpose.msra.mxu0 0.0
        %1064 = vmatprep.subr.mxu0 0.0
        %1065 = vmatpush1.xpose.msra.mxu0 0.0
        %1066 = vmatprep.subr.mxu0 0.0
        %1067 = vmatpush1.xpose.msra.mxu0 0.0
        %1068 = vmatprep.subr.mxu0 0.0
        %1069 = vmatpush1.xpose.msra.mxu0 0.0
        %1070 = vmatprep.subr.mxu0 0.0
        %1071 = vmatpush1.xpose.msra.mxu0 0.0
        %1072 = vmatprep.subr.mxu0 0.0
        %1073 = vmatpush1.xpose.msra.mxu0 0.0
        %1074 = vmatprep.mubr.f32.mxu0 0.0
        %1075 = vmatmul.mubr.f32.gmra.mrb[0].mxu0 %v1006
        %v1076 = vpop.f32.mrb[0].mxu0
        %v1077 = vadd.f32 0.0, %v1076
        %v1078 = vpop.f32.mrb[0].mxu0
        %1079 = vdwg.mxu0
        %v1080 = vmul.f32 %v1077, 0.35355338
        %v1081 = vsel %vm909, %v1080, -inf
        %1082 = vmax.xlane.f32.xlu0 %v1081
        %v1083 = vpop.xlane.xlu0 %1082
        %v1084 = vsub.f32 %v1080, %v1083
        %v1085 = vmul.f32 %v1084, 1.442695
        %v1086 = vpow.pop %v1085
        %v1087 = vsel %vm909, %v1086, 0.0
        %1088 = vadd.xlane.f32.xlu0 %v1087
        %v1089 = vpop.xlane.xlu0 %1088
        %v1090 = vrcp.pop %v1089
        %v1091 = vmul.f32 %v1086, %v1090
        %1092 = vrot.lane.b32.xlu0 %v825, 56
        %v1093 = vpop.permute.xlu0 %1092
        %v1095 = vsel %vm923, %v1091, 0
        %v1097 = vsel %vm927, %v1093, 0
        %1099 = vmatprep.subr.mxu0 0.0
        %1100 = vmatpush1.msra.mxu0 %v1097
        %1101 = vmatprep.subr.mxu0 0.0
        %1102 = vmatpush1.msra.mxu0 0.0
        %1103 = vmatprep.subr.mxu0 0.0
        %1104 = vmatpush1.msra.mxu0 0.0
        %1105 = vmatprep.subr.mxu0 0.0
        %1106 = vmatpush1.msra.mxu0 0.0
        %1107 = vmatprep.subr.mxu0 0.0
        %1108 = vmatpush1.msra.mxu0 0.0
        %1109 = vmatprep.subr.mxu0 0.0
        %1110 = vmatpush1.msra.mxu0 0.0
        %1111 = vmatprep.subr.mxu0 0.0
        %1112 = vmatpush1.msra.mxu0 0.0
        %1113 = vmatprep.subr.mxu0 0.0
        %1114 = vmatpush1.msra.mxu0 0.0
        %1115 = vmatprep.subr.mxu0 0.0
        %1116 = vmatpush1.msra.mxu0 0.0
        %1117 = vmatprep.subr.mxu0 0.0
        %1118 = vmatpush1.msra.mxu0 0.0
        %1119 = vmatprep.subr.mxu0 0.0
        %1120 = vmatpush1.msra.mxu0 0.0
        %1121 = vmatprep.subr.mxu0 0.0
        %1122 = vmatpush1.msra.mxu0 0.0
        %1123 = vmatprep.subr.mxu0 0.0
        %1124 = vmatpush1.msra.mxu0 0.0
        %1125 = vmatprep.subr.mxu0 0.0
        %1126 = vmatpush1.msra.mxu0 0.0
        %1127 = vmatprep.subr.mxu0 0.0
        %1128 = vmatpush1.msra.mxu0 0.0
        %1129 = vmatprep.subr.mxu0 0.0
        %1130 = vmatpush1.msra.mxu0 0.0
        %1131 = vmatprep.subr.mxu0 0.0
        %1132 = vmatpush1.msra.mxu0 0.0
        %1133 = vmatprep.subr.mxu0 0.0
        %1134 = vmatpush1.msra.mxu0 0.0
        %1135 = vmatprep.subr.mxu0 0.0
        %1136 = vmatpush1.msra.mxu0 0.0
        %1137 = vmatprep.subr.mxu0 0.0
        %1138 = vmatpush1.msra.mxu0 0.0
        %1139 = vmatprep.subr.mxu0 0.0
        %1140 = vmatpush1.msra.mxu0 0.0
        %1141 = vmatprep.subr.mxu0 0.0
        %1142 = vmatpush1.msra.mxu0 0.0
        %1143 = vmatprep.subr.mxu0 0.0
        %1144 = vmatpush1.msra.mxu0 0.0
        %1145 = vmatprep.subr.mxu0 0.0
        %1146 = vmatpush1.msra.mxu0 0.0
        %1147 = vmatprep.subr.mxu0 0.0
        %1148 = vmatpush1.msra.mxu0 0.0
        %1149 = vmatprep.subr.mxu0 0.0
        %1150 = vmatpush1.msra.mxu0 0.0
        %1151 = vmatprep.subr.mxu0 0.0
        %1152 = vmatpush1.msra.mxu0 0.0
        %1153 = vmatprep.subr.mxu0 0.0
        %1154 = vmatpush1.msra.mxu0 0.0
        %1155 = vmatprep.subr.mxu0 0.0
        %1156 = vmatpush1.msra.mxu0 0.0
        %1157 = vmatprep.subr.mxu0 0.0
        %1158 = vmatpush1.msra.mxu0 0.0
        %1159 = vmatprep.subr.mxu0 0.0
        %1160 = vmatpush1.msra.mxu0 0.0
        %1161 = vmatprep.subr.mxu0 0.0
        %1162 = vmatpush1.msra.mxu0 0.0
        %1163 = vmatprep.mubr.f32.mxu0 0.0
        %1164 = vmatmul.mubr.f32.gmra.mrb[0].mxu0 %v1095
        %v1165 = vpop.f32.mrb[0].mxu0
        %v1166 = vadd.f32 0.0, %v1165
        %v1167 = vpop.f32.mrb[0].mxu0
        %1168 = vdwg.mxu0
        %1170 = vrot.lane.b32.xlu0 %v1166, 8
        %v1171 = vpop.permute.xlu0 %1170
        %vm1173 = vcmask 129088
        %1174 = vst.msk [vmem:[#allocation2] sm:$0x7f] %vm1173, %v1171
        %1175 = vrot.lane.b32.xlu0 %v825, 112
        %v1176 = vpop.permute.xlu0 %1175
        %1177 = vrot.lane.b32.xlu0 %v825, 80
        %v1178 = vpop.permute.xlu0 %1177
        %v1179 = vsel %vm833, %v1176, 0
        %v1181 = vsel %vm833, %v1178, 0
        %1183 = vmatprep.subr.mxu0 0.0
        %1184 = vmatpush1.xpose.msra.mxu0 %v1181
        %1185 = vmatprep.subr.mxu0 0.0
        %1186 = vmatpush1.xpose.msra.mxu0 0.0
        %1187 = vmatprep.subr.mxu0 0.0
        %1188 = vmatpush1.xpose.msra.mxu0 0.0
        %1189 = vmatprep.subr.mxu0 0.0
        %1190 = vmatpush1.xpose.msra.mxu0 0.0
        %1191 = vmatprep.subr.mxu0 0.0
        %1192 = vmatpush1.xpose.msra.mxu0 0.0
        %1193 = vmatprep.subr.mxu0 0.0
        %1194 = vmatpush1.xpose.msra.mxu0 0.0
        %1195 = vmatprep.subr.mxu0 0.0
        %1196 = vmatpush1.xpose.msra.mxu0 0.0
        %1197 = vmatprep.subr.mxu0 0.0
        %1198 = vmatpush1.xpose.msra.mxu0 0.0
        %1199 = vmatprep.subr.mxu0 0.0
        %1200 = vmatpush1.xpose.msra.mxu0 0.0
        %1201 = vmatprep.subr.mxu0 0.0
        %1202 = vmatpush1.xpose.msra.mxu0 0.0
        %1203 = vmatprep.subr.mxu0 0.0
        %1204 = vmatpush1.xpose.msra.mxu0 0.0
        %1205 = vmatprep.subr.mxu0 0.0
        %1206 = vmatpush1.xpose.msra.mxu0 0.0
        %1207 = vmatprep.subr.mxu0 0.0
        %1208 = vmatpush1.xpose.msra.mxu0 0.0
        %1209 = vmatprep.subr.mxu0 0.0
        %1210 = vmatpush1.xpose.msra.mxu0 0.0
        %1211 = vmatprep.subr.mxu0 0.0
        %1212 = vmatpush1.xpose.msra.mxu0 0.0
        %1213 = vmatprep.subr.mxu0 0.0
        %1214 = vmatpush1.xpose.msra.mxu0 0.0
        %1215 = vmatprep.subr.mxu0 0.0
        %1216 = vmatpush1.xpose.msra.mxu0 0.0
        %1217 = vmatprep.subr.mxu0 0.0
        %1218 = vmatpush1.xpose.msra.mxu0 0.0
        %1219 = vmatprep.subr.mxu0 0.0
        %1220 = vmatpush1.xpose.msra.mxu0 0.0
        %1221 = vmatprep.subr.mxu0 0.0
        %1222 = vmatpush1.xpose.msra.mxu0 0.0
        %1223 = vmatprep.subr.mxu0 0.0
        %1224 = vmatpush1.xpose.msra.mxu0 0.0
        %1225 = vmatprep.subr.mxu0 0.0
        %1226 = vmatpush1.xpose.msra.mxu0 0.0
        %1227 = vmatprep.subr.mxu0 0.0
        %1228 = vmatpush1.xpose.msra.mxu0 0.0
        %1229 = vmatprep.subr.mxu0 0.0
        %1230 = vmatpush1.xpose.msra.mxu0 0.0
        %1231 = vmatprep.subr.mxu0 0.0
        %1232 = vmatpush1.xpose.msra.mxu0 0.0
        %1233 = vmatprep.subr.mxu0 0.0
        %1234 = vmatpush1.xpose.msra.mxu0 0.0
        %1235 = vmatprep.subr.mxu0 0.0
        %1236 = vmatpush1.xpose.msra.mxu0 0.0
        %1237 = vmatprep.subr.mxu0 0.0
        %1238 = vmatpush1.xpose.msra.mxu0 0.0
        %1239 = vmatprep.subr.mxu0 0.0
        %1240 = vmatpush1.xpose.msra.mxu0 0.0
        %1241 = vmatprep.subr.mxu0 0.0
        %1242 = vmatpush1.xpose.msra.mxu0 0.0
        %1243 = vmatprep.subr.mxu0 0.0
        %1244 = vmatpush1.xpose.msra.mxu0 0.0
        %1245 = vmatprep.subr.mxu0 0.0
        %1246 = vmatpush1.xpose.msra.mxu0 0.0
        %1247 = vmatprep.mubr.f32.mxu0 0.0
        %1248 = vmatmul.mubr.f32.gmra.mrb[0].mxu0 %v1179
        %v1249 = vpop.f32.mrb[0].mxu0
        %v1250 = vadd.f32 0.0, %v1249
        %v1251 = vpop.f32.mrb[0].mxu0
        %1252 = vdwg.mxu0
        %v1253 = vmul.f32 %v1250, 0.35355338
        %v1254 = vsel %vm909, %v1253, -inf
        %1255 = vmax.xlane.f32.xlu0 %v1254
        %v1256 = vpop.xlane.xlu0 %1255
        %v1257 = vsub.f32 %v1253, %v1256
        %v1258 = vmul.f32 %v1257, 1.442695
        %v1259 = vpow.pop %v1258
        %v1260 = vsel %vm909, %v1259, 0.0
        %1261 = vadd.xlane.f32.xlu0 %v1260
        %v1262 = vpop.xlane.xlu0 %1261
        %v1263 = vrcp.pop %v1262
        %v1264 = vmul.f32 %v1259, %v1263
        %1265 = vrot.lane.b32.xlu0 %v825, 48
        %v1266 = vpop.permute.xlu0 %1265
        %v1268 = vsel %vm923, %v1264, 0
        %v1270 = vsel %vm927, %v1266, 0
        %1272 = vmatprep.subr.mxu0 0.0
        %1273 = vmatpush1.msra.mxu0 %v1270
        %1274 = vmatprep.subr.mxu0 0.0
        %1275 = vmatpush1.msra.mxu0 0.0
        %1276 = vmatprep.subr.mxu0 0.0
        %1277 = vmatpush1.msra.mxu0 0.0
        %1278 = vmatprep.subr.mxu0 0.0
        %1279 = vmatpush1.msra.mxu0 0.0
        %1280 = vmatprep.subr.mxu0 0.0
        %1281 = vmatpush1.msra.mxu0 0.0
        %1282 = vmatprep.subr.mxu0 0.0
        %1283 = vmatpush1.msra.mxu0 0.0
        %1284 = vmatprep.subr.mxu0 0.0
        %1285 = vmatpush1.msra.mxu0 0.0
        %1286 = vmatprep.subr.mxu0 0.0
        %1287 = vmatpush1.msra.mxu0 0.0
        %1288 = vmatprep.subr.mxu0 0.0
        %1289 = vmatpush1.msra.mxu0 0.0
        %1290 = vmatprep.subr.mxu0 0.0
        %1291 = vmatpush1.msra.mxu0 0.0
        %1292 = vmatprep.subr.mxu0 0.0
        %1293 = vmatpush1.msra.mxu0 0.0
        %1294 = vmatprep.subr.mxu0 0.0
        %1295 = vmatpush1.msra.mxu0 0.0
        %1296 = vmatprep.subr.mxu0 0.0
        %1297 = vmatpush1.msra.mxu0 0.0
        %1298 = vmatprep.subr.mxu0 0.0
        %1299 = vmatpush1.msra.mxu0 0.0
        %1300 = vmatprep.subr.mxu0 0.0
        %1301 = vmatpush1.msra.mxu0 0.0
        %1302 = vmatprep.subr.mxu0 0.0
        %1303 = vmatpush1.msra.mxu0 0.0
        %1304 = vmatprep.subr.mxu0 0.0
        %1305 = vmatpush1.msra.mxu0 0.0
        %1306 = vmatprep.subr.mxu0 0.0
        %1307 = vmatpush1.msra.mxu0 0.0
        %1308 = vmatprep.subr.mxu0 0.0
        %1309 = vmatpush1.msra.mxu0 0.0
        %1310 = vmatprep.subr.mxu0 0.0
        %1311 = vmatpush1.msra.mxu0 0.0
        %1312 = vmatprep.subr.mxu0 0.0
        %1313 = vmatpush1.msra.mxu0 0.0
        %1314 = vmatprep.subr.mxu0 0.0
        %1315 = vmatpush1.msra.mxu0 0.0
        %1316 = vmatprep.subr.mxu0 0.0
        %1317 = vmatpush1.msra.mxu0 0.0
        %1318 = vmatprep.subr.mxu0 0.0
        %1319 = vmatpush1.msra.mxu0 0.0
        %1320 = vmatprep.subr.mxu0 0.0
        %1321 = vmatpush1.msra.mxu0 0.0
        %1322 = vmatprep.subr.mxu0 0.0
        %1323 = vmatpush1.msra.mxu0 0.0
        %1324 = vmatprep.subr.mxu0 0.0
        %1325 = vmatpush1.msra.mxu0 0.0
        %1326 = vmatprep.subr.mxu0 0.0
        %1327 = vmatpush1.msra.mxu0 0.0
        %1328 = vmatprep.subr.mxu0 0.0
        %1329 = vmatpush1.msra.mxu0 0.0
        %1330 = vmatprep.subr.mxu0 0.0
        %1331 = vmatpush1.msra.mxu0 0.0
        %1332 = vmatprep.subr.mxu0 0.0
        %1333 = vmatpush1.msra.mxu0 0.0
        %1334 = vmatprep.subr.mxu0 0.0
        %1335 = vmatpush1.msra.mxu0 0.0
        %1336 = vmatprep.mubr.f32.mxu0 0.0
        %1337 = vmatmul.mubr.f32.gmra.mrb[0].mxu0 %v1268
        %v1338 = vpop.f32.mrb[0].mxu0
        %v1339 = vadd.f32 0.0, %v1338
        %v1340 = vpop.f32.mrb[0].mxu0
        %1341 = vdwg.mxu0
        %1343 = vrot.lane.b32.xlu0 %v1339, 16
        %v1344 = vpop.permute.xlu0 %1343
        %vm1346 = vcmask 194688
        %1347 = vst.msk [vmem:[#allocation2] sm:$0x7f] %vm1346, %v1344
        %1348 = vrot.lane.b32.xlu0 %v825, 104
        %v1349 = vpop.permute.xlu0 %1348
        %1350 = vrot.lane.b32.xlu0 %v825, 72
        %v1351 = vpop.permute.xlu0 %1350
        %v1352 = vsel %vm833, %v1349, 0
        %v1354 = vsel %vm833, %v1351, 0
        %1356 = vmatprep.subr.mxu0 0.0
        %1357 = vmatpush1.xpose.msra.mxu0 %v1354
        %1358 = vmatprep.subr.mxu0 0.0
        %1359 = vmatpush1.xpose.msra.mxu0 0.0
        %1360 = vmatprep.subr.mxu0 0.0
        %1361 = vmatpush1.xpose.msra.mxu0 0.0
        %1362 = vmatprep.subr.mxu0 0.0
        %1363 = vmatpush1.xpose.msra.mxu0 0.0
        %1364 = vmatprep.subr.mxu0 0.0
        %1365 = vmatpush1.xpose.msra.mxu0 0.0
        %1366 = vmatprep.subr.mxu0 0.0
        %1367 = vmatpush1.xpose.msra.mxu0 0.0
        %1368 = vmatprep.subr.mxu0 0.0
        %1369 = vmatpush1.xpose.msra.mxu0 0.0
        %1370 = vmatprep.subr.mxu0 0.0
        %1371 = vmatpush1.xpose.msra.mxu0 0.0
        %1372 = vmatprep.subr.mxu0 0.0
        %1373 = vmatpush1.xpose.msra.mxu0 0.0
        %1374 = vmatprep.subr.mxu0 0.0
        %1375 = vmatpush1.xpose.msra.mxu0 0.0
        %1376 = vmatprep.subr.mxu0 0.0
        %1377 = vmatpush1.xpose.msra.mxu0 0.0
        %1378 = vmatprep.subr.mxu0 0.0
        %1379 = vmatpush1.xpose.msra.mxu0 0.0
        %1380 = vmatprep.subr.mxu0 0.0
        %1381 = vmatpush1.xpose.msra.mxu0 0.0
        %1382 = vmatprep.subr.mxu0 0.0
        %1383 = vmatpush1.xpose.msra.mxu0 0.0
        %1384 = vmatprep.subr.mxu0 0.0
        %1385 = vmatpush1.xpose.msra.mxu0 0.0
        %1386 = vmatprep.subr.mxu0 0.0
        %1387 = vmatpush1.xpose.msra.mxu0 0.0
        %1388 = vmatprep.subr.mxu0 0.0
        %1389 = vmatpush1.xpose.msra.mxu0 0.0
        %1390 = vmatprep.subr.mxu0 0.0
        %1391 = vmatpush1.xpose.msra.mxu0 0.0
        %1392 = vmatprep.subr.mxu0 0.0
        %1393 = vmatpush1.xpose.msra.mxu0 0.0
        %1394 = vmatprep.subr.mxu0 0.0
        %1395 = vmatpush1.xpose.msra.mxu0 0.0
        %1396 = vmatprep.subr.mxu0 0.0
        %1397 = vmatpush1.xpose.msra.mxu0 0.0
        %1398 = vmatprep.subr.mxu0 0.0
        %1399 = vmatpush1.xpose.msra.mxu0 0.0
        %1400 = vmatprep.subr.mxu0 0.0
        %1401 = vmatpush1.xpose.msra.mxu0 0.0
        %1402 = vmatprep.subr.mxu0 0.0
        %1403 = vmatpush1.xpose.msra.mxu0 0.0
        %1404 = vmatprep.subr.mxu0 0.0
        %1405 = vmatpush1.xpose.msra.mxu0 0.0
        %1406 = vmatprep.subr.mxu0 0.0
        %1407 = vmatpush1.xpose.msra.mxu0 0.0
        %1408 = vmatprep.subr.mxu0 0.0
        %1409 = vmatpush1.xpose.msra.mxu0 0.0
        %1410 = vmatprep.subr.mxu0 0.0
        %1411 = vmatpush1.xpose.msra.mxu0 0.0
        %1412 = vmatprep.subr.mxu0 0.0
        %1413 = vmatpush1.xpose.msra.mxu0 0.0
        %1414 = vmatprep.subr.mxu0 0.0
        %1415 = vmatpush1.xpose.msra.mxu0 0.0
        %1416 = vmatprep.subr.mxu0 0.0
        %1417 = vmatpush1.xpose.msra.mxu0 0.0
        %1418 = vmatprep.subr.mxu0 0.0
        %1419 = vmatpush1.xpose.msra.mxu0 0.0
        %1420 = vmatprep.mubr.f32.mxu0 0.0
        %1421 = vmatmul.mubr.f32.gmra.mrb[0].mxu0 %v1352
        %v1422 = vpop.f32.mrb[0].mxu0
        %v1423 = vadd.f32 0.0, %v1422
        %v1424 = vpop.f32.mrb[0].mxu0
        %1425 = vdwg.mxu0
        %v1426 = vmul.f32 %v1423, 0.35355338
        %v1427 = vsel %vm909, %v1426, -inf
        %1428 = vmax.xlane.f32.xlu0 %v1427
        %v1429 = vpop.xlane.xlu0 %1428
        %v1430 = vsub.f32 %v1426, %v1429
        %v1431 = vmul.f32 %v1430, 1.442695
        %v1432 = vpow.pop %v1431
        %v1433 = vsel %vm909, %v1432, 0.0
        %1434 = vadd.xlane.f32.xlu0 %v1433
        %v1435 = vpop.xlane.xlu0 %1434
        %v1436 = vrcp.pop %v1435
        %v1437 = vmul.f32 %v1432, %v1436
        %1438 = vrot.lane.b32.xlu0 %v825, 40
        %v1439 = vpop.permute.xlu0 %1438
        %v1441 = vsel %vm923, %v1437, 0
        %v1443 = vsel %vm927, %v1439, 0
        %1445 = vmatprep.subr.mxu0 0.0
        %1446 = vmatpush1.msra.mxu0 %v1443
        %1447 = vmatprep.subr.mxu0 0.0
        %1448 = vmatpush1.msra.mxu0 0.0
        %1449 = vmatprep.subr.mxu0 0.0
        %1450 = vmatpush1.msra.mxu0 0.0
        %1451 = vmatprep.subr.mxu0 0.0
        %1452 = vmatpush1.msra.mxu0 0.0
        %1453 = vmatprep.subr.mxu0 0.0
        %1454 = vmatpush1.msra.mxu0 0.0
        %1455 = vmatprep.subr.mxu0 0.0
        %1456 = vmatpush1.msra.mxu0 0.0
        %1457 = vmatprep.subr.mxu0 0.0
        %1458 = vmatpush1.msra.mxu0 0.0
        %1459 = vmatprep.subr.mxu0 0.0
        %1460 = vmatpush1.msra.mxu0 0.0
        %1461 = vmatprep.subr.mxu0 0.0
        %1462 = vmatpush1.msra.mxu0 0.0
        %1463 = vmatprep.subr.mxu0 0.0
        %1464 = vmatpush1.msra.mxu0 0.0
        %1465 = vmatprep.subr.mxu0 0.0
        %1466 = vmatpush1.msra.mxu0 0.0
        %1467 = vmatprep.subr.mxu0 0.0
        %1468 = vmatpush1.msra.mxu0 0.0
        %1469 = vmatprep.subr.mxu0 0.0
        %1470 = vmatpush1.msra.mxu0 0.0
        %1471 = vmatprep.subr.mxu0 0.0
        %1472 = vmatpush1.msra.mxu0 0.0
        %1473 = vmatprep.subr.mxu0 0.0
        %1474 = vmatpush1.msra.mxu0 0.0
        %1475 = vmatprep.subr.mxu0 0.0
        %1476 = vmatpush1.msra.mxu0 0.0
        %1477 = vmatprep.subr.mxu0 0.0
        %1478 = vmatpush1.msra.mxu0 0.0
        %1479 = vmatprep.subr.mxu0 0.0
        %1480 = vmatpush1.msra.mxu0 0.0
        %1481 = vmatprep.subr.mxu0 0.0
        %1482 = vmatpush1.msra.mxu0 0.0
        %1483 = vmatprep.subr.mxu0 0.0
        %1484 = vmatpush1.msra.mxu0 0.0
        %1485 = vmatprep.subr.mxu0 0.0
        %1486 = vmatpush1.msra.mxu0 0.0
        %1487 = vmatprep.subr.mxu0 0.0
        %1488 = vmatpush1.msra.mxu0 0.0
        %1489 = vmatprep.subr.mxu0 0.0
        %1490 = vmatpush1.msra.mxu0 0.0
        %1491 = vmatprep.subr.mxu0 0.0
        %1492 = vmatpush1.msra.mxu0 0.0
        %1493 = vmatprep.subr.mxu0 0.0
        %1494 = vmatpush1.msra.mxu0 0.0
        %1495 = vmatprep.subr.mxu0 0.0
        %1496 = vmatpush1.msra.mxu0 0.0
        %1497 = vmatprep.subr.mxu0 0.0
        %1498 = vmatpush1.msra.mxu0 0.0
        %1499 = vmatprep.subr.mxu0 0.0
        %1500 = vmatpush1.msra.mxu0 0.0
        %1501 = vmatprep.subr.mxu0 0.0
        %1502 = vmatpush1.msra.mxu0 0.0
        %1503 = vmatprep.subr.mxu0 0.0
        %1504 = vmatpush1.msra.mxu0 0.0
        %1505 = vmatprep.subr.mxu0 0.0
        %1506 = vmatpush1.msra.mxu0 0.0
        %1507 = vmatprep.subr.mxu0 0.0
        %1508 = vmatpush1.msra.mxu0 0.0
        %1509 = vmatprep.mubr.f32.mxu0 0.0
        %1510 = vmatmul.mubr.f32.gmra.mrb[0].mxu0 %v1441
        %v1511 = vpop.f32.mrb[0].mxu0
        %v1512 = vadd.f32 0.0, %v1511
        %v1513 = vpop.f32.mrb[0].mxu0
        %1514 = vdwg.mxu0
        %1516 = vrot.lane.b32.xlu0 %v1512, 24
        %v1517 = vpop.permute.xlu0 %1516
        %vm1519 = vcmask 260288
        %1520 = vst.msk [vmem:[#allocation2] sm:$0x7f] %vm1519, %v1517
        %v1521 = vld [vmem:[#allocation2] sm:$0x7f]
        %v1522 = vld [vmem:[%s6] sm:$0xf]
        %v1523 = vld [vmem:[%s6 + $0x4] sm:$0xf]
        %v1524 = vld [vmem:[%s6 + $0x8] sm:$0xf]
        %v1525 = vld [vmem:[%s6 + $0xc] sm:$0xf]
        %v1526 = vpack.c.bf16 %v1521, %v1521
        %v1527 = vld [vmem:[%s7] sm:$0x1]
        %v1529 = vlaneseq
        %v1530 = vshrl.u32 %v1529, 7
        %v1531 = vsub.s32 0, %v1530
        %v1532 = vrot.slane %v1527, %v1531
        %v1538 = vunpack.c.l.b16 %v1522
        %v1539 = vunpack.c.l.b16 %v1523
        %v1540 = vunpack.c.l.b16 %v1524
        %v1541 = vunpack.c.l.b16 %v1525
        %v1542 = vpack.c.b16 %v1539, %v1538
        %v1543 = vpack.c.b16 %v1541, %v1540
        %v1547 = vsel %vm786, %v1526, 0
        %1549 = vmatprep.subr.bf16.mxu0 0
        %1550 = vmatpush1.bf16.msra.mxu0 %v1542
        %1551 = vmatprep.subr.bf16.mxu0 0
        %1552 = vmatpush1.bf16.msra.mxu0 %v1543
        %1553 = vmatprep.subr.bf16.mxu0 0
        %1554 = vmatpush1.bf16.msra.mxu0 0
        %1555 = vmatprep.subr.bf16.mxu0 0
        %1556 = vmatpush1.bf16.msra.mxu0 0
        %1557 = vmatprep.subr.bf16.mxu0 0
        %1558 = vmatpush1.bf16.msra.mxu0 0
        %1559 = vmatprep.subr.bf16.mxu0 0
        %1560 = vmatpush1.bf16.msra.mxu0 0
        %1561 = vmatprep.subr.bf16.mxu0 0
        %1562 = vmatpush1.bf16.msra.mxu0 0
        %1563 = vmatprep.subr.bf16.mxu0 0
        %1564 = vmatpush1.bf16.msra.mxu0 0
        %1565 = vmatprep.subr.bf16.mxu0 0
        %1566 = vmatpush1.bf16.msra.mxu0 0
        %1567 = vmatprep.subr.bf16.mxu0 0
        %1568 = vmatpush1.bf16.msra.mxu0 0
        %1569 = vmatprep.subr.bf16.mxu0 0
        %1570 = vmatpush1.bf16.msra.mxu0 0
        %1571 = vmatprep.subr.bf16.mxu0 0
        %1572 = vmatpush1.bf16.msra.mxu0 0
        %1573 = vmatprep.subr.bf16.mxu0 0
        %1574 = vmatpush1.bf16.msra.mxu0 0
        %1575 = vmatprep.subr.bf16.mxu0 0
        %1576 = vmatpush1.bf16.msra.mxu0 0
        %1577 = vmatprep.subr.bf16.mxu0 0
        %1578 = vmatpush1.bf16.msra.mxu0 0
        %1579 = vmatprep.subr.bf16.mxu0 0
        %1580 = vmatpush1.bf16.msra.mxu0 0
        %1581 = vmatprep.mubr.bf16.mxu0 0
        %1582 = vmatmul.mubr.bf16.gmra.mrb[0].mxu0 %v1547
        %v1583 = vpop.f32.mrb[0].mxu0
        %v1584 = vadd.f32 %v1532, %v1583
        %v1585 = vpop.f32.mrb[0].mxu0
        %v1586 = vpop.f32.mrb[0].mxu0
        %v1587 = vpop.f32.mrb[0].mxu0
        %1588 = vdwg.mxu0
        %v1589 = vadd.f32 %v757, %v1584
        %v1590 = vld [vmem:[%s8] sm:$0x1]
        %v1591 = vld [vmem:[%s9] sm:$0x1]
        %vm1592 = vcmask 260096
        %v1593 = vsel %vm1592, %v1589, 0.0
        %1594 = vadd.xlane.f32.xlu0 %v1593
        %v1595 = vpop.xlane.xlu0 %1594
        %v1596 = vrcp.pop 32.0
        %v1597 = vmul.f32 %v1595, %v1596
        %v1598 = vsub.f32 %v1589, %v1597
        %v1599 = vmul.f32 %v1598, %v1598
        %v1600 = vsel %vm1592, %v1599, 0.0
        %1601 = vadd.xlane.f32.xlu0 %v1600
        %v1602 = vpop.xlane.xlu0 %1601
        %v1603 = vmul.f32 %v1602, %v1596
        %v1604 = vadd.f32 %v1603, 1e-05
        %v1605 = vrsqrt.pop %v1604
        %v1606 = vmul.f32 %v1598, %v1605
        %v1608 = vlaneseq
        %v1609 = vshrl.u32 %v1608, 7
        %v1610 = vsub.s32 0, %v1609
        %v1611 = vrot.slane %v1590, %v1610
        %v1613 = vmul.f32 %v1606, %v1611
        %v1615 = vlaneseq
        %v1616 = vshrl.u32 %v1615, 7
        %v1617 = vsub.s32 0, %v1616
        %v1618 = vrot.slane %v1591, %v1617
        %v1620 = vadd.f32 %v1613, %v1618
        %v1621 = vld [vmem:[%s10] sm:$0xf]
        %v1622 = vld [vmem:[%s10 + $0x4] sm:$0xf]
        %v1623 = vld [vmem:[%s10 + $0x8] sm:$0xf]
        %v1624 = vld [vmem:[%s10 + $0xc] sm:$0xf]
        %v1625 = vpack.c.bf16 %v1620, %v1620
        %v1626 = vld [vmem:[%s11] sm:$0x1]
        %v1628 = vlaneseq
        %v1629 = vshrl.u32 %v1628, 7
        %v1630 = vsub.s32 0, %v1629
        %v1631 = vrot.slane %v1626, %v1630
        %v1637 = vunpack.c.l.b16 %v1621
        %v1638 = vunpack.c.l.b16 %v1622
        %v1639 = vunpack.c.l.b16 %v1623
        %v1640 = vunpack.c.l.b16 %v1624
        %v1641 = vpack.c.b16 %v1638, %v1637
        %v1642 = vpack.c.b16 %v1640, %v1639
        %v1646 = vsel %vm786, %v1625, 0
        %1648 = vmatprep.subr.bf16.mxu0 0
        %1649 = vmatpush1.bf16.msra.mxu0 %v1641
        %1650 = vmatprep.subr.bf16.mxu0 0
        %1651 = vmatpush1.bf16.msra.mxu0 %v1642
        %1652 = vmatprep.subr.bf16.mxu0 0
        %1653 = vmatpush1.bf16.msra.mxu0 0
        %1654 = vmatprep.subr.bf16.mxu0 0
        %1655 = vmatpush1.bf16.msra.mxu0 0
        %1656 = vmatprep.subr.bf16.mxu0 0
        %1657 = vmatpush1.bf16.msra.mxu0 0
        %1658 = vmatprep.subr.bf16.mxu0 0
        %1659 = vmatpush1.bf16.msra.mxu0 0
        %1660 = vmatprep.subr.bf16.mxu0 0
        %1661 = vmatpush1.bf16.msra.mxu0 0
        %1662 = vmatprep.subr.bf16.mxu0 0
        %1663 = vmatpush1.bf16.msra.mxu0 0
        %1664 = vmatprep.subr.bf16.mxu0 0
        %1665 = vmatpush1.bf16.msra.mxu0 0
        %1666 = vmatprep.subr.bf16.mxu0 0
        %1667 = vmatpush1.bf16.msra.mxu0 0
        %1668 = vmatprep.subr.bf16.mxu0 0
        %1669 = vmatpush1.bf16.msra.mxu0 0
        %1670 = vmatprep.subr.bf16.mxu0 0
        %1671 = vmatpush1.bf16.msra.mxu0 0
        %1672 = vmatprep.subr.bf16.mxu0 0
        %1673 = vmatpush1.bf16.msra.mxu0 0
        %1674 = vmatprep.subr.bf16.mxu0 0
        %1675 = vmatpush1.bf16.msra.mxu0 0
        %1676 = vmatprep.subr.bf16.mxu0 0
        %1677 = vmatpush1.bf16.msra.mxu0 0
        %1678 = vmatprep.subr.bf16.mxu0 0
        %1679 = vmatpush1.bf16.msra.mxu0 0
        %1680 = vmatprep.mubr.bf16.mxu0 0
        %1681 = vmatmul.mubr.bf16.gmra.mrb[0].mxu0 %v1646
        %v1682 = vpop.f32.mrb[0].mxu0
        %v1683 = vadd.f32 %v1631, %v1682
        %v1684 = vpop.f32.mrb[0].mxu0
        %v1685 = vpop.f32.mrb[0].mxu0
        %v1686 = vpop.f32.mrb[0].mxu0
        %1687 = vdwg.mxu0
        %v1688 = vmax.f32 %v1683, 0.0
        %v1689 = vld [vmem:[%s12] sm:$0xf]
        %v1690 = vld [vmem:[%s12 + $0x4] sm:$0xf]
        %v1691 = vld [vmem:[%s12 + $0x8] sm:$0xf]
        %v1692 = vld [vmem:[%s12 + $0xc] sm:$0xf]
        %v1693 = vld [vmem:[%s12 + $0x10] sm:$0xf]
        %v1694 = vld [vmem:[%s12 + $0x14] sm:$0xf]
        %v1695 = vld [vmem:[%s12 + $0x18] sm:$0xf]
        %v1696 = vld [vmem:[%s12 + $0x1c] sm:$0xf]
        %v1697 = vpack.c.bf16 %v1688, %v1688
        %v1698 = vld [vmem:[%s13] sm:$0x1]
        %v1700 = vlaneseq
        %v1701 = vshrl.u32 %v1700, 7
        %v1702 = vsub.s32 0, %v1701
        %v1703 = vrot.slane %v1698, %v1702
        %v1713 = vunpack.c.l.b16 %v1689
        %v1714 = vunpack.c.l.b16 %v1690
        %v1715 = vunpack.c.l.b16 %v1691
        %v1716 = vunpack.c.l.b16 %v1692
        %v1717 = vunpack.c.l.b16 %v1693
        %v1718 = vunpack.c.l.b16 %v1694
        %v1719 = vunpack.c.l.b16 %v1695
        %v1720 = vunpack.c.l.b16 %v1696
        %v1721 = vpack.c.b16 %v1714, %v1713
        %v1722 = vpack.c.b16 %v1716, %v1715
        %v1723 = vpack.c.b16 %v1718, %v1717
        %v1724 = vpack.c.b16 %v1720, %v1719
        %vm1729 = vcmask 523264
        %v1731 = vsel %vm1729, %v1697, 0
        %1733 = vmatprep.subr.bf16.mxu0 0
        %1734 = vmatpush1.bf16.msra.mxu0 %v1721
        %1735 = vmatprep.subr.bf16.mxu0 0
        %1736 = vmatpush1.bf16.msra.mxu0 %v1722
        %1737 = vmatprep.subr.bf16.mxu0 0
        %1738 = vmatpush1.bf16.msra.mxu0 %v1723
        %1739 = vmatprep.subr.bf16.mxu0 0
        %1740 = vmatpush1.bf16.msra.mxu0 %v1724
        %1741 = vmatprep.subr.bf16.mxu0 0
        %1742 = vmatpush1.bf16.msra.mxu0 0
        %1743 = vmatprep.subr.bf16.mxu0 0
        %1744 = vmatpush1.bf16.msra.mxu0 0
        %1745 = vmatprep.subr.bf16.mxu0 0
        %1746 = vmatpush1.bf16.msra.mxu0 0
        %1747 = vmatprep.subr.bf16.mxu0 0
        %1748 = vmatpush1.bf16.msra.mxu0 0
        %1749 = vmatprep.subr.bf16.mxu0 0
        %1750 = vmatpush1.bf16.msra.mxu0 0
        %1751 = vmatprep.subr.bf16.mxu0 0
        %1752 = vmatpush1.bf16.msra.mxu0 0
        %1753 = vmatprep.subr.bf16.mxu0 0
        %1754 = vmatpush1.bf16.msra.mxu0 0
        %1755 = vmatprep.subr.bf16.mxu0 0
        %1756 = vmatpush1.bf16.msra.mxu0 0
        %1757 = vmatprep.subr.bf16.mxu0 0
        %1758 = vmatpush1.bf16.msra.mxu0 0
        %1759 = vmatprep.subr.bf16.mxu0 0
        %1760 = vmatpush1.bf16.msra.mxu0 0
        %1761 = vmatprep.subr.bf16.mxu0 0
        %1762 = vmatpush1.bf16.msra.mxu0 0
        %1763 = vmatprep.subr.bf16.mxu0 0
        %1764 = vmatpush1.bf16.msra.mxu0 0
        %1765 = vmatprep.mubr.bf16.mxu0 0
        %1766 = vmatmul.mubr.bf16.gmra.mrb[0].mxu0 %v1731
        %v1767 = vpop.f32.mrb[0].mxu0
        %v1768 = vadd.f32 %v1703, %v1767
        %v1769 = vpop.f32.mrb[0].mxu0
        %v1770 = vpop.f32.mrb[0].mxu0
        %v1771 = vpop.f32.mrb[0].mxu0
        %1772 = vdwg.mxu0
        %v1773 = vadd.f32 %v1620, %v1768
        %v1774 = vld [vmem:[%s14] sm:$0x1]
        %v1775 = vld [vmem:[#allocation6] sm:$0x1]
        %v1776 = vsel %vm1592, %v1773, 0.0
        %1777 = vadd.xlane.f32.xlu0 %v1776
        %v1778 = vpop.xlane.xlu0 %1777
        %v1779 = vmul.f32 %v1778, %v1596
        %v1780 = vsub.f32 %v1773, %v1779
        %v1781 = vmul.f32 %v1780, %v1780
        %v1782 = vsel %vm1592, %v1781, 0.0
        %1783 = vadd.xlane.f32.xlu0 %v1782
        %v1784 = vpop.xlane.xlu0 %1783
        %v1785 = vmul.f32 %v1784, %v1596
        %v1786 = vadd.f32 %v1785, 1e-05
        %v1787 = vrsqrt.pop %v1786
        %v1788 = vmul.f32 %v1780, %v1787
        %v1790 = vlaneseq
        %v1791 = vshrl.u32 %v1790, 7
        %v1792 = vsub.s32 0, %v1791
        %v1793 = vrot.slane %v1774, %v1792
        %v1795 = vmul.f32 %v1788, %v1793
        %v1797 = vlaneseq
        %v1798 = vshrl.u32 %v1797, 7
        %v1799 = vsub.s32 0, %v1798
        %v1800 = vrot.slane %v1775, %v1799
        %v1802 = vadd.f32 %v1795, %v1800
        %s1803 = scalar_lea.vmem %s4, 16
        %v1804 = vld [vmem:[%s1803] sm:$0xf]
        %v1805 = vld [vmem:[%s1803 + $0x4] sm:$0xf]
        %v1806 = vld [vmem:[%s1803 + $0x8] sm:$0xf]
        %v1807 = vld [vmem:[%s1803 + $0xc] sm:$0xf]
        %v1808 = vpack.c.bf16 %v1802, %v1802
        %s1809 = scalar_lea.vmem %s5, 1
        %v1810 = vld [vmem:[%s1809] sm:$0x1]
        %v1812 = vlaneseq
        %v1813 = vshrl.u32 %v1812, 7
        %v1814 = vsub.s32 0, %v1813
        %v1815 = vrot.slane %v1810, %v1814
        %v1821 = vunpack.c.l.b16 %v1804
        %v1822 = vunpack.c.l.b16 %v1805
        %v1823 = vunpack.c.l.b16 %v1806
        %v1824 = vunpack.c.l.b16 %v1807
        %v1825 = vpack.c.b16 %v1822, %v1821
        %v1826 = vpack.c.b16 %v1824, %v1823
        %v1830 = vsel %vm786, %v1808, 0
        %1832 = vmatprep.subr.bf16.mxu0 0
        %1833 = vmatpush1.bf16.msra.mxu0 %v1825
        %1834 = vmatprep.subr.bf16.mxu0 0
        %1835 = vmatpush1.bf16.msra.mxu0 %v1826
        %1836 = vmatprep.subr.bf16.mxu0 0
        %1837 = vmatpush1.bf16.msra.mxu0 0
        %1838 = vmatprep.subr.bf16.mxu0 0
        %1839 = vmatpush1.bf16.msra.mxu0 0
        %1840 = vmatprep.subr.bf16.mxu0 0
        %1841 = vmatpush1.bf16.msra.mxu0 0
        %1842 = vmatprep.subr.bf16.mxu0 0
        %1843 = vmatpush1.bf16.msra.mxu0 0
        %1844 = vmatprep.subr.bf16.mxu0 0
        %1845 = vmatpush1.bf16.msra.mxu0 0
        %1846 = vmatprep.subr.bf16.mxu0 0
        %1847 = vmatpush1.bf16.msra.mxu0 0
        %1848 = vmatprep.subr.bf16.mxu0 0
        %1849 = vmatpush1.bf16.msra.mxu0 0
        %1850 = vmatprep.subr.bf16.mxu0 0
        %1851 = vmatpush1.bf16.msra.mxu0 0
        %1852 = vmatprep.subr.bf16.mxu0 0
        %1853 = vmatpush1.bf16.msra.mxu0 0
        %1854 = vmatprep.subr.bf16.mxu0 0
        %1855 = vmatpush1.bf16.msra.mxu0 0
        %1856 = vmatprep.subr.bf16.mxu0 0
        %1857 = vmatpush1.bf16.msra.mxu0 0
        %1858 = vmatprep.subr.bf16.mxu0 0
        %1859 = vmatpush1.bf16.msra.mxu0 0
        %1860 = vmatprep.subr.bf16.mxu0 0
        %1861 = vmatpush1.bf16.msra.mxu0 0
        %1862 = vmatprep.subr.bf16.mxu0 0
        %1863 = vmatpush1.bf16.msra.mxu0 0
        %1864 = vmatprep.mubr.bf16.mxu0 0
        %1865 = vmatmul.mubr.bf16.gmra.mrb[0].mxu0 %v1830
        %v1866 = vpop.f32.mrb[0].mxu0
        %v1867 = vadd.f32 %v1815, %v1866
        %v1868 = vpop.f32.mrb[0].mxu0
        %v1869 = vpop.f32.mrb[0].mxu0
        %v1870 = vpop.f32.mrb[0].mxu0
        %1871 = vdwg.mxu0
        %1873 = vrot.lane.b32.xlu0 %v1867, 96
        %v1874 = vpop.permute.xlu0 %1873
        %v1875 = vsel %vm833, %v1867, 0
        %v1877 = vsel %vm833, %v1874, 0
        %1879 = vmatprep.subr.mxu0 0.0
        %1880 = vmatpush1.xpose.msra.mxu0 %v1877
        %1881 = vmatprep.subr.mxu0 0.0
        %1882 = vmatpush1.xpose.msra.mxu0 0.0
        %1883 = vmatprep.subr.mxu0 0.0
        %1884 = vmatpush1.xpose.msra.mxu0 0.0
        %1885 = vmatprep.subr.mxu0 0.0
        %1886 = vmatpush1.xpose.msra.mxu0 0.0
        %1887 = vmatprep.subr.mxu0 0.0
        %1888 = vmatpush1.xpose.msra.mxu0 0.0
        %1889 = vmatprep.subr.mxu0 0.0
        %1890 = vmatpush1.xpose.msra.mxu0 0.0
        %1891 = vmatprep.subr.mxu0 0.0
        %1892 = vmatpush1.xpose.msra.mxu0 0.0
        %1893 = vmatprep.subr.mxu0 0.0
        %1894 = vmatpush1.xpose.msra.mxu0 0.0
        %1895 = vmatprep.subr.mxu0 0.0
        %1896 = vmatpush1.xpose.msra.mxu0 0.0
        %1897 = vmatprep.subr.mxu0 0.0
        %1898 = vmatpush1.xpose.msra.mxu0 0.0
        %1899 = vmatprep.subr.mxu0 0.0
        %1900 = vmatpush1.xpose.msra.mxu0 0.0
        %1901 = vmatprep.subr.mxu0 0.0
        %1902 = vmatpush1.xpose.msra.mxu0 0.0
        %1903 = vmatprep.subr.mxu0 0.0
        %1904 = vmatpush1.xpose.msra.mxu0 0.0
        %1905 = vmatprep.subr.mxu0 0.0
        %1906 = vmatpush1.xpose.msra.mxu0 0.0
        %1907 = vmatprep.subr.mxu0 0.0
        %1908 = vmatpush1.xpose.msra.mxu0 0.0
        %1909 = vmatprep.subr.mxu0 0.0
        %1910 = vmatpush1.xpose.msra.mxu0 0.0
        %1911 = vmatprep.subr.mxu0 0.0
        %1912 = vmatpush1.xpose.msra.mxu0 0.0
        %1913 = vmatprep.subr.mxu0 0.0
        %1914 = vmatpush1.xpose.msra.mxu0 0.0
        %1915 = vmatprep.subr.mxu0 0.0
        %1916 = vmatpush1.xpose.msra.mxu0 0.0
        %1917 = vmatprep.subr.mxu0 0.0
        %1918 = vmatpush1.xpose.msra.mxu0 0.0
        %1919 = vmatprep.subr.mxu0 0.0
        %1920 = vmatpush1.xpose.msra.mxu0 0.0
        %1921 = vmatprep.subr.mxu0 0.0
        %1922 = vmatpush1.xpose.msra.mxu0 0.0
        %1923 = vmatprep.subr.mxu0 0.0
        %1924 = vmatpush1.xpose.msra.mxu0 0.0
        %1925 = vmatprep.subr.mxu0 0.0
        %1926 = vmatpush1.xpose.msra.mxu0 0.0
        %1927 = vmatprep.subr.mxu0 0.0
        %1928 = vmatpush1.xpose.msra.mxu0 0.0
        %1929 = vmatprep.subr.mxu0 0.0
        %1930 = vmatpush1.xpose.msra.mxu0 0.0
        %1931 = vmatprep.subr.mxu0 0.0
        %1932 = vmatpush1.xpose.msra.mxu0 0.0
        %1933 = vmatprep.subr.mxu0 0.0
        %1934 = vmatpush1.xpose.msra.mxu0 0.0
        %1935 = vmatprep.subr.mxu0 0.0
        %1936 = vmatpush1.xpose.msra.mxu0 0.0
        %1937 = vmatprep.subr.mxu0 0.0
        %1938 = vmatpush1.xpose.msra.mxu0 0.0
        %1939 = vmatprep.subr.mxu0 0.0
        %1940 = vmatpush1.xpose.msra.mxu0 0.0
        %1941 = vmatprep.subr.mxu0 0.0
        %1942 = vmatpush1.xpose.msra.mxu0 0.0
        %1943 = vmatprep.mubr.f32.mxu0 0.0
        %1944 = vmatmul.mubr.f32.gmra.mrb[0].mxu0 %v1875
        %v1945 = vpop.f32.mrb[0].mxu0
        %v1946 = vadd.f32 0.0, %v1945
        %v1947 = vpop.f32.mrb[0].mxu0
        %1948 = vdwg.mxu0
        %v1949 = vmul.f32 %v1946, 0.35355338
        %v1950 = vsel %vm909, %v1949, -inf
        %1951 = vmax.xlane.f32.xlu0 %v1950
        %v1952 = vpop.xlane.xlu0 %1951
        %v1953 = vsub.f32 %v1949, %v1952
        %v1954 = vmul.f32 %v1953, 1.442695
        %v1955 = vpow.pop %v1954
        %v1956 = vsel %vm909, %v1955, 0.0
        %1957 = vadd.xlane.f32.xlu0 %v1956
        %v1958 = vpop.xlane.xlu0 %1957
        %v1959 = vrcp.pop %v1958
        %v1960 = vmul.f32 %v1955, %v1959
        %1961 = vrot.lane.b32.xlu0 %v1867, 64
        %v1962 = vpop.permute.xlu0 %1961
        %v1964 = vsel %vm923, %v1960, 0
        %v1966 = vsel %vm927, %v1962, 0
        %1968 = vmatprep.subr.mxu0 0.0
        %1969 = vmatpush1.msra.mxu0 %v1966
        %1970 = vmatprep.subr.mxu0 0.0
        %1971 = vmatpush1.msra.mxu0 0.0
        %1972 = vmatprep.subr.mxu0 0.0
        %1973 = vmatpush1.msra.mxu0 0.0
        %1974 = vmatprep.subr.mxu0 0.0
        %1975 = vmatpush1.msra.mxu0 0.0
        %1976 = vmatprep.subr.mxu0 0.0
        %1977 = vmatpush1.msra.mxu0 0.0
        %1978 = vmatprep.subr.mxu0 0.0
        %1979 = vmatpush1.msra.mxu0 0.0
        %1980 = vmatprep.subr.mxu0 0.0
        %1981 = vmatpush1.msra.mxu0 0.0
        %1982 = vmatprep.subr.mxu0 0.0
        %1983 = vmatpush1.msra.mxu0 0.0
        %1984 = vmatprep.subr.mxu0 0.0
        %1985 = vmatpush1.msra.mxu0 0.0
        %1986 = vmatprep.subr.mxu0 0.0
        %1987 = vmatpush1.msra.mxu0 0.0
        %1988 = vmatprep.subr.mxu0 0.0
        %1989 = vmatpush1.msra.mxu0 0.0
        %1990 = vmatprep.subr.mxu0 0.0
        %1991 = vmatpush1.msra.mxu0 0.0
        %1992 = vmatprep.subr.mxu0 0.0
        %1993 = vmatpush1.msra.mxu0 0.0
        %1994 = vmatprep.subr.mxu0 0.0
        %1995 = vmatpush1.msra.mxu0 0.0
        %1996 = vmatprep.subr.mxu0 0.0
        %1997 = vmatpush1.msra.mxu0 0.0
        %1998 = vmatprep.subr.mxu0 0.0
        %1999 = vmatpush1.msra.mxu0 0.0
        %2000 = vmatprep.subr.mxu0 0.0
        %2001 = vmatpush1.msra.mxu0 0.0
        %2002 = vmatprep.subr.mxu0 0.0
        %2003 = vmatpush1.msra.mxu0 0.0
        %2004 = vmatprep.subr.mxu0 0.0
        %2005 = vmatpush1.msra.mxu0 0.0
        %2006 = vmatprep.subr.mxu0 0.0
        %2007 = vmatpush1.msra.mxu0 0.0
        %2008 = vmatprep.subr.mxu0 0.0
        %2009 = vmatpush1.msra.mxu0 0.0
        %2010 = vmatprep.subr.mxu0 0.0
        %2011 = vmatpush1.msra.mxu0 0.0
        %2012 = vmatprep.subr.mxu0 0.0
        %2013 = vmatpush1.msra.mxu0 0.0
        %2014 = vmatprep.subr.mxu0 0.0
        %2015 = vmatpush1.msra.mxu0 0.0
        %2016 = vmatprep.subr.mxu0 0.0
        %2017 = vmatpush1.msra.mxu0 0.0
        %2018 = vmatprep.subr.mxu0 0.0
        %2019 = vmatpush1.msra.mxu0 0.0
        %2020 = vmatprep.subr.mxu0 0.0
        %2021 = vmatpush1.msra.mxu0 0.0
        %2022 = vmatprep.subr.mxu0 0.0
        %2023 = vmatpush1.msra.mxu0 0.0
        %2024 = vmatprep.subr.mxu0 0.0
        %2025 = vmatpush1.msra.mxu0 0.0
        %2026 = vmatprep.subr.mxu0 0.0
        %2027 = vmatpush1.msra.mxu0 0.0
        %2028 = vmatprep.subr.mxu0 0.0
        %2029 = vmatpush1.msra.mxu0 0.0
        %2030 = vmatprep.subr.mxu0 0.0
        %2031 = vmatpush1.msra.mxu0 0.0
        %2032 = vmatprep.mubr.f32.mxu0 0.0
        %2033 = vmatmul.mubr.f32.gmra.mrb[0].mxu0 %v1964
        %v2034 = vpop.f32.mrb[0].mxu0
        %v2035 = vadd.f32 0.0, %v2034
        %v2036 = vpop.f32.mrb[0].mxu0
        %2037 = vdwg.mxu0
        %2038 = vst.msk [vmem:[#allocation2] sm:$0x7f] %vm1000, %v2035
        %2039 = vrot.lane.b32.xlu0 %v1867, 120
        %v2040 = vpop.permute.xlu0 %2039
        %2041 = vrot.lane.b32.xlu0 %v1867, 88
        %v2042 = vpop.permute.xlu0 %2041
        %v2043 = vsel %vm833, %v2040, 0
        %v2045 = vsel %vm833, %v2042, 0
        %2047 = vmatprep.subr.mxu0 0.0
        %2048 = vmatpush1.xpose.msra.mxu0 %v2045
        %2049 = vmatprep.subr.mxu0 0.0
        %2050 = vmatpush1.xpose.msra.mxu0 0.0
        %2051 = vmatprep.subr.mxu0 0.0
        %2052 = vmatpush1.xpose.msra.mxu0 0.0
        %2053 = vmatprep.subr.mxu0 0.0
        %2054 = vmatpush1.xpose.msra.mxu0 0.0
        %2055 = vmatprep.subr.mxu0 0.0
        %2056 = vmatpush1.xpose.msra.mxu0 0.0
        %2057 = vmatprep.subr.mxu0 0.0
        %2058 = vmatpush1.xpose.msra.mxu0 0.0
        %2059 = vmatprep.subr.mxu0 0.0
        %2060 = vmatpush1.xpose.msra.mxu0 0.0
        %2061 = vmatprep.subr.mxu0 0.0
        %2062 = vmatpush1.xpose.msra.mxu0 0.0
        %2063 = vmatprep.subr.mxu0 0.0
        %2064 = vmatpush1.xpose.msra.mxu0 0.0
        %2065 = vmatprep.subr.mxu0 0.0
        %2066 = vmatpush1.xpose.msra.mxu0 0.0
        %2067 = vmatprep.subr.mxu0 0.0
        %2068 = vmatpush1.xpose.msra.mxu0 0.0
        %2069 = vmatprep.subr.mxu0 0.0
        %2070 = vmatpush1.xpose.msra.mxu0 0.0
        %2071 = vmatprep.subr.mxu0 0.0
        %2072 = vmatpush1.xpose.msra.mxu0 0.0
        %2073 = vmatprep.subr.mxu0 0.0
        %2074 = vmatpush1.xpose.msra.mxu0 0.0
        %2075 = vmatprep.subr.mxu0 0.0
        %2076 = vmatpush1.xpose.msra.mxu0 0.0
        %2077 = vmatprep.subr.mxu0 0.0
        %2078 = vmatpush1.xpose.msra.mxu0 0.0
        %2079 = vmatprep.subr.mxu0 0.0
        %2080 = vmatpush1.xpose.msra.mxu0 0.0
        %2081 = vmatprep.subr.mxu0 0.0
        %2082 = vmatpush1.xpose.msra.mxu0 0.0
        %2083 = vmatprep.subr.mxu0 0.0
        %2084 = vmatpush1.xpose.msra.mxu0 0.0
        %2085 = vmatprep.subr.mxu0 0.0
        %2086 = vmatpush1.xpose.msra.mxu0 0.0
        %2087 = vmatprep.subr.mxu0 0.0
        %2088 = vmatpush1.xpose.msra.mxu0 0.0
        %2089 = vmatprep.subr.mxu0 0.0
        %2090 = vmatpush1.xpose.msra.mxu0 0.0
        %2091 = vmatprep.subr.mxu0 0.0
        %2092 = vmatpush1.xpose.msra.mxu0 0.0
        %2093 = vmatprep.subr.mxu0 0.0
        %2094 = vmatpush1.xpose.msra.mxu0 0.0
        %2095 = vmatprep.subr.mxu0 0.0
        %2096 = vmatpush1.xpose.msra.mxu0 0.0
        %2097 = vmatprep.subr.mxu0 0.0
        %2098 = vmatpush1.xpose.msra.mxu0 0.0
        %2099 = vmatprep.subr.mxu0 0.0
        %2100 = vmatpush1.xpose.msra.mxu0 0.0
        %2101 = vmatprep.subr.mxu0 0.0
        %2102 = vmatpush1.xpose.msra.mxu0 0.0
        %2103 = vmatprep.subr.mxu0 0.0
        %2104 = vmatpush1.xpose.msra.mxu0 0.0
        %2105 = vmatprep.subr.mxu0 0.0
        %2106 = vmatpush1.xpose.msra.mxu0 0.0
        %2107 = vmatprep.subr.mxu0 0.0
        %2108 = vmatpush1.xpose.msra.mxu0 0.0
        %2109 = vmatprep.subr.mxu0 0.0
        %2110 = vmatpush1.xpose.msra.mxu0 0.0
        %2111 = vmatprep.mubr.f32.mxu0 0.0
        %2112 = vmatmul.mubr.f32.gmra.mrb[0].mxu0 %v2043
        %v2113 = vpop.f32.mrb[0].mxu0
        %v2114 = vadd.f32 0.0, %v2113
        %v2115 = vpop.f32.mrb[0].mxu0
        %2116 = vdwg.mxu0
        %v2117 = vmul.f32 %v2114, 0.35355338
        %v2118 = vsel %vm909, %v2117, -inf
        %2119 = vmax.xlane.f32.xlu0 %v2118
        %v2120 = vpop.xlane.xlu0 %2119
        %v2121 = vsub.f32 %v2117, %v2120
        %v2122 = vmul.f32 %v2121, 1.442695
        %v2123 = vpow.pop %v2122
        %v2124 = vsel %vm909, %v2123, 0.0
        %2125 = vadd.xlane.f32.xlu0 %v2124
        %v2126 = vpop.xlane.xlu0 %2125
        %v2127 = vrcp.pop %v2126
        %v2128 = vmul.f32 %v2123, %v2127
        %2129 = vrot.lane.b32.xlu0 %v1867, 56
        %v2130 = vpop.permute.xlu0 %2129
        %v2132 = vsel %vm923, %v2128, 0
        %v2134 = vsel %vm927, %v2130, 0
        %2136 = vmatprep.subr.mxu0 0.0
        %2137 = vmatpush1.msra.mxu0 %v2134
        %2138 = vmatprep.subr.mxu0 0.0
        %2139 = vmatpush1.msra.mxu0 0.0
        %2140 = vmatprep.subr.mxu0 0.0
        %2141 = vmatpush1.msra.mxu0 0.0
        %2142 = vmatprep.subr.mxu0 0.0
        %2143 = vmatpush1.msra.mxu0 0.0
        %2144 = vmatprep.subr.mxu0 0.0
        %2145 = vmatpush1.msra.mxu0 0.0
        %2146 = vmatprep.subr.mxu0 0.0
        %2147 = vmatpush1.msra.mxu0 0.0
        %2148 = vmatprep.subr.mxu0 0.0
        %2149 = vmatpush1.msra.mxu0 0.0
        %2150 = vmatprep.subr.mxu0 0.0
        %2151 = vmatpush1.msra.mxu0 0.0
        %2152 = vmatprep.subr.mxu0 0.0
        %2153 = vmatpush1.msra.mxu0 0.0
        %2154 = vmatprep.subr.mxu0 0.0
        %2155 = vmatpush1.msra.mxu0 0.0
        %2156 = vmatprep.subr.mxu0 0.0
        %2157 = vmatpush1.msra.mxu0 0.0
        %2158 = vmatprep.subr.mxu0 0.0
        %2159 = vmatpush1.msra.mxu0 0.0
        %2160 = vmatprep.subr.mxu0 0.0
        %2161 = vmatpush1.msra.mxu0 0.0
        %2162 = vmatprep.subr.mxu0 0.0
        %2163 = vmatpush1.msra.mxu0 0.0
        %2164 = vmatprep.subr.mxu0 0.0
        %2165 = vmatpush1.msra.mxu0 0.0
        %2166 = vmatprep.subr.mxu0 0.0
        %2167 = vmatpush1.msra.mxu0 0.0
        %2168 = vmatprep.subr.mxu0 0.0
        %2169 = vmatpush1.msra.mxu0 0.0
        %2170 = vmatprep.subr.mxu0 0.0
        %2171 = vmatpush1.msra.mxu0 0.0
        %2172 = vmatprep.subr.mxu0 0.0
        %2173 = vmatpush1.msra.mxu0 0.0
        %2174 = vmatprep.subr.mxu0 0.0
        %2175 = vmatpush1.msra.mxu0 0.0
        %2176 = vmatprep.subr.mxu0 0.0
        %2177 = vmatpush1.msra.mxu0 0.0
        %2178 = vmatprep.subr.mxu0 0.0
        %2179 = vmatpush1.msra.mxu0 0.0
        %2180 = vmatprep.subr.mxu0 0.0
        %2181 = vmatpush1.msra.mxu0 0.0
        %2182 = vmatprep.subr.mxu0 0.0
        %2183 = vmatpush1.msra.mxu0 0.0
        %2184 = vmatprep.subr.mxu0 0.0
        %2185 = vmatpush1.msra.mxu0 0.0
        %2186 = vmatprep.subr.mxu0 0.0
        %2187 = vmatpush1.msra.mxu0 0.0
        %2188 = vmatprep.subr.mxu0 0.0
        %2189 = vmatpush1.msra.mxu0 0.0
        %2190 = vmatprep.subr.mxu0 0.0
        %2191 = vmatpush1.msra.mxu0 0.0
        %2192 = vmatprep.subr.mxu0 0.0
        %2193 = vmatpush1.msra.mxu0 0.0
        %2194 = vmatprep.subr.mxu0 0.0
        %2195 = vmatpush1.msra.mxu0 0.0
        %2196 = vmatprep.subr.mxu0 0.0
        %2197 = vmatpush1.msra.mxu0 0.0
        %2198 = vmatprep.subr.mxu0 0.0
        %2199 = vmatpush1.msra.mxu0 0.0
        %2200 = vmatprep.mubr.f32.mxu0 0.0
        %2201 = vmatmul.mubr.f32.gmra.mrb[0].mxu0 %v2132
        %v2202 = vpop.f32.mrb[0].mxu0
        %v2203 = vadd.f32 0.0, %v2202
        %v2204 = vpop.f32.mrb[0].mxu0
        %2205 = vdwg.mxu0
        %2207 = vrot.lane.b32.xlu0 %v2203, 8
        %v2208 = vpop.permute.xlu0 %2207
        %2210 = vst.msk [vmem:[#allocation2] sm:$0x7f] %vm1173, %v2208
        %2211 = vrot.lane.b32.xlu0 %v1867, 112
        %v2212 = vpop.permute.xlu0 %2211
        %2213 = vrot.lane.b32.xlu0 %v1867, 80
        %v2214 = vpop.permute.xlu0 %2213
        %v2215 = vsel %vm833, %v2212, 0
        %v2217 = vsel %vm833, %v2214, 0
        %2219 = vmatprep.subr.mxu0 0.0
        %2220 = vmatpush1.xpose.msra.mxu0 %v2217
        %2221 = vmatprep.subr.mxu0 0.0
        %2222 = vmatpush1.xpose.msra.mxu0 0.0
        %2223 = vmatprep.subr.mxu0 0.0
        %2224 = vmatpush1.xpose.msra.mxu0 0.0
        %2225 = vmatprep.subr.mxu0 0.0
        %2226 = vmatpush1.xpose.msra.mxu0 0.0
        %2227 = vmatprep.subr.mxu0 0.0
        %2228 = vmatpush1.xpose.msra.mxu0 0.0
        %2229 = vmatprep.subr.mxu0 0.0
        %2230 = vmatpush1.xpose.msra.mxu0 0.0
        %2231 = vmatprep.subr.mxu0 0.0
        %2232 = vmatpush1.xpose.msra.mxu0 0.0
        %2233 = vmatprep.subr.mxu0 0.0
        %2234 = vmatpush1.xpose.msra.mxu0 0.0
        %2235 = vmatprep.subr.mxu0 0.0
        %2236 = vmatpush1.xpose.msra.mxu0 0.0
        %2237 = vmatprep.subr.mxu0 0.0
        %2238 = vmatpush1.xpose.msra.mxu0 0.0
        %2239 = vmatprep.subr.mxu0 0.0
        %2240 = vmatpush1.xpose.msra.mxu0 0.0
        %2241 = vmatprep.subr.mxu0 0.0
        %2242 = vmatpush1.xpose.msra.mxu0 0.0
        %2243 = vmatprep.subr.mxu0 0.0
        %2244 = vmatpush1.xpose.msra.mxu0 0.0
        %2245 = vmatprep.subr.mxu0 0.0
        %2246 = vmatpush1.xpose.msra.mxu0 0.0
        %2247 = vmatprep.subr.mxu0 0.0
        %2248 = vmatpush1.xpose.msra.mxu0 0.0
        %2249 = vmatprep.subr.mxu0 0.0
        %2250 = vmatpush1.xpose.msra.mxu0 0.0
        %2251 = vmatprep.subr.mxu0 0.0
        %2252 = vmatpush1.xpose.msra.mxu0 0.0
        %2253 = vmatprep.subr.mxu0 0.0
        %2254 = vmatpush1.xpose.msra.mxu0 0.0
        %2255 = vmatprep.subr.mxu0 0.0
        %2256 = vmatpush1.xpose.msra.mxu0 0.0
        %2257 = vmatprep.subr.mxu0 0.0
        %2258 = vmatpush1.xpose.msra.mxu0 0.0
        %2259 = vmatprep.subr.mxu0 0.0
        %2260 = vmatpush1.xpose.msra.mxu0 0.0
        %2261 = vmatprep.subr.mxu0 0.0
        %2262 = vmatpush1.xpose.msra.mxu0 0.0
        %2263 = vmatprep.subr.mxu0 0.0
        %2264 = vmatpush1.xpose.msra.mxu0 0.0
        %2265 = vmatprep.subr.mxu0 0.0
        %2266 = vmatpush1.xpose.msra.mxu0 0.0
        %2267 = vmatprep.subr.mxu0 0.0
        %2268 = vmatpush1.xpose.msra.mxu0 0.0
        %2269 = vmatprep.subr.mxu0 0.0
        %2270 = vmatpush1.xpose.msra.mxu0 0.0
        %2271 = vmatprep.subr.mxu0 0.0
        %2272 = vmatpush1.xpose.msra.mxu0 0.0
        %2273 = vmatprep.subr.mxu0 0.0
        %2274 = vmatpush1.xpose.msra.mxu0 0.0
        %2275 = vmatprep.subr.mxu0 0.0
        %2276 = vmatpush1.xpose.msra.mxu0 0.0
        %2277 = vmatprep.subr.mxu0 0.0
        %2278 = vmatpush1.xpose.msra.mxu0 0.0
        %2279 = vmatprep.subr.mxu0 0.0
        %2280 = vmatpush1.xpose.msra.mxu0 0.0
        %2281 = vmatprep.subr.mxu0 0.0
        %2282 = vmatpush1.xpose.msra.mxu0 0.0
        %2283 = vmatprep.mubr.f32.mxu0 0.0
        %2284 = vmatmul.mubr.f32.gmra.mrb[0].mxu0 %v2215
        %v2285 = vpop.f32.mrb[0].mxu0
        %v2286 = vadd.f32 0.0, %v2285
        %v2287 = vpop.f32.mrb[0].mxu0
        %2288 = vdwg.mxu0
        %v2289 = vmul.f32 %v2286, 0.35355338
        %v2290 = vsel %vm909, %v2289, -inf
        %2291 = vmax.xlane.f32.xlu0 %v2290
        %v2292 = vpop.xlane.xlu0 %2291
        %v2293 = vsub.f32 %v2289, %v2292
        %v2294 = vmul.f32 %v2293, 1.442695
        %v2295 = vpow.pop %v2294
        %v2296 = vsel %vm909, %v2295, 0.0
        %2297 = vadd.xlane.f32.xlu0 %v2296
        %v2298 = vpop.xlane.xlu0 %2297
        %v2299 = vrcp.pop %v2298
        %v2300 = vmul.f32 %v2295, %v2299
        %2301 = vrot.lane.b32.xlu0 %v1867, 48
        %v2302 = vpop.permute.xlu0 %2301
        %v2304 = vsel %vm923, %v2300, 0
        %v2306 = vsel %vm927, %v2302, 0
        %2308 = vmatprep.subr.mxu0 0.0
        %2309 = vmatpush1.msra.mxu0 %v2306
        %2310 = vmatprep.subr.mxu0 0.0
        %2311 = vmatpush1.msra.mxu0 0.0
        %2312 = vmatprep.subr.mxu0 0.0
        %2313 = vmatpush1.msra.mxu0 0.0
        %2314 = vmatprep.subr.mxu0 0.0
        %2315 = vmatpush1.msra.mxu0 0.0
        %2316 = vmatprep.subr.mxu0 0.0
        %2317 = vmatpush1.msra.mxu0 0.0
        %2318 = vmatprep.subr.mxu0 0.0
        %2319 = vmatpush1.msra.mxu0 0.0
        %2320 = vmatprep.subr.mxu0 0.0
        %2321 = vmatpush1.msra.mxu0 0.0
        %2322 = vmatprep.subr.mxu0 0.0
        %2323 = vmatpush1.msra.mxu0 0.0
        %2324 = vmatprep.subr.mxu0 0.0
        %2325 = vmatpush1.msra.mxu0 0.0
        %2326 = vmatprep.subr.mxu0 0.0
        %2327 = vmatpush1.msra.mxu0 0.0
        %2328 = vmatprep.subr.mxu0 0.0
        %2329 = vmatpush1.msra.mxu0 0.0
        %2330 = vmatprep.subr.mxu0 0.0
        %2331 = vmatpush1.msra.mxu0 0.0
        %2332 = vmatprep.subr.mxu0 0.0
        %2333 = vmatpush1.msra.mxu0 0.0
        %2334 = vmatprep.subr.mxu0 0.0
        %2335 = vmatpush1.msra.mxu0 0.0
        %2336 = vmatprep.subr.mxu0 0.0
        %2337 = vmatpush1.msra.mxu0 0.0
        %2338 = vmatprep.subr.mxu0 0.0
        %2339 = vmatpush1.msra.mxu0 0.0
        %2340 = vmatprep.subr.mxu0 0.0
        %2341 = vmatpush1.msra.mxu0 0.0
        %2342 = vmatprep.subr.mxu0 0.0
        %2343 = vmatpush1.msra.mxu0 0.0
        %2344 = vmatprep.subr.mxu0 0.0
        %2345 = vmatpush1.msra.mxu0 0.0
        %2346 = vmatprep.subr.mxu0 0.0
        %2347 = vmatpush1.msra.mxu0 0.0
        %2348 = vmatprep.subr.mxu0 0.0
        %2349 = vmatpush1.msra.mxu0 0.0
        %2350 = vmatprep.subr.mxu0 0.0
        %2351 = vmatpush1.msra.mxu0 0.0
        %2352 = vmatprep.subr.mxu0 0.0
        %2353 = vmatpush1.msra.mxu0 0.0
        %2354 = vmatprep.subr.mxu0 0.0
        %2355 = vmatpush1.msra.mxu0 0.0
        %2356 = vmatprep.subr.mxu0 0.0
        %2357 = vmatpush1.msra.mxu0 0.0
        %2358 = vmatprep.subr.mxu0 0.0
        %2359 = vmatpush1.msra.mxu0 0.0
        %2360 = vmatprep.subr.mxu0 0.0
        %2361 = vmatpush1.msra.mxu0 0.0
        %2362 = vmatprep.subr.mxu0 0.0
        %2363 = vmatpush1.msra.mxu0 0.0
        %2364 = vmatprep.subr.mxu0 0.0
        %2365 = vmatpush1.msra.mxu0 0.0
        %2366 = vmatprep.subr.mxu0 0.0
        %2367 = vmatpush1.msra.mxu0 0.0
        %2368 = vmatprep.subr.mxu0 0.0
        %2369 = vmatpush1.msra.mxu0 0.0
        %2370 = vmatprep.subr.mxu0 0.0
        %2371 = vmatpush1.msra.mxu0 0.0
        %2372 = vmatprep.mubr.f32.mxu0 0.0
        %2373 = vmatmul.mubr.f32.gmra.mrb[0].mxu0 %v2304
        %v2374 = vpop.f32.mrb[0].mxu0
        %v2375 = vadd.f32 0.0, %v2374
        %v2376 = vpop.f32.mrb[0].mxu0
        %2377 = vdwg.mxu0
        %2379 = vrot.lane.b32.xlu0 %v2375, 16
        %v2380 = vpop.permute.xlu0 %2379
        %2382 = vst.msk [vmem:[#allocation2] sm:$0x7f] %vm1346, %v2380
        %2383 = vrot.lane.b32.xlu0 %v1867, 104
        %v2384 = vpop.permute.xlu0 %2383
        %2385 = vrot.lane.b32.xlu0 %v1867, 72
        %v2386 = vpop.permute.xlu0 %2385
        %v2387 = vsel %vm833, %v2384, 0
        %v2389 = vsel %vm833, %v2386, 0
        %2391 = vmatprep.subr.mxu0 0.0
        %2392 = vmatpush1.xpose.msra.mxu0 %v2389
        %2393 = vmatprep.subr.mxu0 0.0
        %2394 = vmatpush1.xpose.msra.mxu0 0.0
        %2395 = vmatprep.subr.mxu0 0.0
        %2396 = vmatpush1.xpose.msra.mxu0 0.0
        %2397 = vmatprep.subr.mxu0 0.0
        %2398 = vmatpush1.xpose.msra.mxu0 0.0
        %2399 = vmatprep.subr.mxu0 0.0
        %2400 = vmatpush1.xpose.msra.mxu0 0.0
        %2401 = vmatprep.subr.mxu0 0.0
        %2402 = vmatpush1.xpose.msra.mxu0 0.0
        %2403 = vmatprep.subr.mxu0 0.0
        %2404 = vmatpush1.xpose.msra.mxu0 0.0
        %2405 = vmatprep.subr.mxu0 0.0
        %2406 = vmatpush1.xpose.msra.mxu0 0.0
        %2407 = vmatprep.subr.mxu0 0.0
        %2408 = vmatpush1.xpose.msra.mxu0 0.0
        %2409 = vmatprep.subr.mxu0 0.0
        %2410 = vmatpush1.xpose.msra.mxu0 0.0
        %2411 = vmatprep.subr.mxu0 0.0
        %2412 = vmatpush1.xpose.msra.mxu0 0.0
        %2413 = vmatprep.subr.mxu0 0.0
        %2414 = vmatpush1.xpose.msra.mxu0 0.0
        %2415 = vmatprep.subr.mxu0 0.0
        %2416 = vmatpush1.xpose.msra.mxu0 0.0
        %2417 = vmatprep.subr.mxu0 0.0
        %2418 = vmatpush1.xpose.msra.mxu0 0.0
        %2419 = vmatprep.subr.mxu0 0.0
        %2420 = vmatpush1.xpose.msra.mxu0 0.0
        %2421 = vmatprep.subr.mxu0 0.0
        %2422 = vmatpush1.xpose.msra.mxu0 0.0
        %2423 = vmatprep.subr.mxu0 0.0
        %2424 = vmatpush1.xpose.msra.mxu0 0.0
        %2425 = vmatprep.subr.mxu0 0.0
        %2426 = vmatpush1.xpose.msra.mxu0 0.0
        %2427 = vmatprep.subr.mxu0 0.0
        %2428 = vmatpush1.xpose.msra.mxu0 0.0
        %2429 = vmatprep.subr.mxu0 0.0
        %2430 = vmatpush1.xpose.msra.mxu0 0.0
        %2431 = vmatprep.subr.mxu0 0.0
        %2432 = vmatpush1.xpose.msra.mxu0 0.0
        %2433 = vmatprep.subr.mxu0 0.0
        %2434 = vmatpush1.xpose.msra.mxu0 0.0
        %2435 = vmatprep.subr.mxu0 0.0
        %2436 = vmatpush1.xpose.msra.mxu0 0.0
        %2437 = vmatprep.subr.mxu0 0.0
        %2438 = vmatpush1.xpose.msra.mxu0 0.0
        %2439 = vmatprep.subr.mxu0 0.0
        %2440 = vmatpush1.xpose.msra.mxu0 0.0
        %2441 = vmatprep.subr.mxu0 0.0
        %2442 = vmatpush1.xpose.msra.mxu0 0.0
        %2443 = vmatprep.subr.mxu0 0.0
        %2444 = vmatpush1.xpose.msra.mxu0 0.0
        %2445 = vmatprep.subr.mxu0 0.0
        %2446 = vmatpush1.xpose.msra.mxu0 0.0
        %2447 = vmatprep.subr.mxu0 0.0
        %2448 = vmatpush1.xpose.msra.mxu0 0.0
        %2449 = vmatprep.subr.mxu0 0.0
        %2450 = vmatpush1.xpose.msra.mxu0 0.0
        %2451 = vmatprep.subr.mxu0 0.0
        %2452 = vmatpush1.xpose.msra.mxu0 0.0
        %2453 = vmatprep.subr.mxu0 0.0
        %2454 = vmatpush1.xpose.msra.mxu0 0.0
        %2455 = vmatprep.mubr.f32.mxu0 0.0
        %2456 = vmatmul.mubr.f32.gmra.mrb[0].mxu0 %v2387
        %v2457 = vpop.f32.mrb[0].mxu0
        %v2458 = vadd.f32 0.0, %v2457
        %v2459 = vpop.f32.mrb[0].mxu0
        %2460 = vdwg.mxu0
        %v2461 = vmul.f32 %v2458, 0.35355338
        %v2462 = vsel %vm909, %v2461, -inf
        %2463 = vmax.xlane.f32.xlu0 %v2462
        %v2464 = vpop.xlane.xlu0 %2463
        %v2465 = vsub.f32 %v2461, %v2464
        %v2466 = vmul.f32 %v2465, 1.442695
        %v2467 = vpow.pop %v2466
        %v2468 = vsel %vm909, %v2467, 0.0
        %2469 = vadd.xlane.f32.xlu0 %v2468
        %v2470 = vpop.xlane.xlu0 %2469
        %v2471 = vrcp.pop %v2470
        %v2472 = vmul.f32 %v2467, %v2471
        %2473 = vrot.lane.b32.xlu0 %v1867, 40
        %v2474 = vpop.permute.xlu0 %2473
        %v2476 = vsel %vm923, %v2472, 0
        %v2478 = vsel %vm927, %v2474, 0
        %2480 = vmatprep.subr.mxu0 0.0
        %2481 = vmatpush1.msra.mxu0 %v2478
        %2482 = vmatprep.subr.mxu0 0.0
        %2483 = vmatpush1.msra.mxu0 0.0
        %2484 = vmatprep.subr.mxu0 0.0
        %2485 = vmatpush1.msra.mxu0 0.0
        %2486 = vmatprep.subr.mxu0 0.0
        %2487 = vmatpush1.msra.mxu0 0.0
        %2488 = vmatprep.subr.mxu0 0.0
        %2489 = vmatpush1.msra.mxu0 0.0
        %2490 = vmatprep.subr.mxu0 0.0
        %2491 = vmatpush1.msra.mxu0 0.0
        %2492 = vmatprep.subr.mxu0 0.0
        %2493 = vmatpush1.msra.mxu0 0.0
        %2494 = vmatprep.subr.mxu0 0.0
        %2495 = vmatpush1.msra.mxu0 0.0
        %2496 = vmatprep.subr.mxu0 0.0
        %2497 = vmatpush1.msra.mxu0 0.0
        %2498 = vmatprep.subr.mxu0 0.0
        %2499 = vmatpush1.msra.mxu0 0.0
        %2500 = vmatprep.subr.mxu0 0.0
        %2501 = vmatpush1.msra.mxu0 0.0
        %2502 = vmatprep.subr.mxu0 0.0
        %2503 = vmatpush1.msra.mxu0 0.0
        %2504 = vmatprep.subr.mxu0 0.0
        %2505 = vmatpush1.msra.mxu0 0.0
        %2506 = vmatprep.subr.mxu0 0.0
        %2507 = vmatpush1.msra.mxu0 0.0
        %2508 = vmatprep.subr.mxu0 0.0
        %2509 = vmatpush1.msra.mxu0 0.0
        %2510 = vmatprep.subr.mxu0 0.0
        %2511 = vmatpush1.msra.mxu0 0.0
        %2512 = vmatprep.subr.mxu0 0.0
        %2513 = vmatpush1.msra.mxu0 0.0
        %2514 = vmatprep.subr.mxu0 0.0
        %2515 = vmatpush1.msra.mxu0 0.0
        %2516 = vmatprep.subr.mxu0 0.0
        %2517 = vmatpush1.msra.mxu0 0.0
        %2518 = vmatprep.subr.mxu0 0.0
        %2519 = vmatpush1.msra.mxu0 0.0
        %2520 = vmatprep.subr.mxu0 0.0
        %2521 = vmatpush1.msra.mxu0 0.0
        %2522 = vmatprep.subr.mxu0 0.0
        %2523 = vmatpush1.msra.mxu0 0.0
        %2524 = vmatprep.subr.mxu0 0.0
        %2525 = vmatpush1.msra.mxu0 0.0
        %2526 = vmatprep.subr.mxu0 0.0
        %2527 = vmatpush1.msra.mxu0 0.0
        %2528 = vmatprep.subr.mxu0 0.0
        %2529 = vmatpush1.msra.mxu0 0.0
        %2530 = vmatprep.subr.mxu0 0.0
        %2531 = vmatpush1.msra.mxu0 0.0
        %2532 = vmatprep.subr.mxu0 0.0
        %2533 = vmatpush1.msra.mxu0 0.0
        %2534 = vmatprep.subr.mxu0 0.0
        %2535 = vmatpush1.msra.mxu0 0.0
        %2536 = vmatprep.subr.mxu0 0.0
        %2537 = vmatpush1.msra.mxu0 0.0
        %2538 = vmatprep.subr.mxu0 0.0
        %2539 = vmatpush1.msra.mxu0 0.0
        %2540 = vmatprep.subr.mxu0 0.0
        %2541 = vmatpush1.msra.mxu0 0.0
        %2542 = vmatprep.subr.mxu0 0.0
        %2543 = vmatpush1.msra.mxu0 0.0
        %2544 = vmatprep.mubr.f32.mxu0 0.0
        %2545 = vmatmul.mubr.f32.gmra.mrb[0].mxu0 %v2476
        %v2546 = vpop.f32.mrb[0].mxu0
        %v2547 = vadd.f32 0.0, %v2546
        %v2548 = vpop.f32.mrb[0].mxu0
        %2549 = vdwg.mxu0
        %2551 = vrot.lane.b32.xlu0 %v2547, 24
        %v2552 = vpop.permute.xlu0 %2551
        %2554 = vst.msk [vmem:[#allocation2] sm:$0x7f] %vm1519, %v2552
        %v2555 = vld [vmem:[#allocation2] sm:$0x7f]
        %s2556 = scalar_lea.vmem %s6, 16
        %v2557 = vld [vmem:[%s2556] sm:$0xf]
        %v2558 = vld [vmem:[%s2556 + $0x4] sm:$0xf]
        %v2559 = vld [vmem:[%s2556 + $0x8] sm:$0xf]
        %v2560 = vld [vmem:[%s2556 + $0xc] sm:$0xf]
        %v2561 = vpack.c.bf16 %v2555, %v2555
        %s2562 = scalar_lea.vmem %s7, 1
        %v2563 = vld [vmem:[%s2562] sm:$0x1]
        %v2565 = vlaneseq
        %v2566 = vshrl.u32 %v2565, 7
        %v2567 = vsub.s32 0, %v2566
        %v2568 = vrot.slane %v2563, %v2567
        %v2574 = vunpack.c.l.b16 %v2557
        %v2575 = vunpack.c.l.b16 %v2558
        %v2576 = vunpack.c.l.b16 %v2559
        %v2577 = vunpack.c.l.b16 %v2560
        %v2578 = vpack.c.b16 %v2575, %v2574
        %v2579 = vpack.c.b16 %v2577, %v2576
        %v2583 = vsel %vm786, %v2561, 0
        %2585 = vmatprep.subr.bf16.mxu0 0
        %2586 = vmatpush1.bf16.msra.mxu0 %v2578
        %2587 = vmatprep.subr.bf16.mxu0 0
        %2588 = vmatpush1.bf16.msra.mxu0 %v2579
        %2589 = vmatprep.subr.bf16.mxu0 0
        %2590 = vmatpush1.bf16.msra.mxu0 0
        %2591 = vmatprep.subr.bf16.mxu0 0
        %2592 = vmatpush1.bf16.msra.mxu0 0
        %2593 = vmatprep.subr.bf16.mxu0 0
        %2594 = vmatpush1.bf16.msra.mxu0 0
        %2595 = vmatprep.subr.bf16.mxu0 0
        %2596 = vmatpush1.bf16.msra.mxu0 0
        %2597 = vmatprep.subr.bf16.mxu0 0
        %2598 = vmatpush1.bf16.msra.mxu0 0
        %2599 = vmatprep.subr.bf16.mxu0 0
        %2600 = vmatpush1.bf16.msra.mxu0 0
        %2601 = vmatprep.subr.bf16.mxu0 0
        %2602 = vmatpush1.bf16.msra.mxu0 0
        %2603 = vmatprep.subr.bf16.mxu0 0
        %2604 = vmatpush1.bf16.msra.mxu0 0
        %2605 = vmatprep.subr.bf16.mxu0 0
        %2606 = vmatpush1.bf16.msra.mxu0 0
        %2607 = vmatprep.subr.bf16.mxu0 0
        %2608 = vmatpush1.bf16.msra.mxu0 0
        %2609 = vmatprep.subr.bf16.mxu0 0
        %2610 = vmatpush1.bf16.msra.mxu0 0
        %2611 = vmatprep.subr.bf16.mxu0 0
        %2612 = vmatpush1.bf16.msra.mxu0 0
        %2613 = vmatprep.subr.bf16.mxu0 0
        %2614 = vmatpush1.bf16.msra.mxu0 0
        %2615 = vmatprep.subr.bf16.mxu0 0
        %2616 = vmatpush1.bf16.msra.mxu0 0
        %2617 = vmatprep.mubr.bf16.mxu0 0
        %2618 = vmatmul.mubr.bf16.gmra.mrb[0].mxu0 %v2583
        %v2619 = vpop.f32.mrb[0].mxu0
        %v2620 = vadd.f32 %v2568, %v2619
        %v2621 = vpop.f32.mrb[0].mxu0
        %v2622 = vpop.f32.mrb[0].mxu0
        %v2623 = vpop.f32.mrb[0].mxu0
        %2624 = vdwg.mxu0
        %v2625 = vadd.f32 %v1802, %v2620
        %s2626 = scalar_lea.vmem %s8, 1
        %v2627 = vld [vmem:[%s2626] sm:$0x1]
        %s2628 = scalar_lea.vmem %s9, 1
        %v2629 = vld [vmem:[%s2628] sm:$0x1]
        %v2630 = vsel %vm1592, %v2625, 0.0
        %2631 = vadd.xlane.f32.xlu0 %v2630
        %v2632 = vpop.xlane.xlu0 %2631
        %v2633 = vmul.f32 %v2632, %v1596
        %v2634 = vsub.f32 %v2625, %v2633
        %v2635 = vmul.f32 %v2634, %v2634
        %v2636 = vsel %vm1592, %v2635, 0.0
        %2637 = vadd.xlane.f32.xlu0 %v2636
        %v2638 = vpop.xlane.xlu0 %2637
        %v2639 = vmul.f32 %v2638, %v1596
        %v2640 = vadd.f32 %v2639, 1e-05
        %v2641 = vrsqrt.pop %v2640
        %v2642 = vmul.f32 %v2634, %v2641
        %v2644 = vlaneseq
        %v2645 = vshrl.u32 %v2644, 7
        %v2646 = vsub.s32 0, %v2645
        %v2647 = vrot.slane %v2627, %v2646
        %v2649 = vmul.f32 %v2642, %v2647
        %v2651 = vlaneseq
        %v2652 = vshrl.u32 %v2651, 7
        %v2653 = vsub.s32 0, %v2652
        %v2654 = vrot.slane %v2629, %v2653
        %v2656 = vadd.f32 %v2649, %v2654
        %s2657 = scalar_lea.vmem %s10, 16
        %v2658 = vld [vmem:[%s2657] sm:$0xf]
        %v2659 = vld [vmem:[%s2657 + $0x4] sm:$0xf]
        %v2660 = vld [vmem:[%s2657 + $0x8] sm:$0xf]
        %v2661 = vld [vmem:[%s2657 + $0xc] sm:$0xf]
        %v2662 = vpack.c.bf16 %v2656, %v2656
        %s2663 = scalar_lea.vmem %s11, 1
        %v2664 = vld [vmem:[%s2663] sm:$0x1]
        %v2666 = vlaneseq
        %v2667 = vshrl.u32 %v2666, 7
        %v2668 = vsub.s32 0, %v2667
        %v2669 = vrot.slane %v2664, %v2668
        %v2675 = vunpack.c.l.b16 %v2658
        %v2676 = vunpack.c.l.b16 %v2659
        %v2677 = vunpack.c.l.b16 %v2660
        %v2678 = vunpack.c.l.b16 %v2661
        %v2679 = vpack.c.b16 %v2676, %v2675
        %v2680 = vpack.c.b16 %v2678, %v2677
        %v2684 = vsel %vm786, %v2662, 0
        %2686 = vmatprep.subr.bf16.mxu0 0
        %2687 = vmatpush1.bf16.msra.mxu0 %v2679
        %2688 = vmatprep.subr.bf16.mxu0 0
        %2689 = vmatpush1.bf16.msra.mxu0 %v2680
        %2690 = vmatprep.subr.bf16.mxu0 0
        %2691 = vmatpush1.bf16.msra.mxu0 0
        %2692 = vmatprep.subr.bf16.mxu0 0
        %2693 = vmatpush1.bf16.msra.mxu0 0
        %2694 = vmatprep.subr.bf16.mxu0 0
        %2695 = vmatpush1.bf16.msra.mxu0 0
        %2696 = vmatprep.subr.bf16.mxu0 0
        %2697 = vmatpush1.bf16.msra.mxu0 0
        %2698 = vmatprep.subr.bf16.mxu0 0
        %2699 = vmatpush1.bf16.msra.mxu0 0
        %2700 = vmatprep.subr.bf16.mxu0 0
        %2701 = vmatpush1.bf16.msra.mxu0 0
        %2702 = vmatprep.subr.bf16.mxu0 0
        %2703 = vmatpush1.bf16.msra.mxu0 0
        %2704 = vmatprep.subr.bf16.mxu0 0
        %2705 = vmatpush1.bf16.msra.mxu0 0
        %2706 = vmatprep.subr.bf16.mxu0 0
        %2707 = vmatpush1.bf16.msra.mxu0 0
        %2708 = vmatprep.subr.bf16.mxu0 0
        %2709 = vmatpush1.bf16.msra.mxu0 0
        %2710 = vmatprep.subr.bf16.mxu0 0
        %2711 = vmatpush1.bf16.msra.mxu0 0
        %2712 = vmatprep.subr.bf16.mxu0 0
        %2713 = vmatpush1.bf16.msra.mxu0 0
        %2714 = vmatprep.subr.bf16.mxu0 0
        %2715 = vmatpush1.bf16.msra.mxu0 0
        %2716 = vmatprep.subr.bf16.mxu0 0
        %2717 = vmatpush1.bf16.msra.mxu0 0
        %2718 = vmatprep.mubr.bf16.mxu0 0
        %2719 = vmatmul.mubr.bf16.gmra.mrb[0].mxu0 %v2684
        %v2720 = vpop.f32.mrb[0].mxu0
        %v2721 = vadd.f32 %v2669, %v2720
        %v2722 = vpop.f32.mrb[0].mxu0
        %v2723 = vpop.f32.mrb[0].mxu0
        %v2724 = vpop.f32.mrb[0].mxu0
        %2725 = vdwg.mxu0
        %v2726 = vmax.f32 %v2721, 0.0
        %s2727 = scalar_lea.vmem %s12, 32
        %v2728 = vld [vmem:[%s2727] sm:$0xf]
        %v2729 = vld [vmem:[%s2727 + $0x4] sm:$0xf]
        %v2730 = vld [vmem:[%s2727 + $0x8] sm:$0xf]
        %v2731 = vld [vmem:[%s2727 + $0xc] sm:$0xf]
        %v2732 = vld [vmem:[%s2727 + $0x10] sm:$0xf]
        %v2733 = vld [vmem:[%s2727 + $0x14] sm:$0xf]
        %v2734 = vld [vmem:[%s2727 + $0x18] sm:$0xf]
        %v2735 = vld [vmem:[%s2727 + $0x1c] sm:$0xf]
        %v2736 = vpack.c.bf16 %v2726, %v2726
        %s2737 = scalar_lea.vmem %s13, 1
        %v2738 = vld [vmem:[%s2737] sm:$0x1]
        %v2740 = vlaneseq
        %v2741 = vshrl.u32 %v2740, 7
        %v2742 = vsub.s32 0, %v2741
        %v2743 = vrot.slane %v2738, %v2742
        %v2753 = vunpack.c.l.b16 %v2728
        %v2754 = vunpack.c.l.b16 %v2729
        %v2755 = vunpack.c.l.b16 %v2730
        %v2756 = vunpack.c.l.b16 %v2731
        %v2757 = vunpack.c.l.b16 %v2732
        %v2758 = vunpack.c.l.b16 %v2733
        %v2759 = vunpack.c.l.b16 %v2734
        %v2760 = vunpack.c.l.b16 %v2735
        %v2761 = vpack.c.b16 %v2754, %v2753
        %v2762 = vpack.c.b16 %v2756, %v2755
        %v2763 = vpack.c.b16 %v2758, %v2757
        %v2764 = vpack.c.b16 %v2760, %v2759
        %v2770 = vsel %vm1729, %v2736, 0
        %2772 = vmatprep.subr.bf16.mxu0 0
        %2773 = vmatpush1.bf16.msra.mxu0 %v2761
        %2774 = vmatprep.subr.bf16.mxu0 0
        %2775 = vmatpush1.bf16.msra.mxu0 %v2762
        %2776 = vmatprep.subr.bf16.mxu0 0
        %2777 = vmatpush1.bf16.msra.mxu0 %v2763
        %2778 = vmatprep.subr.bf16.mxu0 0
        %2779 = vmatpush1.bf16.msra.mxu0 %v2764
        %2780 = vmatprep.subr.bf16.mxu0 0
        %2781 = vmatpush1.bf16.msra.mxu0 0
        %2782 = vmatprep.subr.bf16.mxu0 0
        %2783 = vmatpush1.bf16.msra.mxu0 0
        %2784 = vmatprep.subr.bf16.mxu0 0
        %2785 = vmatpush1.bf16.msra.mxu0 0
        %2786 = vmatprep.subr.bf16.mxu0 0
        %2787 = vmatpush1.bf16.msra.mxu0 0
        %2788 = vmatprep.subr.bf16.mxu0 0
        %2789 = vmatpush1.bf16.msra.mxu0 0
        %2790 = vmatprep.subr.bf16.mxu0 0
        %2791 = vmatpush1.bf16.msra.mxu0 0
        %2792 = vmatprep.subr.bf16.mxu0 0
        %2793 = vmatpush1.bf16.msra.mxu0 0
        %2794 = vmatprep.subr.bf16.mxu0 0
        %2795 = vmatpush1.bf16.msra.mxu0 0
        %2796 = vmatprep.subr.bf16.mxu0 0
        %2797 = vmatpush1.bf16.msra.mxu0 0
        %2798 = vmatprep.subr.bf16.mxu0 0
        %2799 = vmatpush1.bf16.msra.mxu0 0
        %2800 = vmatprep.subr.bf16.mxu0 0
        %2801 = vmatpush1.bf16.msra.mxu0 0
        %2802 = vmatprep.subr.bf16.mxu0 0
        %2803 = vmatpush1.bf16.msra.mxu0 0
        %2804 = vmatprep.mubr.bf16.mxu0 0
        %2805 = vmatmul.mubr.bf16.gmra.mrb[0].mxu0 %v2770
        %v2806 = vpop.f32.mrb[0].mxu0
        %v2807 = vadd.f32 %v2743, %v2806
        %v2808 = vpop.f32.mrb[0].mxu0
        %v2809 = vpop.f32.mrb[0].mxu0
        %v2810 = vpop.f32.mrb[0].mxu0
        %2811 = vdwg.mxu0
        %v2812 = vadd.f32 %v2656, %v2807
        %s2813 = scalar_lea.vmem %s14, 1
        %v2814 = vld [vmem:[%s2813] sm:$0x1]
        %s2815 = scalar_lea.vmem [#allocation6], 1
        %v2816 = vld [vmem:[%s2815] sm:$0x1]
        %v2817 = vsel %vm1592, %v2812, 0.0
        %2818 = vadd.xlane.f32.xlu0 %v2817
        %v2819 = vpop.xlane.xlu0 %2818
        %v2820 = vmul.f32 %v2819, %v1596
        %v2821 = vsub.f32 %v2812, %v2820
        %v2822 = vmul.f32 %v2821, %v2821
        %v2823 = vsel %vm1592, %v2822, 0.0
        %2824 = vadd.xlane.f32.xlu0 %v2823
        %v2825 = vpop.xlane.xlu0 %2824
        %v2826 = vmul.f32 %v2825, %v1596
        %v2827 = vadd.f32 %v2826, 1e-05
        %v2828 = vrsqrt.pop %v2827
        %v2829 = vmul.f32 %v2821, %v2828
        %v2831 = vlaneseq
        %v2832 = vshrl.u32 %v2831, 7
        %v2833 = vsub.s32 0, %v2832
        %v2834 = vrot.slane %v2814, %v2833
        %v2836 = vmul.f32 %v2829, %v2834
        %v2838 = vlaneseq
        %v2839 = vshrl.u32 %v2838, 7
        %v2840 = vsub.s32 0, %v2839
        %v2841 = vrot.slane %v2816, %v2840
        %v2843 = vadd.f32 %v2836, %v2841
        %v2844 = vld [vmem:[%s16] sm:$0x1]
        %v2845 = vld [vmem:[%s17] sm:$0x1]
        %v2846 = vsel %vm1592, %v2843, 0.0
        %2847 = vadd.xlane.f32.xlu0 %v2846
        %v2848 = vpop.xlane.xlu0 %2847
        %v2849 = vmul.f32 %v2848, %v1596
        %v2850 = vsub.f32 %v2843, %v2849
        %v2851 = vmul.f32 %v2850, %v2850
        %v2852 = vsel %vm1592, %v2851, 0.0
        %2853 = vadd.xlane.f32.xlu0 %v2852
        %v2854 = vpop.xlane.xlu0 %2853
        %v2855 = vmul.f32 %v2854, %v1596
        %v2856 = vadd.f32 %v2855, 1e-05
        %v2857 = vrsqrt.pop %v2856
        %v2858 = vmul.f32 %v2850, %v2857
        %v2860 = vlaneseq
        %v2861 = vshrl.u32 %v2860, 7
        %v2862 = vsub.s32 0, %v2861
        %v2863 = vrot.slane %v2844, %v2862
        %v2865 = vmul.f32 %v2858, %v2863
        %v2867 = vlaneseq
        %v2868 = vshrl.u32 %v2867, 7
        %v2869 = vsub.s32 0, %v2868
        %v2870 = vrot.slane %v2845, %v2869
        %v2872 = vadd.f32 %v2865, %v2870
        %v2873 = vld [vmem:[%s18] sm:$0xf]
        %v2874 = vld [vmem:[%s18 + $0x4] sm:$0xf]
        %v2875 = vld [vmem:[%s18 + $0x8] sm:$0xf]
        %v2876 = vld [vmem:[%s18 + $0xc] sm:$0xf]
        %v2877 = vpack.c.bf16 %v2872, %v2872
        %v2878 = vld [vmem:[%s19] sm:$0x1]
        %v2880 = vlaneseq
        %v2881 = vshrl.u32 %v2880, 7
        %v2882 = vsub.s32 0, %v2881
        %v2883 = vrot.slane %v2878, %v2882
        %v2889 = vunpack.c.l.b16 %v2873
        %v2890 = vunpack.c.l.b16 %v2874
        %v2891 = vunpack.c.l.b16 %v2875
        %v2892 = vunpack.c.l.b16 %v2876
        %v2893 = vpack.c.b16 %v2890, %v2889
        %v2894 = vpack.c.b16 %v2892, %v2891
        %v2898 = vsel %vm786, %v2877, 0
        %2900 = vmatprep.subr.bf16.mxu0 0
        %2901 = vmatpush1.bf16.msra.mxu0 %v2893
        %2902 = vmatprep.subr.bf16.mxu0 0
        %2903 = vmatpush1.bf16.msra.mxu0 %v2894
        %2904 = vmatprep.subr.bf16.mxu0 0
        %2905 = vmatpush1.bf16.msra.mxu0 0
        %2906 = vmatprep.subr.bf16.mxu0 0
        %2907 = vmatpush1.bf16.msra.mxu0 0
        %2908 = vmatprep.subr.bf16.mxu0 0
        %2909 = vmatpush1.bf16.msra.mxu0 0
        %2910 = vmatprep.subr.bf16.mxu0 0
        %2911 = vmatpush1.bf16.msra.mxu0 0
        %2912 = vmatprep.subr.bf16.mxu0 0
        %2913 = vmatpush1.bf16.msra.mxu0 0
        %2914 = vmatprep.subr.bf16.mxu0 0
        %2915 = vmatpush1.bf16.msra.mxu0 0
        %2916 = vmatprep.subr.bf16.mxu0 0
        %2917 = vmatpush1.bf16.msra.mxu0 0
        %2918 = vmatprep.subr.bf16.mxu0 0
        %2919 = vmatpush1.bf16.msra.mxu0 0
        %2920 = vmatprep.subr.bf16.mxu0 0
        %2921 = vmatpush1.bf16.msra.mxu0 0
        %2922 = vmatprep.subr.bf16.mxu0 0
        %2923 = vmatpush1.bf16.msra.mxu0 0
        %2924 = vmatprep.subr.bf16.mxu0 0
        %2925 = vmatpush1.bf16.msra.mxu0 0
        %2926 = vmatprep.subr.bf16.mxu0 0
        %2927 = vmatpush1.bf16.msra.mxu0 0
        %2928 = vmatprep.subr.bf16.mxu0 0
        %2929 = vmatpush1.bf16.msra.mxu0 0
        %2930 = vmatprep.subr.bf16.mxu0 0
        %2931 = vmatpush1.bf16.msra.mxu0 0
        %2932 = vmatprep.mubr.bf16.mxu0 0
        %2933 = vmatmul.mubr.bf16.gmra.mrb[0].mxu0 %v2898
        %v2934 = vpop.f32.mrb[0].mxu0
        %v2935 = vadd.f32 %v2883, %v2934
        %v2936 = vpop.f32.mrb[0].mxu0
        %v2937 = vpop.f32.mrb[0].mxu0
        %v2938 = vpop.f32.mrb[0].mxu0
        %2939 = vdwg.mxu0
        %v2940 = vmul.f32 %v2935, %v694
        %v2941 = vadd.f32 %v2940, %v680
        %vm2942 = vcmask 60416
        %2943 = vst.msk [vmem:[%s663] sm:$0xf] %vm2942, %v2941
        %s2944 = sand.u32 %s474, 1
        %s2945 = scalar_lea.sflag [#allocation5], %s2944
        %s2946 = sand.u32 %s474, 1
        %s2947 = smul.addr %s2946, 4
        %s2948 = scalar_lea.vmem [#allocation8], %s2947
        // Predicated region
        $region109: #{model_forward.1} parent=99 // pred_check
          %p2949 = pneg %p484
        $region110: #{model_forward.1} parent=99 // pred_check_branch
          %2951 = sbr.rel (%p2949) target = $region112
        $region111: #{model_forward.1} parent=99 // pred_region
          %s2953 = ssub.s32 64, 64
          %2954 = vsyncadd %s2945, %s2953
          %s2955 = smul.addr %s36, 64
          %s2956 = scalar_lea.hbm %s20, %s2955
          %s2958 = sshll.u32 %s2948, 4
          %s2959 = int_to_ptr.vmem [resolvable:$true] %s2958
          %2961 = dma.vmem_to_hbm [thread:$0]  %s2959, 64, %s2956, %s2945
        $region112: #{model_forward.1} parent=99 // pred_fallthru
          _
      $region100: #{model_forward.1} parent=5 // pred_fallthru
        _
      %p2962 = scmp.le.s32.totalorder 2, %s31
      // Predicated region
      $region113: #{model_forward.1} parent=5 // pred_check
        %p2963 = pneg %p2962
      $region114: #{model_forward.1} parent=5 // pred_check_branch
        %2965 = sbr.rel (%p2963) target = $region116
      $region115: #{model_forward.1} parent=5 // pred_region
        %s2966 = ssub.s32 %s31, 2
        // Predicated region
        $region117: #{model_forward.1} parent=115 // pred_check
          %p2967 = pneg %p490
        $region118: #{model_forward.1} parent=115 // pred_check_branch
          %2969 = sbr.rel (%p2967) target = $region120
        $region119: #{model_forward.1} parent=115 // pred_region
          %s2970 = sand.u32 %s475, 1
          %s2971 = scalar_lea.sflag [#allocation5], %s2970
          %s2972 = sand.u32 %s475, 1
          %s2973 = smul.addr %s2972, 4
          %s2974 = scalar_lea.vmem [#allocation8], %s2973
          %2975 = dma.done %s2971, 64
        $region120: #{model_forward.1} parent=115 // pred_fallthru
          _
      $region116: #{model_forward.1} parent=5 // pred_fallthru
        _
    $region6: #{model_forward.1} parent=1 // loop_footer
      %s35 = sadd.s32 1, %s31
    $region7: #{model_forward.1} parent=1 // loop_footer_branch
      %30 = sbr.rel target = $region3
    $region8: #{model_forward.1} parent=1 // loop_exit
      _
    %2976 = vsyncpa [#allocation4], 1
    %s2977 = scalar_lea.sflag [#allocation4], 1
    %2978 = vsyncpa %s2977, 1
    %2979 = vsyncpa [#allocation7], 1
    %2980 = vsyncpa [#allocation5], 1
    %s2981 = scalar_lea.sflag [#allocation5], 1
    %2982 = vsyncpa %s2981, 1

</llo_original>
